<compile_context>
chip_gen: v5e
topology: v5e:2x2
jax: 0.10.0
libtpu: 0.0.40
codegen_flags: <defaults>
</compile_context>

<pallas_src>
import functools
import math

import jax
import jax.numpy as jnp
import numpy as np
from jax.experimental import pallas as pl
from jax.experimental.pallas import tpu as pltpu


def _round_up(x, m):
    return (x + m - 1) // m * m


_SQRT1_2 = 1.0 / math.sqrt(2.0)


def _gelu(x):
    # Exact-erf GELU (nn.GELU() default) via Abramowitz-Stegun 7.1.26;
    # max |erf error| ~1.5e-7, uses only mul/add/exp (no Mosaic erf needed).
    z = jnp.abs(x) * _SQRT1_2
    t = 1.0 / (1.0 + 0.3275911 * z)
    poly = t * (0.254829592 + t * (-0.284496736 + t * (1.421413741
               + t * (-1.453152027 + t * 1.061405429))))
    erf_abs = 1.0 - poly * jnp.exp(-z * z)
    erf_x = jnp.where(x >= 0.0, erf_abs, -erf_abs)
    return 0.5 * x * (1.0 + erf_x)


# ----------------------------------------------------------------------------
# Fused kernel: one batch element per grid step.
# ----------------------------------------------------------------------------
def _mlp_kernel(x_ref, msg_ref, id_ref, w1_ref, b1_ref, dwt_ref, dwsum_ref,
                dwb_ref, cml_ref, cmr_ref, w2_ref, b2_ref,
                osp_ref, omsg_ref, hpad_ref, *, H, W, pad_rows):
    N = H * W
    M = msg_ref.shape[0]
    Ch = w1_ref.shape[1]

    # ---- fc1 over spatial + msg tokens in ONE MXU pass (bf16 in, f32 acc) --
    tok = jnp.concatenate([x_ref[...], msg_ref[...]], axis=0)
    h = jnp.dot(tok.astype(jnp.bfloat16), w1_ref[...],
                preferred_element_type=jnp.float32) + b1_ref[...]
    h_sp = h[:N]            # spatial hidden activation (goes through dwconv)
    h_msg = h[N:]           # msg-token hidden activation

    # ---- depthwise 3x3 conv (padding=1) on the spatial tokens ---------------
    # Stage h_sp in a row-zero-padded VMEM scratch: neighbour (di, dj) of
    # flattened pixel n lives at scratch row pad_rows + n + di*W + dj.
    # Row out-of-bounds falls into the zero pad rows; column wrap-around is
    # killed by the per-column validity masks (applied once per column group).
    zrow = jnp.zeros((pad_rows, Ch), jnp.float32)
    hpad_ref[pl.ds(0, pad_rows), :] = zrow
    hpad_ref[pl.ds(pad_rows + N, pad_rows), :] = zrow
    hpad_ref[pl.ds(pad_rows, N), :] = h_sp

    taps = dwt_ref[...]     # (9, Ch), tap t = (di+1)*3 + (dj+1), per channel

    def shifted(di, dj):
        return hpad_ref[pl.ds(pad_rows + di * W + dj, N), :]

    # Group the 9 taps by column offset dj; mask each side column ONCE.
    centre = (shifted(-1, 0) * taps[1:2, :] + shifted(0, 0) * taps[4:5, :]
              + shifted(1, 0) * taps[7:8, :])
    left = (shifted(-1, -1) * taps[0:1, :] + shifted(0, -1) * taps[3:4, :]
            + shifted(1, -1) * taps[6:7, :])
    right = (shifted(-1, 1) * taps[2:3, :] + shifted(0, 1) * taps[5:6, :]
             + shifted(1, 1) * taps[8:9, :])
    conv = centre + left * cml_ref[...] + right * cmr_ref[...] + dwb_ref[...]

    # ---- activation -----------------------------------------------------------
    a_sp = _gelu(h_sp + conv)
    # msg tokens: m = m + m * sum(dw_w) + dw_b ; m = gelu(m)   (per reference)
    a_msg = _gelu(h_msg + h_msg * dwsum_ref[...] + dwb_ref[...])

    # ---- fc2 + bias + residual in ONE MXU pass, split stores -------------------
    a = jnp.concatenate([a_sp, a_msg], axis=0).astype(jnp.bfloat16)
    out = jnp.dot(a, w2_ref[...], preferred_element_type=jnp.float32)
    out = out + b2_ref[...] + id_ref[...].astype(jnp.float32)
    osp_ref[...] = out[:N].astype(osp_ref.dtype)
    omsg_ref[...] = out[N:].astype(omsg_ref.dtype)


# ----------------------------------------------------------------------------
# Parameter preparation (all layout / dtype work done once, at init)
# ----------------------------------------------------------------------------
def pack_params(fc1_w, fc1_b, dw_w, dw_b, fc2_w, fc2_b):
    """PyTorch-layout params -> kernel-layout params (precomputed once)."""
    Ch = fc1_w.shape[0]                       # fc1.weight: (hidden, in)
    Cout = fc2_w.shape[0]                     # fc2.weight: (out, hidden)
    return {
        'w1_t': fc1_w.T.astype(jnp.bfloat16),                       # (Cin, Ch)
        'b1': fc1_b.reshape(1, Ch).astype(jnp.float32),
        'dw_taps': dw_w.reshape(Ch, 9).T.astype(jnp.float32),       # (9, Ch)
        'dw_sum': jnp.sum(dw_w, axis=(-1, -2, -3)).reshape(1, Ch)
                  .astype(jnp.float32),
        'dw_b': dw_b.reshape(1, Ch).astype(jnp.float32),
        'w2_t': fc2_w.T.astype(jnp.bfloat16),                       # (Ch, Cout)
        'b2': fc2_b.reshape(1, Cout).astype(jnp.float32),
    }


def init_raw_params(key, in_features, hidden_features=None, out_features=None):
    out_features = out_features or in_features
    hidden_features = hidden_features or in_features
    k1, k2, k3 = jax.random.split(key, 3)
    # nn.Linear: trunc_normal_(std=0.02), bias = 0   (PyTorch layout (out, in))
    fc1_w = 0.02 * jax.random.truncated_normal(
        k1, -2.0, 2.0, (hidden_features, in_features), jnp.float32)
    fc1_b = jnp.zeros((hidden_features,), jnp.float32)
    fc2_w = 0.02 * jax.random.truncated_normal(
        k2, -2.0, 2.0, (out_features, hidden_features), jnp.float32)
    fc2_b = jnp.zeros((out_features,), jnp.float32)
    # depthwise Conv2d(dim, dim, 3, 1, 1, groups=dim): N(0, sqrt(2/fan_out)),
    # fan_out = 3*3*dim // dim = 9; bias = 0
    dw_w = math.sqrt(2.0 / 9.0) * jax.random.normal(
        k3, (hidden_features, 1, 3, 3), jnp.float32)
    dw_b = jnp.zeros((hidden_features,), jnp.float32)
    return fc1_w, fc1_b, dw_w, dw_b, fc2_w, fc2_b


# ----------------------------------------------------------------------------
# Forward wrapper
# ----------------------------------------------------------------------------
def mlp_forward(params, x, H, W, identity=None, msg_tokens=None):
    assert msg_tokens is not None           # the reference module requires it
    B, N, Cin = x.shape
    assert N == H * W
    Bm, M, Cm = msg_tokens.shape
    assert Bm == B and Cm == Cin
    Ch = params['w1_t'].shape[1]
    Cout = params['w2_t'].shape[1]
    if identity is None:
        # PyTorch's default (`identity = x`) only type-checks when no shape
        # change happens; with msg tokens the natural residual is the full
        # concatenated token input.
        assert Cout == Cin
        identity = jnp.concatenate([x, msg_tokens], axis=1)
    assert identity.shape == (B, N + M, Cout)

    # column-validity masks for the 3x3 depthwise taps (depend on j = n % W)
    j = np.arange(N) % W
    cm_l = jnp.asarray((j >= 1).astype(np.float32).reshape(N, 1))
    cm_r = jnp.asarray((j <= W - 2).astype(np.float32).reshape(N, 1))

    pad_rows = max(8, _round_up(W + 1, 8))   # >= W+1 so every tap read is in-bounds

    def _bcast(shape):
        return pl.BlockSpec(shape, lambda b: (0,) * len(shape))

    in_specs = [
        pl.BlockSpec((None, N, Cin), lambda b: (b, 0, 0)),        # x (spatial)
        pl.BlockSpec((None, M, Cin), lambda b: (b, 0, 0)),        # msg tokens
        pl.BlockSpec((None, N + M, Cout), lambda b: (b, 0, 0)),   # identity
        _bcast((Cin, Ch)),     # w1^T (bf16)
        _bcast((1, Ch)),       # b1
        _bcast((9, Ch)),       # dw taps
        _bcast((1, Ch)),       # dw weight sum
        _bcast((1, Ch)),       # dw bias
        _bcast((N, 1)),        # left-column validity mask
        _bcast((N, 1)),        # right-column validity mask
        _bcast((Ch, Cout)),    # w2^T (bf16)
        _bcast((1, Cout)),     # b2
    ]
    out_specs = (pl.BlockSpec((None, N, Cout), lambda b: (b, 0, 0)),
                 pl.BlockSpec((None, M, Cout), lambda b: (b, 0, 0)))
    out_dtype = x.dtype
    out_shape = (jax.ShapeDtypeStruct((B, N, Cout), out_dtype),
                 jax.ShapeDtypeStruct((B, M, Cout), out_dtype))

    kernel = functools.partial(_mlp_kernel, H=H, W=W, pad_rows=pad_rows)
    out_sp, out_msg = pl.pallas_call(
        kernel,
        grid=(B,),
        in_specs=in_specs,
        out_specs=out_specs,
        out_shape=out_shape,
        scratch_shapes=[pltpu.VMEM((N + 2 * pad_rows, Ch), jnp.float32)],
        compiler_params=pltpu.CompilerParams(
            dimension_semantics=("parallel",)),
    )(x, msg_tokens, identity,
      params['w1_t'], params['b1'], params['dw_taps'], params['dw_sum'],
      params['dw_b'], cm_l, cm_r, params['w2_t'], params['b2'])
    return out_sp, out_msg


# ----------------------------------------------------------------------------
# Pure-JAX f32 reference (mirrors the PyTorch module) for a tolerance check.
# ----------------------------------------------------------------------------
def mlp_reference(raw, x, H, W, identity, msg_tokens):
    fc1_w, fc1_b, dw_w, dw_b, fc2_w, fc2_b = raw
    B, N, _ = x.shape
    Ch = fc1_w.shape[0]
    h = jnp.einsum('bnc,oc->bno', x, fc1_w) + fc1_b
    img = h.transpose(0, 2, 1).reshape(B, Ch, H, W)
    conv = jax.lax.conv_general_dilated(
        img, dw_w, window_strides=(1, 1), padding=((1, 1), (1, 1)),
        dimension_numbers=('NCHW', 'OIHW', 'NCHW'),
        feature_group_count=Ch) + dw_b.reshape(1, Ch, 1, 1)
    conv = conv.reshape(B, Ch, N).transpose(0, 2, 1)
    a = jax.nn.gelu(h + conv, approximate=False)
    out = jnp.einsum('bnc,oc->bno', a, fc2_w) + fc2_b

    m = jnp.einsum('bnc,oc->bno', msg_tokens, fc1_w) + fc1_b
    m = m + m * jnp.sum(dw_w, axis=(1, 2, 3)) + dw_b
    m = jax.nn.gelu(m, approximate=False)
    m = jnp.einsum('bnc,oc->bno', m, fc2_w) + fc2_b

    full = jnp.concatenate([out, m], axis=1) + identity
    return full[:, :N], full[:, N:]


if __name__ == "__main__":
    key = jax.random.PRNGKey(0)
    k_param, k_x, k_msg, k_id = jax.random.split(key, 4)

    B, H, W = 2, 16, 16
    in_features, hidden_features = 64, 128
    N, M = H * W, 8

    raw = init_raw_params(k_param, in_features, hidden_features)
    params = pack_params(*raw)

    x = jax.random.normal(k_x, (B, N, in_features), jnp.float32)
    msg_tokens = jax.random.normal(k_msg, (B, M, in_features), jnp.float32)
    identity = jax.random.normal(k_id, (B, N + M, in_features), jnp.float32)

    out_sp, out_msg = mlp_forward(params, x, H, W, identity=identity,
                                  msg_tokens=msg_tokens)
    jax.block_until_ready((out_sp, out_msg))

    assert out_sp.shape == (B, N, in_features)
    assert out_msg.shape == (B, M, in_features)
    assert bool(jnp.all(jnp.isfinite(out_sp)))
    assert bool(jnp.all(jnp.isfinite(out_msg)))

    # tolerance check vs the f32 reference (kernel matmuls are bf16-in/f32-acc)
    ref_sp, ref_msg = mlp_reference(raw, x, H, W, identity, msg_tokens)
    err = max(float(jnp.max(jnp.abs(out_sp - ref_sp))),
              float(jnp.max(jnp.abs(out_msg - ref_msg))))
    assert err < 5e-2, f"max |kernel - reference| = {err}"
    print("KERNEL_OK")
</pallas_src>

<mosaic_0001>
module attributes {stable_mosaic.version = 11 : i64} {
  func.func @_mlp_kernel(%arg0: i32, %arg1: memref<1x256x64xf32, #tpu.memory_space<vmem>>, %arg2: memref<1x8x64xf32, #tpu.memory_space<vmem>>, %arg3: memref<1x264x64xf32, #tpu.memory_space<vmem>>, %arg4: memref<64x128xbf16, #tpu.memory_space<vmem>>, %arg5: memref<1x128xf32, #tpu.memory_space<vmem>>, %arg6: memref<9x128xf32, #tpu.memory_space<vmem>>, %arg7: memref<1x128xf32, #tpu.memory_space<vmem>>, %arg8: memref<1x128xf32, #tpu.memory_space<vmem>>, %arg9: memref<256x1xf32, #tpu.memory_space<vmem>>, %arg10: memref<256x1xf32, #tpu.memory_space<vmem>>, %arg11: memref<128x64xbf16, #tpu.memory_space<vmem>>, %arg12: memref<1x64xf32, #tpu.memory_space<vmem>>, %arg13: memref<1x256x64xf32, #tpu.memory_space<vmem>>, %arg14: memref<1x8x64xf32, #tpu.memory_space<vmem>>, %arg15: memref<304x128xf32, #tpu.memory_space<vmem>>) attributes {dimension_semantics = [#tpu.dimension_semantics<parallel>], iteration_bounds = array<i64: 2>, scalar_prefetch = 0 : i64, scratch_operands = 1 : i64, tpu.core_type = #tpu.core_type<tc>, window_params = [{transform_indices = @transform_0, window_bounds = array<i64: 1, 256, 64>}, {transform_indices = @transform_1, window_bounds = array<i64: 1, 8, 64>}, {transform_indices = @transform_2, window_bounds = array<i64: 1, 264, 64>}, {pipeline_mode = #tpu.pipeline_mode<synchronous>, transform_indices = @transform_3, window_bounds = array<i64: 64, 128>}, {pipeline_mode = #tpu.pipeline_mode<synchronous>, transform_indices = @transform_4, window_bounds = array<i64: 1, 128>}, {pipeline_mode = #tpu.pipeline_mode<synchronous>, transform_indices = @transform_5, window_bounds = array<i64: 9, 128>}, {pipeline_mode = #tpu.pipeline_mode<synchronous>, transform_indices = @transform_6, window_bounds = array<i64: 1, 128>}, {pipeline_mode = #tpu.pipeline_mode<synchronous>, transform_indices = @transform_7, window_bounds = array<i64: 1, 128>}, {pipeline_mode = #tpu.pipeline_mode<synchronous>, transform_indices = @transform_8, window_bounds = array<i64: 256, 1>}, {pipeline_mode = #tpu.pipeline_mode<synchronous>, transform_indices = @transform_9, window_bounds = array<i64: 256, 1>}, {pipeline_mode = #tpu.pipeline_mode<synchronous>, transform_indices = @transform_10, window_bounds = array<i64: 128, 64>}, {pipeline_mode = #tpu.pipeline_mode<synchronous>, transform_indices = @transform_11, window_bounds = array<i64: 1, 64>}, {transform_indices = @transform_12, window_bounds = array<i64: 1, 256, 64>}, {transform_indices = @transform_13, window_bounds = array<i64: 1, 8, 64>}]} {
    %c0 = arith.constant 0 : index
    %c0_0 = arith.constant 0 : index
    %c0_1 = arith.constant 0 : index
    %0 = vector.load %arg1[%c0, %c0_0, %c0_1] : memref<1x256x64xf32, #tpu.memory_space<vmem>>, vector<1x256x64xf32>
    %1 = vector.shape_cast %0 : vector<1x256x64xf32> to vector<256x64xf32>
    %c0_2 = arith.constant 0 : index
    %c0_3 = arith.constant 0 : index
    %c0_4 = arith.constant 0 : index
    %2 = vector.load %arg2[%c0_2, %c0_3, %c0_4] : memref<1x8x64xf32, #tpu.memory_space<vmem>>, vector<1x8x64xf32>
    %3 = vector.shape_cast %2 : vector<1x8x64xf32> to vector<8x64xf32>
    %4 = tpu.concatenate %1, %3 in 0 : vector<256x64xf32>, vector<8x64xf32> -> vector<264x64xf32>
    %5 = arith.truncf %4 : vector<264x64xf32> to vector<264x64xbf16>
    %c0_5 = arith.constant 0 : index
    %c0_6 = arith.constant 0 : index
    %6 = vector.load %arg4[%c0_5, %c0_6] : memref<64x128xbf16, #tpu.memory_space<vmem>>, vector<64x128xbf16>
    %cst = arith.constant dense<0.000000e+00> : vector<264x128xf32>
    %7 = tpu.matmul %5, %6, %cst {dimension_numbers = #tpu.dot_dimension_numbers<[1], [0], [0], [1], [0, 0, 1, 1], [], []>} : vector<264x64xbf16>, vector<64x128xbf16>, vector<264x128xf32> -> vector<264x128xf32>
    %c0_7 = arith.constant 0 : index
    %c0_8 = arith.constant 0 : index
    %8 = vector.load %arg5[%c0_7, %c0_8] : memref<1x128xf32, #tpu.memory_space<vmem>>, vector<1x128xf32>
    %9 = vector.broadcast %8 : vector<1x128xf32> to vector<264x128xf32>
    %10 = arith.addf %7, %9 : vector<264x128xf32>
    %11 = vector.extract_strided_slice %10 {offsets = [0, 0], sizes = [256, 128], strides = [1, 1]} : vector<264x128xf32> to vector<256x128xf32>
    %12 = vector.extract_strided_slice %10 {offsets = [256, 0], sizes = [8, 128], strides = [1, 1]} : vector<264x128xf32> to vector<8x128xf32>
    %cst_9 = arith.constant 0.000000e+00 : f32
    %13 = vector.broadcast %cst_9 : f32 to vector<24x128xf32>
    %c0_10 = arith.constant 0 : index
    %c0_11 = arith.constant 0 : index
    %14 = vector.load %arg15[%c0_10, %c0_11] : memref<304x128xf32, #tpu.memory_space<vmem>>, vector<24x128xf32>
    tpu.vector_store %arg15[%c0_10, %c0_11], %13 {strides = array<i32>} : memref<304x128xf32, #tpu.memory_space<vmem>>, vector<24x128xf32>,
    %c280 = arith.constant 280 : index
    %c0_12 = arith.constant 0 : index
    %15 = vector.load %arg15[%c280, %c0_12] : memref<304x128xf32, #tpu.memory_space<vmem>>, vector<24x128xf32>
    tpu.vector_store %arg15[%c280, %c0_12], %13 {strides = array<i32>} : memref<304x128xf32, #tpu.memory_space<vmem>>, vector<24x128xf32>,
    %c24 = arith.constant 24 : index
    %c0_13 = arith.constant 0 : index
    %16 = vector.load %arg15[%c24, %c0_13] : memref<304x128xf32, #tpu.memory_space<vmem>>, vector<256x128xf32>
    tpu.vector_store %arg15[%c24, %c0_13], %11 {strides = array<i32>} : memref<304x128xf32, #tpu.memory_space<vmem>>, vector<256x128xf32>,
    %c0_14 = arith.constant 0 : index
    %c0_15 = arith.constant 0 : index
    %17 = vector.load %arg6[%c0_14, %c0_15] : memref<9x128xf32, #tpu.memory_space<vmem>>, vector<9x128xf32>
    %c8 = arith.constant 8 : index
    %c0_16 = arith.constant 0 : index
    %18 = vector.load %arg15[%c8, %c0_16] : memref<304x128xf32, #tpu.memory_space<vmem>>, vector<256x128xf32>
    %19 = vector.extract_strided_slice %17 {offsets = [1, 0], sizes = [1, 128], strides = [1, 1]} : vector<9x128xf32> to vector<1x128xf32>
    %20 = vector.broadcast %19 : vector<1x128xf32> to vector<256x128xf32>
    %21 = arith.mulf %18, %20 : vector<256x128xf32>
    %c24_17 = arith.constant 24 : index
    %c0_18 = arith.constant 0 : index
    %22 = vector.load %arg15[%c24_17, %c0_18] : memref<304x128xf32, #tpu.memory_space<vmem>>, vector<256x128xf32>
    %23 = vector.extract_strided_slice %17 {offsets = [4, 0], sizes = [1, 128], strides = [1, 1]} : vector<9x128xf32> to vector<1x128xf32>
    %24 = vector.broadcast %23 : vector<1x128xf32> to vector<256x128xf32>
    %25 = arith.mulf %22, %24 : vector<256x128xf32>
    %26 = arith.addf %21, %25 : vector<256x128xf32>
    %c40 = arith.constant 40 : index
    %c0_19 = arith.constant 0 : index
    %27 = vector.load %arg15[%c40, %c0_19] : memref<304x128xf32, #tpu.memory_space<vmem>>, vector<256x128xf32>
    %28 = vector.extract_strided_slice %17 {offsets = [7, 0], sizes = [1, 128], strides = [1, 1]} : vector<9x128xf32> to vector<1x128xf32>
    %29 = vector.broadcast %28 : vector<1x128xf32> to vector<256x128xf32>
    %30 = arith.mulf %27, %29 : vector<256x128xf32>
    %31 = arith.addf %26, %30 : vector<256x128xf32>
    %c7 = arith.constant 7 : index
    %c0_20 = arith.constant 0 : index
    %32 = vector.load %arg15[%c7, %c0_20] : memref<304x128xf32, #tpu.memory_space<vmem>>, vector<256x128xf32>
    %33 = vector.extract_strided_slice %17 {offsets = [0, 0], sizes = [1, 128], strides = [1, 1]} : vector<9x128xf32> to vector<1x128xf32>
    %34 = vector.broadcast %33 : vector<1x128xf32> to vector<256x128xf32>
    %35 = arith.mulf %32, %34 : vector<256x128xf32>
    %c23 = arith.constant 23 : index
    %c0_21 = arith.constant 0 : index
    %36 = vector.load %arg15[%c23, %c0_21] : memref<304x128xf32, #tpu.memory_space<vmem>>, vector<256x128xf32>
    %37 = vector.extract_strided_slice %17 {offsets = [3, 0], sizes = [1, 128], strides = [1, 1]} : vector<9x128xf32> to vector<1x128xf32>
    %38 = vector.broadcast %37 : vector<1x128xf32> to vector<256x128xf32>
    %39 = arith.mulf %36, %38 : vector<256x128xf32>
    %40 = arith.addf %35, %39 : vector<256x128xf32>
    %c39 = arith.constant 39 : index
    %c0_22 = arith.constant 0 : index
    %41 = vector.load %arg15[%c39, %c0_22] : memref<304x128xf32, #tpu.memory_space<vmem>>, vector<256x128xf32>
    %42 = vector.extract_strided_slice %17 {offsets = [6, 0], sizes = [1, 128], strides = [1, 1]} : vector<9x128xf32> to vector<1x128xf32>
    %43 = vector.broadcast %42 : vector<1x128xf32> to vector<256x128xf32>
    %44 = arith.mulf %41, %43 : vector<256x128xf32>
    %45 = arith.addf %40, %44 : vector<256x128xf32>
    %c9 = arith.constant 9 : index
    %c0_23 = arith.constant 0 : index
    %46 = vector.load %arg15[%c9, %c0_23] : memref<304x128xf32, #tpu.memory_space<vmem>>, vector<256x128xf32>
    %47 = vector.extract_strided_slice %17 {offsets = [2, 0], sizes = [1, 128], strides = [1, 1]} : vector<9x128xf32> to vector<1x128xf32>
    %48 = vector.broadcast %47 : vector<1x128xf32> to vector<256x128xf32>
    %49 = arith.mulf %46, %48 : vector<256x128xf32>
    %c25 = arith.constant 25 : index
    %c0_24 = arith.constant 0 : index
    %50 = vector.load %arg15[%c25, %c0_24] : memref<304x128xf32, #tpu.memory_space<vmem>>, vector<256x128xf32>
    %51 = vector.extract_strided_slice %17 {offsets = [5, 0], sizes = [1, 128], strides = [1, 1]} : vector<9x128xf32> to vector<1x128xf32>
    %52 = vector.broadcast %51 : vector<1x128xf32> to vector<256x128xf32>
    %53 = arith.mulf %50, %52 : vector<256x128xf32>
    %54 = arith.addf %49, %53 : vector<256x128xf32>
    %c41 = arith.constant 41 : index
    %c0_25 = arith.constant 0 : index
    %55 = vector.load %arg15[%c41, %c0_25] : memref<304x128xf32, #tpu.memory_space<vmem>>, vector<256x128xf32>
    %56 = vector.extract_strided_slice %17 {offsets = [8, 0], sizes = [1, 128], strides = [1, 1]} : vector<9x128xf32> to vector<1x128xf32>
    %57 = vector.broadcast %56 : vector<1x128xf32> to vector<256x128xf32>
    %58 = arith.mulf %55, %57 : vector<256x128xf32>
    %59 = arith.addf %54, %58 : vector<256x128xf32>
    %c0_26 = arith.constant 0 : index
    %c0_27 = arith.constant 0 : index
    %60 = vector.load %arg9[%c0_26, %c0_27] : memref<256x1xf32, #tpu.memory_space<vmem>>, vector<256x1xf32>
    %61 = vector.broadcast %60 : vector<256x1xf32> to vector<256x128xf32>
    %62 = arith.mulf %45, %61 : vector<256x128xf32>
    %63 = arith.addf %31, %62 : vector<256x128xf32>
    %c0_28 = arith.constant 0 : index
    %c0_29 = arith.constant 0 : index
    %64 = vector.load %arg10[%c0_28, %c0_29] : memref<256x1xf32, #tpu.memory_space<vmem>>, vector<256x1xf32>
    %65 = vector.broadcast %64 : vector<256x1xf32> to vector<256x128xf32>
    %66 = arith.mulf %59, %65 : vector<256x128xf32>
    %67 = arith.addf %63, %66 : vector<256x128xf32>
    %c0_30 = arith.constant 0 : index
    %c0_31 = arith.constant 0 : index
    %68 = vector.load %arg8[%c0_30, %c0_31] : memref<1x128xf32, #tpu.memory_space<vmem>>, vector<1x128xf32>
    %69 = vector.broadcast %68 : vector<1x128xf32> to vector<256x128xf32>
    %70 = arith.addf %67, %69 : vector<256x128xf32>
    %71 = arith.addf %11, %70 : vector<256x128xf32>
    %72 = math.absf %71 : vector<256x128xf32>
    %cst_32 = arith.constant 0.707106769 : f32
    %73 = vector.broadcast %cst_32 : f32 to vector<256x128xf32>
    %74 = arith.mulf %72, %73 : vector<256x128xf32>
    %cst_33 = arith.constant 0.327591091 : f32
    %75 = vector.broadcast %cst_33 : f32 to vector<256x128xf32>
    %76 = arith.mulf %75, %74 : vector<256x128xf32>
    %cst_34 = arith.constant 1.000000e+00 : f32
    %77 = vector.broadcast %cst_34 : f32 to vector<256x128xf32>
    %78 = arith.addf %77, %76 : vector<256x128xf32>
    %cst_35 = arith.constant 1.000000e+00 : f32
    %79 = vector.broadcast %cst_35 : f32 to vector<256x128xf32>
    %80 = arith.divf %79, %78 : vector<256x128xf32>
    %cst_36 = arith.constant 1.06140542 : f32
    %81 = vector.broadcast %cst_36 : f32 to vector<256x128xf32>
    %82 = arith.mulf %80, %81 : vector<256x128xf32>
    %cst_37 = arith.constant -1.45315206 : f32
    %83 = vector.broadcast %cst_37 : f32 to vector<256x128xf32>
    %84 = arith.addf %83, %82 : vector<256x128xf32>
    %85 = arith.mulf %80, %84 : vector<256x128xf32>
    %cst_38 = arith.constant 1.42141378 : f32
    %86 = vector.broadcast %cst_38 : f32 to vector<256x128xf32>
    %87 = arith.addf %86, %85 : vector<256x128xf32>
    %88 = arith.mulf %80, %87 : vector<256x128xf32>
    %cst_39 = arith.constant -0.284496725 : f32
    %89 = vector.broadcast %cst_39 : f32 to vector<256x128xf32>
    %90 = arith.addf %89, %88 : vector<256x128xf32>
    %91 = arith.mulf %80, %90 : vector<256x128xf32>
    %cst_40 = arith.constant 0.254829586 : f32
    %92 = vector.broadcast %cst_40 : f32 to vector<256x128xf32>
    %93 = arith.addf %92, %91 : vector<256x128xf32>
    %94 = arith.mulf %80, %93 : vector<256x128xf32>
    %cst_41 = arith.constant 0.000000e+00 : f32
    %95 = vector.broadcast %cst_41 : f32 to vector<256x128xf32>
    %96 = arith.subf %95, %74 : vector<256x128xf32>
    %97 = arith.mulf %96, %74 : vector<256x128xf32>
    %98 = math.exp %97 : vector<256x128xf32>
    %99 = arith.mulf %94, %98 : vector<256x128xf32>
    %cst_42 = arith.constant 1.000000e+00 : f32
    %100 = vector.broadcast %cst_42 : f32 to vector<256x128xf32>
    %101 = arith.subf %100, %99 : vector<256x128xf32>
    %cst_43 = arith.constant 0.000000e+00 : f32
    %102 = vector.broadcast %cst_43 : f32 to vector<256x128xf32>
    %103 = arith.cmpf oge, %71, %102 : vector<256x128xf32>
    %cst_44 = arith.constant 0.000000e+00 : f32
    %104 = vector.broadcast %cst_44 : f32 to vector<256x128xf32>
    %105 = arith.subf %104, %101 : vector<256x128xf32>
    %106 = arith.select %103, %101, %105 : vector<256x128xi1>, vector<256x128xf32>
    %cst_45 = arith.constant 5.000000e-01 : f32
    %107 = vector.broadcast %cst_45 : f32 to vector<256x128xf32>
    %108 = arith.mulf %107, %71 : vector<256x128xf32>
    %cst_46 = arith.constant 1.000000e+00 : f32
    %109 = vector.broadcast %cst_46 : f32 to vector<256x128xf32>
    %110 = arith.addf %109, %106 : vector<256x128xf32>
    %111 = arith.mulf %108, %110 : vector<256x128xf32>
    %c0_47 = arith.constant 0 : index
    %c0_48 = arith.constant 0 : index
    %112 = vector.load %arg7[%c0_47, %c0_48] : memref<1x128xf32, #tpu.memory_space<vmem>>, vector<1x128xf32>
    %113 = vector.broadcast %112 : vector<1x128xf32> to vector<8x128xf32>
    %114 = arith.mulf %12, %113 : vector<8x128xf32>
    %115 = arith.addf %12, %114 : vector<8x128xf32>
    %c0_49 = arith.constant 0 : index
    %c0_50 = arith.constant 0 : index
    %116 = vector.load %arg8[%c0_49, %c0_50] : memref<1x128xf32, #tpu.memory_space<vmem>>, vector<1x128xf32>
    %117 = vector.broadcast %116 : vector<1x128xf32> to vector<8x128xf32>
    %118 = arith.addf %115, %117 : vector<8x128xf32>
    %119 = math.absf %118 : vector<8x128xf32>
    %cst_51 = arith.constant 0.707106769 : f32
    %120 = vector.broadcast %cst_51 : f32 to vector<8x128xf32>
    %121 = arith.mulf %119, %120 : vector<8x128xf32>
    %cst_52 = arith.constant 0.327591091 : f32
    %122 = vector.broadcast %cst_52 : f32 to vector<8x128xf32>
    %123 = arith.mulf %122, %121 : vector<8x128xf32>
    %cst_53 = arith.constant 1.000000e+00 : f32
    %124 = vector.broadcast %cst_53 : f32 to vector<8x128xf32>
    %125 = arith.addf %124, %123 : vector<8x128xf32>
    %cst_54 = arith.constant 1.000000e+00 : f32
    %126 = vector.broadcast %cst_54 : f32 to vector<8x128xf32>
    %127 = arith.divf %126, %125 : vector<8x128xf32>
    %cst_55 = arith.constant 1.06140542 : f32
    %128 = vector.broadcast %cst_55 : f32 to vector<8x128xf32>
    %129 = arith.mulf %127, %128 : vector<8x128xf32>
    %cst_56 = arith.constant -1.45315206 : f32
    %130 = vector.broadcast %cst_56 : f32 to vector<8x128xf32>
    %131 = arith.addf %130, %129 : vector<8x128xf32>
    %132 = arith.mulf %127, %131 : vector<8x128xf32>
    %cst_57 = arith.constant 1.42141378 : f32
    %133 = vector.broadcast %cst_57 : f32 to vector<8x128xf32>
    %134 = arith.addf %133, %132 : vector<8x128xf32>
    %135 = arith.mulf %127, %134 : vector<8x128xf32>
    %cst_58 = arith.constant -0.284496725 : f32
    %136 = vector.broadcast %cst_58 : f32 to vector<8x128xf32>
    %137 = arith.addf %136, %135 : vector<8x128xf32>
    %138 = arith.mulf %127, %137 : vector<8x128xf32>
    %cst_59 = arith.constant 0.254829586 : f32
    %139 = vector.broadcast %cst_59 : f32 to vector<8x128xf32>
    %140 = arith.addf %139, %138 : vector<8x128xf32>
    %141 = arith.mulf %127, %140 : vector<8x128xf32>
    %cst_60 = arith.constant 0.000000e+00 : f32
    %142 = vector.broadcast %cst_60 : f32 to vector<8x128xf32>
    %143 = arith.subf %142, %121 : vector<8x128xf32>
    %144 = arith.mulf %143, %121 : vector<8x128xf32>
    %145 = math.exp %144 : vector<8x128xf32>
    %146 = arith.mulf %141, %145 : vector<8x128xf32>
    %cst_61 = arith.constant 1.000000e+00 : f32
    %147 = vector.broadcast %cst_61 : f32 to vector<8x128xf32>
    %148 = arith.subf %147, %146 : vector<8x128xf32>
    %cst_62 = arith.constant 0.000000e+00 : f32
    %149 = vector.broadcast %cst_62 : f32 to vector<8x128xf32>
    %150 = arith.cmpf oge, %118, %149 : vector<8x128xf32>
    %cst_63 = arith.constant 0.000000e+00 : f32
    %151 = vector.broadcast %cst_63 : f32 to vector<8x128xf32>
    %152 = arith.subf %151, %148 : vector<8x128xf32>
    %153 = arith.select %150, %148, %152 : vector<8x128xi1>, vector<8x128xf32>
    %cst_64 = arith.constant 5.000000e-01 : f32
    %154 = vector.broadcast %cst_64 : f32 to vector<8x128xf32>
    %155 = arith.mulf %154, %118 : vector<8x128xf32>
    %cst_65 = arith.constant 1.000000e+00 : f32
    %156 = vector.broadcast %cst_65 : f32 to vector<8x128xf32>
    %157 = arith.addf %156, %153 : vector<8x128xf32>
    %158 = arith.mulf %155, %157 : vector<8x128xf32>
    %159 = tpu.concatenate %111, %158 in 0 : vector<256x128xf32>, vector<8x128xf32> -> vector<264x128xf32>
    %160 = arith.truncf %159 : vector<264x128xf32> to vector<264x128xbf16>
    %c0_66 = arith.constant 0 : index
    %c0_67 = arith.constant 0 : index
    %161 = vector.load %arg11[%c0_66, %c0_67] : memref<128x64xbf16, #tpu.memory_space<vmem>>, vector<128x64xbf16>
    %cst_68 = arith.constant dense<0.000000e+00> : vector<264x64xf32>
    %162 = tpu.matmul %160, %161, %cst_68 {dimension_numbers = #tpu.dot_dimension_numbers<[1], [0], [0], [1], [0, 0, 1, 1], [], []>} : vector<264x128xbf16>, vector<128x64xbf16>, vector<264x64xf32> -> vector<264x64xf32>
    %c0_69 = arith.constant 0 : index
    %c0_70 = arith.constant 0 : index
    %163 = vector.load %arg12[%c0_69, %c0_70] : memref<1x64xf32, #tpu.memory_space<vmem>>, vector<1x64xf32>
    %164 = vector.broadcast %163 : vector<1x64xf32> to vector<264x64xf32>
    %165 = arith.addf %162, %164 : vector<264x64xf32>
    %c0_71 = arith.constant 0 : index
    %c0_72 = arith.constant 0 : index
    %c0_73 = arith.constant 0 : index
    %166 = vector.load %arg3[%c0_71, %c0_72, %c0_73] : memref<1x264x64xf32, #tpu.memory_space<vmem>>, vector<1x264x64xf32>
    %167 = vector.shape_cast %166 : vector<1x264x64xf32> to vector<264x64xf32>
    %168 = arith.addf %165, %167 : vector<264x64xf32>
    %169 = vector.extract_strided_slice %168 {offsets = [0, 0], sizes = [256, 64], strides = [1, 1]} : vector<264x64xf32> to vector<256x64xf32>
    %c0_74 = arith.constant 0 : index
    %c0_75 = arith.constant 0 : index
    %c0_76 = arith.constant 0 : index
    %170 = vector.load %arg13[%c0_74, %c0_75, %c0_76] : memref<1x256x64xf32, #tpu.memory_space<vmem>>, vector<1x256x64xf32>
    %171 = vector.shape_cast %170 : vector<1x256x64xf32> to vector<256x64xf32>
    %172 = vector.shape_cast %169 : vector<256x64xf32> to vector<1x256x64xf32>
    tpu.vector_store %arg13[%c0_74, %c0_75, %c0_76], %172 {strides = array<i32>} : memref<1x256x64xf32, #tpu.memory_space<vmem>>, vector<1x256x64xf32>,
    %173 = vector.extract_strided_slice %168 {offsets = [256, 0], sizes = [8, 64], strides = [1, 1]} : vector<264x64xf32> to vector<8x64xf32>
    %c0_77 = arith.constant 0 : index
    %c0_78 = arith.constant 0 : index
    %c0_79 = arith.constant 0 : index
    %174 = vector.load %arg14[%c0_77, %c0_78, %c0_79] : memref<1x8x64xf32, #tpu.memory_space<vmem>>, vector<1x8x64xf32>
    %175 = vector.shape_cast %174 : vector<1x8x64xf32> to vector<8x64xf32>
    %176 = vector.shape_cast %173 : vector<8x64xf32> to vector<1x8x64xf32>
    tpu.vector_store %arg14[%c0_77, %c0_78, %c0_79], %176 {strides = array<i32>} : memref<1x8x64xf32, #tpu.memory_space<vmem>>, vector<1x8x64xf32>,
    return
  }
  func.func @transform_0(%arg0: i32) -> (i32, i32, i32) {
    %c0_i32 = arith.constant 0 : i32
    %c0_i32_0 = arith.constant 0 : i32
    %c0_i32_1 = arith.constant 0 : i32
    return %arg0, %c0_i32, %c0_i32_0 : i32, i32, i32
  }
  func.func @transform_1(%arg0: i32) -> (i32, i32, i32) {
    %c0_i32 = arith.constant 0 : i32
    %c0_i32_0 = arith.constant 0 : i32
    %c0_i32_1 = arith.constant 0 : i32
    return %arg0, %c0_i32, %c0_i32_0 : i32, i32, i32
  }
  func.func @transform_2(%arg0: i32) -> (i32, i32, i32) {
    %c0_i32 = arith.constant 0 : i32
    %c0_i32_0 = arith.constant 0 : i32
    %c0_i32_1 = arith.constant 0 : i32
    return %arg0, %c0_i32, %c0_i32_0 : i32, i32, i32
  }
  func.func @transform_3(%arg0: i32) -> (i32, i32) {
    %c0_i32 = arith.constant 0 : i32
    %c0_i32_0 = arith.constant 0 : i32
    %c0_i32_1 = arith.constant 0 : i32
    return %c0_i32, %c0_i32_0 : i32, i32
  }
  func.func @transform_4(%arg0: i32) -> (i32, i32) {
    %c0_i32 = arith.constant 0 : i32
    %c0_i32_0 = arith.constant 0 : i32
    %c0_i32_1 = arith.constant 0 : i32
    return %c0_i32, %c0_i32_0 : i32, i32
  }
  func.func @transform_5(%arg0: i32) -> (i32, i32) {
    %c0_i32 = arith.constant 0 : i32
    %c0_i32_0 = arith.constant 0 : i32
    %c0_i32_1 = arith.constant 0 : i32
    return %c0_i32, %c0_i32_0 : i32, i32
  }
  func.func @transform_6(%arg0: i32) -> (i32, i32) {
    %c0_i32 = arith.constant 0 : i32
    %c0_i32_0 = arith.constant 0 : i32
    %c0_i32_1 = arith.constant 0 : i32
    return %c0_i32, %c0_i32_0 : i32, i32
  }
  func.func @transform_7(%arg0: i32) -> (i32, i32) {
    %c0_i32 = arith.constant 0 : i32
    %c0_i32_0 = arith.constant 0 : i32
    %c0_i32_1 = arith.constant 0 : i32
    return %c0_i32, %c0_i32_0 : i32, i32
  }
  func.func @transform_8(%arg0: i32) -> (i32, i32) {
    %c0_i32 = arith.constant 0 : i32
    %c0_i32_0 = arith.constant 0 : i32
    %c0_i32_1 = arith.constant 0 : i32
    return %c0_i32, %c0_i32_0 : i32, i32
  }
  func.func @transform_9(%arg0: i32) -> (i32, i32) {
    %c0_i32 = arith.constant 0 : i32
    %c0_i32_0 = arith.constant 0 : i32
    %c0_i32_1 = arith.constant 0 : i32
    return %c0_i32, %c0_i32_0 : i32, i32
  }
  func.func @transform_10(%arg0: i32) -> (i32, i32) {
    %c0_i32 = arith.constant 0 : i32
    %c0_i32_0 = arith.constant 0 : i32
    %c0_i32_1 = arith.constant 0 : i32
    return %c0_i32, %c0_i32_0 : i32, i32
  }
  func.func @transform_11(%arg0: i32) -> (i32, i32) {
    %c0_i32 = arith.constant 0 : i32
    %c0_i32_0 = arith.constant 0 : i32
    %c0_i32_1 = arith.constant 0 : i32
    return %c0_i32, %c0_i32_0 : i32, i32
  }
  func.func @transform_12(%arg0: i32) -> (i32, i32, i32) {
    %c0_i32 = arith.constant 0 : i32
    %c0_i32_0 = arith.constant 0 : i32
    %c0_i32_1 = arith.constant 0 : i32
    return %arg0, %c0_i32, %c0_i32_0 : i32, i32, i32
  }
  func.func @transform_13(%arg0: i32) -> (i32, i32, i32) {
    %c0_i32 = arith.constant 0 : i32
    %c0_i32_0 = arith.constant 0 : i32
    %c0_i32_1 = arith.constant 0 : i32
    return %arg0, %c0_i32, %c0_i32_0 : i32, i32, i32
  }
}

</mosaic_0001>

<llo_original>
// kernel: tpu_custom_call.1
$region0: #{tpu_custom_call.1}
  #allocation0 [shape = 'u32[]', space=smem, size = 0x4, offset = 0x4, fixed_abs, tag = 'smem constant byte address 0x4 - core index']
  #allocation1 [shape = 'u32[72,128]{1,0:T(1,128)}', space=vmem, size = 0x9000, scoped, tag = 'internal scratch']
  #allocation2 [shape = 'f32[304,128]{1,0:T(8,128)}', space=vmem, size = 0x26000, scoped, tag = 'scratch operand']
  %s0 = inlined_call_operand.vmem [shape: f32[2,256,64], index: 0, kind: input, shape index: {}]
  %s1 = inlined_call_operand.vmem [shape: f32[2,8,64], index: 1, kind: input, shape index: {}]
  %s2 = inlined_call_operand.vmem [shape: f32[2,264,64], index: 2, kind: input, shape index: {}]
  %s3 = inlined_call_operand.vmem [shape: bf16[64,128], index: 3, kind: input, shape index: {}]
  %s4 = inlined_call_operand.vmem [shape: f32[1,128], index: 4, kind: input, shape index: {}]
  %s5 = inlined_call_operand.vmem [shape: f32[9,128], index: 5, kind: input, shape index: {}]
  %s6 = inlined_call_operand.vmem [shape: f32[1,128], index: 6, kind: input, shape index: {}]
  %s7 = inlined_call_operand.vmem [shape: f32[1,128], index: 7, kind: input, shape index: {}]
  %s8 = inlined_call_operand.vmem [shape: f32[256,1], index: 8, kind: input, shape index: {}]
  %s9 = inlined_call_operand.vmem [shape: f32[256,1], index: 9, kind: input, shape index: {}]
  %s10 = inlined_call_operand.vmem [shape: bf16[128,64], index: 10, kind: input, shape index: {}]
  %s11 = inlined_call_operand.vmem [shape: f32[1,64], index: 11, kind: input, shape index: {}]
  %s12 = inlined_call_operand.vmem [shape: f32[2,256,64], index: 12, kind: output, shape index: {0}]
  %s13 = inlined_call_operand.hbm [shape: f32[2,8,64], index: 13, kind: output, shape index: {1}]
  %14 = xla_tuple %s12, %s13
  %s15 = sld [smem:[#allocation0]]
  $region89: #{tpu_custom_call.1} parent=0
    _
  %s17 = ssub.s32 1, %s15
  %s18 = scalar_select 0, %s17, %s15
  $region1: #{tpu_custom_call.1} parent=0
    #allocation3 [shape = 'u8[8192]{0}', space=vmem, size = 0x2000, scoped, tag = 'output window, operand 1']
    #allocation4 [shape = 's32[2]{0}', space=sflag, size = 0x8, scoped, tag = 'scoped memory for tpu_custom_call.1']
    %19 = vsyncpa [#allocation4], 0
    %s20 = scalar_lea.sflag [#allocation4], 1
    %21 = vsyncpa %s20, 0
    loop: start=0, step=1, limit=4
    $region2: #{tpu_custom_call.1} parent=1 // loop_pre_header
      _
    $region3: #{tpu_custom_call.1} parent=1 // loop_header
      %s23 = sphi 0, %s27
      %p24 = scmp.ge.s32.totalorder %s23, 4
      %s33 = sphi 0, %s35
      %s36 = sphi 0, %s33
      %s37 = sphi 0, %s36
      %s53 = sphi 0, %s37
      %s59 = sphi 0, %s61
      %s62 = sphi 0, %s59
      %s63 = sphi 0, %s62
      %s79 = sphi 0, %s63
      %s85 = sphi 0, %s87
      %s88 = sphi 0, %s85
      %s89 = sphi 0, %s88
      %s105 = sphi 0, %s89
      %s109 = sphi 0, %s109
      %s111 = sphi 0, %s109
      %s112 = sphi 0, %s111
      %s126 = sphi 0, %s112
      %s130 = sphi 0, %s130
      %s132 = sphi 0, %s130
      %s133 = sphi 0, %s132
      %s147 = sphi 0, %s133
      %s151 = sphi 0, %s151
      %s153 = sphi 0, %s151
      %s154 = sphi 0, %s153
      %s168 = sphi 0, %s154
      %s172 = sphi 0, %s172
      %s174 = sphi 0, %s172
      %s175 = sphi 0, %s174
      %s189 = sphi 0, %s175
      %s193 = sphi 0, %s193
      %s195 = sphi 0, %s193
      %s196 = sphi 0, %s195
      %s210 = sphi 0, %s196
      %s214 = sphi 0, %s214
      %s216 = sphi 0, %s214
      %s217 = sphi 0, %s216
      %s231 = sphi 0, %s217
      %s235 = sphi 0, %s235
      %s237 = sphi 0, %s235
      %s238 = sphi 0, %s237
      %s252 = sphi 0, %s238
      %s256 = sphi 0, %s256
      %s258 = sphi 0, %s256
      %s259 = sphi 0, %s258
      %s273 = sphi 0, %s259
      %s277 = sphi 0, %s277
      %s279 = sphi 0, %s277
      %s280 = sphi 0, %s279
      %s294 = sphi 0, %s280
      %s300 = sphi 0, %s302
      %s303 = sphi 0, %s300
      %s304 = sphi 0, %s303
      %s320 = sphi 0, %s304
      %s326 = sphi 0, %s328
      %s329 = sphi 0, %s326
      %s330 = sphi 0, %s329
      %s346 = sphi 0, %s330
    $region4: #{tpu_custom_call.1} parent=1 // loop_header_branch
      %26 = sbr.rel (%p24) target = $region8
    $region5: #{tpu_custom_call.1} parent=1 // loop_body
      %s28 = ssub.s32 %s23, 1
      %s29 = ssub.s32 %s23, 2
      %s30 = sadd.s32 %s23, 1
      %s31 = ssub.s32 %s23, %s30
      %p32 = scmp.eq.s32.totalorder %s31, 0
      %s34 = sadd.s32 %s33, 1
      %s35 = scalar_select %p32, %s33, %s34
      %p38 = pneg %p32
      %p39 = scmp.eq.s32.totalorder %s23, 1
      %p40 = por %p38, %p39
      %p41 = scmp.ne.s32.totalorder %s33, %s36
      %p42 = scmp.eq.s32.totalorder %s23, 0
      %p43 = por %p41, %p42
      %p44 = scmp.ne.s32.totalorder %s33, %s36
      %p45 = scmp.eq.s32.totalorder %s28, 1
      %p46 = por %p44, %p45
      %p47 = scmp.ne.s32.totalorder %s36, %s37
      %p48 = scmp.eq.s32.totalorder %s28, 0
      %p49 = por %p47, %p48
      %p50 = scmp.ne.s32.totalorder %s36, %s37
      %p51 = scmp.eq.s32.totalorder %s29, 1
      %p52 = por %p50, %p51
      %p54 = scmp.ne.s32.totalorder %s37, %s53
      %p55 = scmp.eq.s32.totalorder %s29, 0
      %p56 = por %p54, %p55
      %s57 = ssub.s32 %s23, %s30
      %p58 = scmp.eq.s32.totalorder %s57, 0
      %s60 = sadd.s32 %s59, 1
      %s61 = scalar_select %p58, %s59, %s60
      %p64 = pneg %p58
      %p65 = scmp.eq.s32.totalorder %s23, 1
      %p66 = por %p64, %p65
      %p67 = scmp.ne.s32.totalorder %s59, %s62
      %p68 = scmp.eq.s32.totalorder %s23, 0
      %p69 = por %p67, %p68
      %p70 = scmp.ne.s32.totalorder %s59, %s62
      %p71 = scmp.eq.s32.totalorder %s28, 1
      %p72 = por %p70, %p71
      %p73 = scmp.ne.s32.totalorder %s62, %s63
      %p74 = scmp.eq.s32.totalorder %s28, 0
      %p75 = por %p73, %p74
      %p76 = scmp.ne.s32.totalorder %s62, %s63
      %p77 = scmp.eq.s32.totalorder %s29, 1
      %p78 = por %p76, %p77
      %p80 = scmp.ne.s32.totalorder %s63, %s79
      %p81 = scmp.eq.s32.totalorder %s29, 0
      %p82 = por %p80, %p81
      %s83 = ssub.s32 %s23, %s30
      %p84 = scmp.eq.s32.totalorder %s83, 0
      %s86 = sadd.s32 %s85, 1
      %s87 = scalar_select %p84, %s85, %s86
      %p90 = pneg %p84
      %p91 = scmp.eq.s32.totalorder %s23, 1
      %p92 = por %p90, %p91
      %p93 = scmp.ne.s32.totalorder %s85, %s88
      %p94 = scmp.eq.s32.totalorder %s23, 0
      %p95 = por %p93, %p94
      %p96 = scmp.ne.s32.totalorder %s85, %s88
      %p97 = scmp.eq.s32.totalorder %s28, 1
      %p98 = por %p96, %p97
      %p99 = scmp.ne.s32.totalorder %s88, %s89
      %p100 = scmp.eq.s32.totalorder %s28, 0
      %p101 = por %p99, %p100
      %p102 = scmp.ne.s32.totalorder %s88, %s89
      %p103 = scmp.eq.s32.totalorder %s29, 1
      %p104 = por %p102, %p103
      %p106 = scmp.ne.s32.totalorder %s89, %s105
      %p107 = scmp.eq.s32.totalorder %s29, 0
      %p108 = por %p106, %p107
      %s110 = sadd.s32 %s109, 1
      %p113 = scmp.eq.s32.totalorder %s23, 1
      %p114 = scmp.ne.s32.totalorder %s109, %s111
      %p115 = scmp.eq.s32.totalorder %s23, 0
      %p116 = por %p114, %p115
      %p117 = scmp.ne.s32.totalorder %s109, %s111
      %p118 = scmp.eq.s32.totalorder %s28, 1
      %p119 = por %p117, %p118
      %p120 = scmp.ne.s32.totalorder %s111, %s112
      %p121 = scmp.eq.s32.totalorder %s28, 0
      %p122 = por %p120, %p121
      %p123 = scmp.ne.s32.totalorder %s111, %s112
      %p124 = scmp.eq.s32.totalorder %s29, 1
      %p125 = por %p123, %p124
      %p127 = scmp.ne.s32.totalorder %s112, %s126
      %p128 = scmp.eq.s32.totalorder %s29, 0
      %p129 = por %p127, %p128
      %s131 = sadd.s32 %s130, 1
      %p134 = scmp.eq.s32.totalorder %s23, 1
      %p135 = scmp.ne.s32.totalorder %s130, %s132
      %p136 = scmp.eq.s32.totalorder %s23, 0
      %p137 = por %p135, %p136
      %p138 = scmp.ne.s32.totalorder %s130, %s132
      %p139 = scmp.eq.s32.totalorder %s28, 1
      %p140 = por %p138, %p139
      %p141 = scmp.ne.s32.totalorder %s132, %s133
      %p142 = scmp.eq.s32.totalorder %s28, 0
      %p143 = por %p141, %p142
      %p144 = scmp.ne.s32.totalorder %s132, %s133
      %p145 = scmp.eq.s32.totalorder %s29, 1
      %p146 = por %p144, %p145
      %p148 = scmp.ne.s32.totalorder %s133, %s147
      %p149 = scmp.eq.s32.totalorder %s29, 0
      %p150 = por %p148, %p149
      %s152 = sadd.s32 %s151, 1
      %p155 = scmp.eq.s32.totalorder %s23, 1
      %p156 = scmp.ne.s32.totalorder %s151, %s153
      %p157 = scmp.eq.s32.totalorder %s23, 0
      %p158 = por %p156, %p157
      %p159 = scmp.ne.s32.totalorder %s151, %s153
      %p160 = scmp.eq.s32.totalorder %s28, 1
      %p161 = por %p159, %p160
      %p162 = scmp.ne.s32.totalorder %s153, %s154
      %p163 = scmp.eq.s32.totalorder %s28, 0
      %p164 = por %p162, %p163
      %p165 = scmp.ne.s32.totalorder %s153, %s154
      %p166 = scmp.eq.s32.totalorder %s29, 1
      %p167 = por %p165, %p166
      %p169 = scmp.ne.s32.totalorder %s154, %s168
      %p170 = scmp.eq.s32.totalorder %s29, 0
      %p171 = por %p169, %p170
      %s173 = sadd.s32 %s172, 1
      %p176 = scmp.eq.s32.totalorder %s23, 1
      %p177 = scmp.ne.s32.totalorder %s172, %s174
      %p178 = scmp.eq.s32.totalorder %s23, 0
      %p179 = por %p177, %p178
      %p180 = scmp.ne.s32.totalorder %s172, %s174
      %p181 = scmp.eq.s32.totalorder %s28, 1
      %p182 = por %p180, %p181
      %p183 = scmp.ne.s32.totalorder %s174, %s175
      %p184 = scmp.eq.s32.totalorder %s28, 0
      %p185 = por %p183, %p184
      %p186 = scmp.ne.s32.totalorder %s174, %s175
      %p187 = scmp.eq.s32.totalorder %s29, 1
      %p188 = por %p186, %p187
      %p190 = scmp.ne.s32.totalorder %s175, %s189
      %p191 = scmp.eq.s32.totalorder %s29, 0
      %p192 = por %p190, %p191
      %s194 = sadd.s32 %s193, 1
      %p197 = scmp.eq.s32.totalorder %s23, 1
      %p198 = scmp.ne.s32.totalorder %s193, %s195
      %p199 = scmp.eq.s32.totalorder %s23, 0
      %p200 = por %p198, %p199
      %p201 = scmp.ne.s32.totalorder %s193, %s195
      %p202 = scmp.eq.s32.totalorder %s28, 1
      %p203 = por %p201, %p202
      %p204 = scmp.ne.s32.totalorder %s195, %s196
      %p205 = scmp.eq.s32.totalorder %s28, 0
      %p206 = por %p204, %p205
      %p207 = scmp.ne.s32.totalorder %s195, %s196
      %p208 = scmp.eq.s32.totalorder %s29, 1
      %p209 = por %p207, %p208
      %p211 = scmp.ne.s32.totalorder %s196, %s210
      %p212 = scmp.eq.s32.totalorder %s29, 0
      %p213 = por %p211, %p212
      %s215 = sadd.s32 %s214, 1
      %p218 = scmp.eq.s32.totalorder %s23, 1
      %p219 = scmp.ne.s32.totalorder %s214, %s216
      %p220 = scmp.eq.s32.totalorder %s23, 0
      %p221 = por %p219, %p220
      %p222 = scmp.ne.s32.totalorder %s214, %s216
      %p223 = scmp.eq.s32.totalorder %s28, 1
      %p224 = por %p222, %p223
      %p225 = scmp.ne.s32.totalorder %s216, %s217
      %p226 = scmp.eq.s32.totalorder %s28, 0
      %p227 = por %p225, %p226
      %p228 = scmp.ne.s32.totalorder %s216, %s217
      %p229 = scmp.eq.s32.totalorder %s29, 1
      %p230 = por %p228, %p229
      %p232 = scmp.ne.s32.totalorder %s217, %s231
      %p233 = scmp.eq.s32.totalorder %s29, 0
      %p234 = por %p232, %p233
      %s236 = sadd.s32 %s235, 1
      %p239 = scmp.eq.s32.totalorder %s23, 1
      %p240 = scmp.ne.s32.totalorder %s235, %s237
      %p241 = scmp.eq.s32.totalorder %s23, 0
      %p242 = por %p240, %p241
      %p243 = scmp.ne.s32.totalorder %s235, %s237
      %p244 = scmp.eq.s32.totalorder %s28, 1
      %p245 = por %p243, %p244
      %p246 = scmp.ne.s32.totalorder %s237, %s238
      %p247 = scmp.eq.s32.totalorder %s28, 0
      %p248 = por %p246, %p247
      %p249 = scmp.ne.s32.totalorder %s237, %s238
      %p250 = scmp.eq.s32.totalorder %s29, 1
      %p251 = por %p249, %p250
      %p253 = scmp.ne.s32.totalorder %s238, %s252
      %p254 = scmp.eq.s32.totalorder %s29, 0
      %p255 = por %p253, %p254
      %s257 = sadd.s32 %s256, 1
      %p260 = scmp.eq.s32.totalorder %s23, 1
      %p261 = scmp.ne.s32.totalorder %s256, %s258
      %p262 = scmp.eq.s32.totalorder %s23, 0
      %p263 = por %p261, %p262
      %p264 = scmp.ne.s32.totalorder %s256, %s258
      %p265 = scmp.eq.s32.totalorder %s28, 1
      %p266 = por %p264, %p265
      %p267 = scmp.ne.s32.totalorder %s258, %s259
      %p268 = scmp.eq.s32.totalorder %s28, 0
      %p269 = por %p267, %p268
      %p270 = scmp.ne.s32.totalorder %s258, %s259
      %p271 = scmp.eq.s32.totalorder %s29, 1
      %p272 = por %p270, %p271
      %p274 = scmp.ne.s32.totalorder %s259, %s273
      %p275 = scmp.eq.s32.totalorder %s29, 0
      %p276 = por %p274, %p275
      %s278 = sadd.s32 %s277, 1
      %p281 = scmp.eq.s32.totalorder %s23, 1
      %p282 = scmp.ne.s32.totalorder %s277, %s279
      %p283 = scmp.eq.s32.totalorder %s23, 0
      %p284 = por %p282, %p283
      %p285 = scmp.ne.s32.totalorder %s277, %s279
      %p286 = scmp.eq.s32.totalorder %s28, 1
      %p287 = por %p285, %p286
      %p288 = scmp.ne.s32.totalorder %s279, %s280
      %p289 = scmp.eq.s32.totalorder %s28, 0
      %p290 = por %p288, %p289
      %p291 = scmp.ne.s32.totalorder %s279, %s280
      %p292 = scmp.eq.s32.totalorder %s29, 1
      %p293 = por %p291, %p292
      %p295 = scmp.ne.s32.totalorder %s280, %s294
      %p296 = scmp.eq.s32.totalorder %s29, 0
      %p297 = por %p295, %p296
      %s298 = ssub.s32 %s23, %s30
      %p299 = scmp.eq.s32.totalorder %s298, 0
      %s301 = sadd.s32 %s300, 1
      %s302 = scalar_select %p299, %s300, %s301
      %p305 = pneg %p299
      %p306 = scmp.eq.s32.totalorder %s23, 1
      %p307 = por %p305, %p306
      %p308 = scmp.ne.s32.totalorder %s300, %s303
      %p309 = scmp.eq.s32.totalorder %s23, 0
      %p310 = por %p308, %p309
      %p311 = scmp.ne.s32.totalorder %s300, %s303
      %p312 = scmp.eq.s32.totalorder %s28, 1
      %p313 = por %p311, %p312
      %p314 = scmp.ne.s32.totalorder %s303, %s304
      %p315 = scmp.eq.s32.totalorder %s28, 0
      %p316 = por %p314, %p315
      %p317 = scmp.ne.s32.totalorder %s303, %s304
      %p318 = scmp.eq.s32.totalorder %s29, 1
      %p319 = por %p317, %p318
      %p321 = scmp.ne.s32.totalorder %s304, %s320
      %p322 = scmp.eq.s32.totalorder %s29, 0
      %p323 = por %p321, %p322
      %s324 = ssub.s32 %s23, %s30
      %p325 = scmp.eq.s32.totalorder %s324, 0
      %s327 = sadd.s32 %s326, 1
      %s328 = scalar_select %p325, %s326, %s327
      %p331 = pneg %p325
      %p332 = scmp.eq.s32.totalorder %s23, 1
      %p333 = por %p331, %p332
      %p334 = scmp.ne.s32.totalorder %s326, %s329
      %p335 = scmp.eq.s32.totalorder %s23, 0
      %p336 = por %p334, %p335
      %p337 = scmp.ne.s32.totalorder %s326, %s329
      %p338 = scmp.eq.s32.totalorder %s28, 1
      %p339 = por %p337, %p338
      %p340 = scmp.ne.s32.totalorder %s329, %s330
      %p341 = scmp.eq.s32.totalorder %s28, 0
      %p342 = por %p340, %p341
      %p343 = scmp.ne.s32.totalorder %s329, %s330
      %p344 = scmp.eq.s32.totalorder %s29, 1
      %p345 = por %p343, %p344
      %p347 = scmp.ne.s32.totalorder %s330, %s346
      %p348 = scmp.eq.s32.totalorder %s29, 0
      %p349 = por %p347, %p348
      %p350 = scmp.le.s32.totalorder 1, %s23
      %p351 = scmp.lt.s32.totalorder %s23, 3
      %p352 = pnand %p350, %p351
      %p353 = pneg %p352
      // Predicated region
      $region9: #{tpu_custom_call.1} parent=5 // pred_check
        _
      $region10: #{tpu_custom_call.1} parent=5 // pred_check_branch
        %355 = sbr.rel (%p352) target = $region12
      $region11: #{tpu_custom_call.1} parent=5 // pred_region
        %s356 = ssub.s32 %s23, 1
        // Predicated region
        $region13: #{tpu_custom_call.1} parent=11 // pred_check
          %p357 = pneg %p122
        $region14: #{tpu_custom_call.1} parent=11 // pred_check_branch
          %359 = sbr.rel (%p357) target = $region16
        $region15: #{tpu_custom_call.1} parent=11 // pred_region
          _
        $region16: #{tpu_custom_call.1} parent=11 // pred_fallthru
          _
        // Predicated region
        $region17: #{tpu_custom_call.1} parent=11 // pred_check
          %p360 = pneg %p143
        $region18: #{tpu_custom_call.1} parent=11 // pred_check_branch
          %362 = sbr.rel (%p360) target = $region20
        $region19: #{tpu_custom_call.1} parent=11 // pred_region
          _
        $region20: #{tpu_custom_call.1} parent=11 // pred_fallthru
          _
        // Predicated region
        $region21: #{tpu_custom_call.1} parent=11 // pred_check
          %p363 = pneg %p164
        $region22: #{tpu_custom_call.1} parent=11 // pred_check_branch
          %365 = sbr.rel (%p363) target = $region24
        $region23: #{tpu_custom_call.1} parent=11 // pred_region
          _
        $region24: #{tpu_custom_call.1} parent=11 // pred_fallthru
          _
        // Predicated region
        $region25: #{tpu_custom_call.1} parent=11 // pred_check
          %p366 = pneg %p185
        $region26: #{tpu_custom_call.1} parent=11 // pred_check_branch
          %368 = sbr.rel (%p366) target = $region28
        $region27: #{tpu_custom_call.1} parent=11 // pred_region
          _
        $region28: #{tpu_custom_call.1} parent=11 // pred_fallthru
          _
        // Predicated region
        $region29: #{tpu_custom_call.1} parent=11 // pred_check
          %p369 = pneg %p206
        $region30: #{tpu_custom_call.1} parent=11 // pred_check_branch
          %371 = sbr.rel (%p369) target = $region32
        $region31: #{tpu_custom_call.1} parent=11 // pred_region
          _
        $region32: #{tpu_custom_call.1} parent=11 // pred_fallthru
          _
        // Predicated region
        $region33: #{tpu_custom_call.1} parent=11 // pred_check
          %p372 = pneg %p227
        $region34: #{tpu_custom_call.1} parent=11 // pred_check_branch
          %374 = sbr.rel (%p372) target = $region36
        $region35: #{tpu_custom_call.1} parent=11 // pred_region
          _
        $region36: #{tpu_custom_call.1} parent=11 // pred_fallthru
          _
        // Predicated region
        $region37: #{tpu_custom_call.1} parent=11 // pred_check
          %p375 = pneg %p248
        $region38: #{tpu_custom_call.1} parent=11 // pred_check_branch
          %377 = sbr.rel (%p375) target = $region40
        $region39: #{tpu_custom_call.1} parent=11 // pred_region
          _
        $region40: #{tpu_custom_call.1} parent=11 // pred_fallthru
          _
        // Predicated region
        $region41: #{tpu_custom_call.1} parent=11 // pred_check
          %p378 = pneg %p269
        $region42: #{tpu_custom_call.1} parent=11 // pred_check_branch
          %380 = sbr.rel (%p378) target = $region44
        $region43: #{tpu_custom_call.1} parent=11 // pred_region
          _
        $region44: #{tpu_custom_call.1} parent=11 // pred_fallthru
          _
        // Predicated region
        $region45: #{tpu_custom_call.1} parent=11 // pred_check
          %p381 = pneg %p290
        $region46: #{tpu_custom_call.1} parent=11 // pred_check_branch
          %383 = sbr.rel (%p381) target = $region48
        $region47: #{tpu_custom_call.1} parent=11 // pred_region
          _
        $region48: #{tpu_custom_call.1} parent=11 // pred_fallthru
          _
      $region12: #{tpu_custom_call.1} parent=5 // pred_fallthru
        _
      %p384 = scmp.lt.s32.totalorder %s23, 2
      // Predicated region
      $region49: #{tpu_custom_call.1} parent=5 // pred_check
        %p385 = pneg %p384
      $region50: #{tpu_custom_call.1} parent=5 // pred_check_branch
        %387 = sbr.rel (%p385) target = $region52
      $region51: #{tpu_custom_call.1} parent=5 // pred_region
        // Predicated region
        $region53: #{tpu_custom_call.1} parent=51 // pred_check
          %p388 = pneg %p43
        $region54: #{tpu_custom_call.1} parent=51 // pred_check_branch
          %390 = sbr.rel (%p388) target = $region56
        $region55: #{tpu_custom_call.1} parent=51 // pred_region
          %p391 = scmp.lt.s32.totalorder %s23, 1
          %s392 = scalar_select %p391, %s23, 1
          %s393 = smul.addr %s392, 32
          %s394 = smul.addr %s393, 8
          %s395 = scalar_lea.vmem %s0, %s394
        $region56: #{tpu_custom_call.1} parent=51 // pred_fallthru
          _
        // Predicated region
        $region57: #{tpu_custom_call.1} parent=51 // pred_check
          %p396 = pneg %p69
        $region58: #{tpu_custom_call.1} parent=51 // pred_check_branch
          %398 = sbr.rel (%p396) target = $region60
        $region59: #{tpu_custom_call.1} parent=51 // pred_region
          %p399 = scmp.lt.s32.totalorder %s23, 1
          %s400 = scalar_select %p399, %s23, 1
          %s401 = smul.addr %s400, 8
          %s402 = scalar_lea.vmem %s1, %s401
        $region60: #{tpu_custom_call.1} parent=51 // pred_fallthru
          _
        // Predicated region
        $region61: #{tpu_custom_call.1} parent=51 // pred_check
          %p403 = pneg %p95
        $region62: #{tpu_custom_call.1} parent=51 // pred_check_branch
          %405 = sbr.rel (%p403) target = $region64
        $region63: #{tpu_custom_call.1} parent=51 // pred_region
          %p406 = scmp.lt.s32.totalorder %s23, 1
          %s407 = scalar_select %p406, %s23, 1
          %s408 = smul.addr %s407, 33
          %s409 = smul.addr %s408, 8
          %s410 = scalar_lea.vmem %s2, %s409
        $region64: #{tpu_custom_call.1} parent=51 // pred_fallthru
          _
      $region52: #{tpu_custom_call.1} parent=5 // pred_fallthru
        _
      %p411 = scmp.le.s32.totalorder 1, %s23
      %p412 = scmp.lt.s32.totalorder %s23, 3
      %p413 = pnand %p411, %p412
      %p414 = pneg %p413
      // Predicated region
      $region65: #{tpu_custom_call.1} parent=5 // pred_check
        _
      $region66: #{tpu_custom_call.1} parent=5 // pred_check_branch
        %416 = sbr.rel (%p413) target = $region68
      $region67: #{tpu_custom_call.1} parent=5 // pred_region
        %s417 = ssub.s32 %s23, 1
        %p418 = scmp.lt.s32.totalorder %s28, 1
        %s419 = scalar_select %p418, %s28, 1
        %s420 = smul.addr %s419, 32
        %s421 = smul.addr %s420, 8
        %s422 = scalar_lea.vmem %s0, %s421
        %p423 = pneg %p49
        %p424 = pneg %p46
        %p425 = scmp.lt.s32.totalorder %s28, 1
        %s426 = scalar_select %p425, %s28, 1
        %s427 = smul.addr %s426, 8
        %s428 = scalar_lea.vmem %s1, %s427
        %p429 = pneg %p75
        %p430 = pneg %p72
        %p431 = scmp.lt.s32.totalorder %s28, 1
        %s432 = scalar_select %p431, %s28, 1
        %s433 = smul.addr %s432, 33
        %s434 = smul.addr %s433, 8
        %s435 = scalar_lea.vmem %s2, %s434
        %p436 = pneg %p101
        %p437 = pneg %p98
        %p438 = pneg %p122
        %p439 = pneg %p119
        %p440 = pneg %p143
        %p441 = pneg %p140
        %p442 = pneg %p164
        %p443 = pneg %p161
        %p444 = pneg %p185
        %p445 = pneg %p182
        %p446 = pneg %p206
        %p447 = pneg %p203
        %p448 = pneg %p227
        %p449 = pneg %p224
        %p450 = pneg %p248
        %p451 = pneg %p245
        %p452 = pneg %p269
        %p453 = pneg %p266
        %p454 = pneg %p290
        %p455 = pneg %p287
        %p456 = pneg %p316
        %p457 = pneg %p313
        %p458 = scmp.lt.s32.totalorder %s28, 1
        %s459 = scalar_select %p458, %s28, 1
        %s460 = smul.addr %s459, 32
        %s461 = smul.addr %s460, 8
        %s462 = scalar_lea.vmem %s12, %s461
        %p463 = pneg %p342
        %p464 = pneg %p339
        %s465 = sand.u32 %s329, 1
        %s466 = scalar_lea.sflag [#allocation4], %s465
        %s467 = sand.u32 %s329, 1
        %s468 = smul.addr %s467, 8
        %s469 = scalar_lea.vmem [#allocation3], %s468
        %p470 = scmp.lt.s32.totalorder %s28, 1
        %s471 = scalar_select %p470, %s28, 1
        %s472 = smul.addr %s471, 32
        %s473 = smul.addr %s472, 8
        %s474 = scalar_lea.vmem %s0, %s473
        %p475 = scmp.lt.s32.totalorder %s28, 1
        %s476 = scalar_select %p475, %s28, 1
        %s477 = smul.addr %s476, 8
        %s478 = scalar_lea.vmem %s1, %s477
        %p479 = scmp.lt.s32.totalorder %s28, 1
        %s480 = scalar_select %p479, %s28, 1
        %s481 = smul.addr %s480, 33
        %s482 = smul.addr %s481, 8
        %s483 = scalar_lea.vmem %s2, %s482
        %p484 = scmp.lt.s32.totalorder %s28, 1
        %s485 = scalar_select %p484, %s28, 1
        %s486 = smul.addr %s485, 32
        %s487 = smul.addr %s486, 8
        %s488 = scalar_lea.vmem %s12, %s487
        %v490 = vld [vmem:[%s474] sm:$0xff]
        %v491 = vld [vmem:[%s474 + $0x8] sm:$0xff]
        %v492 = vld [vmem:[%s474 + $0x10] sm:$0xff]
        %v493 = vld [vmem:[%s474 + $0x18] sm:$0xff]
        %v494 = vld [vmem:[%s474 + $0x20] sm:$0xff]
        %v495 = vld [vmem:[%s474 + $0x28] sm:$0xff]
        %v496 = vld [vmem:[%s474 + $0x30] sm:$0xff]
        %v497 = vld [vmem:[%s474 + $0x38] sm:$0xff]
        %v498 = vld [vmem:[%s474 + $0x40] sm:$0xff]
        %v499 = vld [vmem:[%s474 + $0x48] sm:$0xff]
        %v500 = vld [vmem:[%s474 + $0x50] sm:$0xff]
        %v501 = vld [vmem:[%s474 + $0x58] sm:$0xff]
        %v502 = vld [vmem:[%s474 + $0x60] sm:$0xff]
        %v503 = vld [vmem:[%s474 + $0x68] sm:$0xff]
        %v504 = vld [vmem:[%s474 + $0x70] sm:$0xff]
        %v505 = vld [vmem:[%s474 + $0x78] sm:$0xff]
        %v506 = vld [vmem:[%s474 + $0x80] sm:$0xff]
        %v507 = vld [vmem:[%s474 + $0x88] sm:$0xff]
        %v508 = vld [vmem:[%s474 + $0x90] sm:$0xff]
        %v509 = vld [vmem:[%s474 + $0x98] sm:$0xff]
        %v510 = vld [vmem:[%s474 + $0xa0] sm:$0xff]
        %v511 = vld [vmem:[%s474 + $0xa8] sm:$0xff]
        %v512 = vld [vmem:[%s474 + $0xb0] sm:$0xff]
        %v513 = vld [vmem:[%s474 + $0xb8] sm:$0xff]
        %v514 = vld [vmem:[%s474 + $0xc0] sm:$0xff]
        %v515 = vld [vmem:[%s474 + $0xc8] sm:$0xff]
        %v516 = vld [vmem:[%s474 + $0xd0] sm:$0xff]
        %v517 = vld [vmem:[%s474 + $0xd8] sm:$0xff]
        %v518 = vld [vmem:[%s474 + $0xe0] sm:$0xff]
        %v519 = vld [vmem:[%s474 + $0xe8] sm:$0xff]
        %v520 = vld [vmem:[%s474 + $0xf0] sm:$0xff]
        %v521 = vld [vmem:[%s474 + $0xf8] sm:$0xff]
        %v522 = vld [vmem:[%s478] sm:$0xff]
        %v523 = vpack.c.bf16 %v491, %v490
        %v524 = vpack.c.bf16 %v493, %v492
        %v525 = vpack.c.bf16 %v495, %v494
        %v526 = vpack.c.bf16 %v497, %v496
        %v527 = vpack.c.bf16 %v499, %v498
        %v528 = vpack.c.bf16 %v501, %v500
        %v529 = vpack.c.bf16 %v503, %v502
        %v530 = vpack.c.bf16 %v505, %v504
        %v531 = vpack.c.bf16 %v507, %v506
        %v532 = vpack.c.bf16 %v509, %v508
        %v533 = vpack.c.bf16 %v511, %v510
        %v534 = vpack.c.bf16 %v513, %v512
        %v535 = vpack.c.bf16 %v515, %v514
        %v536 = vpack.c.bf16 %v517, %v516
        %v537 = vpack.c.bf16 %v519, %v518
        %v538 = vpack.c.bf16 %v521, %v520
        %v539 = vpack.c.bf16 %v522, %v522
        %v540 = vld [vmem:[%s3] sm:$0xf]
        %v541 = vld [vmem:[%s3 + $0x4] sm:$0xf]
        %v542 = vld [vmem:[%s3 + $0x8] sm:$0xf]
        %v543 = vld [vmem:[%s3 + $0xc] sm:$0xf]
        %v544 = vld [vmem:[%s3 + $0x10] sm:$0xf]
        %v545 = vld [vmem:[%s3 + $0x14] sm:$0xf]
        %v546 = vld [vmem:[%s3 + $0x18] sm:$0xf]
        %v547 = vld [vmem:[%s3 + $0x1c] sm:$0xf]
        %v548 = vld [vmem:[%s4] sm:$0x1]
        %v550 = vperm.slane %v548, 0
        %v560 = vunpack.c.l.b16 %v540
        %v561 = vunpack.c.l.b16 %v541
        %v562 = vunpack.c.l.b16 %v542
        %v563 = vunpack.c.l.b16 %v543
        %v564 = vunpack.c.l.b16 %v544
        %v565 = vunpack.c.l.b16 %v545
        %v566 = vunpack.c.l.b16 %v546
        %v567 = vunpack.c.l.b16 %v547
        %v568 = vpack.c.b16 %v561, %v560
        %v569 = vpack.c.b16 %v563, %v562
        %v570 = vpack.c.b16 %v565, %v564
        %v571 = vpack.c.b16 %v567, %v566
        %vm576 = vcmask 523264
        %v578 = vsel %vm576, %v523, 0
        %v581 = vsel %vm576, %v524, 0
        %v584 = vsel %vm576, %v525, 0
        %v587 = vsel %vm576, %v526, 0
        %v590 = vsel %vm576, %v527, 0
        %v593 = vsel %vm576, %v528, 0
        %v596 = vsel %vm576, %v529, 0
        %v599 = vsel %vm576, %v530, 0
        %v602 = vsel %vm576, %v531, 0
        %v605 = vsel %vm576, %v532, 0
        %v608 = vsel %vm576, %v533, 0
        %v611 = vsel %vm576, %v534, 0
        %v614 = vsel %vm576, %v535, 0
        %v617 = vsel %vm576, %v536, 0
        %v620 = vsel %vm576, %v537, 0
        %v623 = vsel %vm576, %v538, 0
        %v626 = vsel %vm576, %v539, 0
        %628 = vmatpush.bf16.msra.mxu0 0
        %629 = vmatpush.bf16.msra.mxu0 0
        %630 = vmatpush.bf16.msra.mxu0 0
        %631 = vmatpush.bf16.msra.mxu0 0
        %632 = vmatpush.bf16.msra.mxu0 %v571
        %633 = vmatpush.bf16.msra.mxu0 %v570
        %634 = vmatpush.bf16.msra.mxu0 %v569
        %635 = vmatpush.bf16.msra.mxu0 %v568
        %636 = vmatmul.bf16.gmra.mxu0 %v578
        %v637 = vpop.f32.mrf.mxu0
        %v638 = vadd.f32 %v550, %v637
        %v639 = vpop.f32.mrf.mxu0
        %v640 = vadd.f32 %v550, %v639
        %641 = vmatmul.bf16.gmra.mxu0 %v581
        %v642 = vpop.f32.mrf.mxu0
        %v643 = vadd.f32 %v550, %v642
        %v644 = vpop.f32.mrf.mxu0
        %v645 = vadd.f32 %v550, %v644
        %646 = vmatmul.bf16.gmra.mxu0 %v584
        %v647 = vpop.f32.mrf.mxu0
        %v648 = vadd.f32 %v550, %v647
        %v649 = vpop.f32.mrf.mxu0
        %v650 = vadd.f32 %v550, %v649
        %651 = vmatmul.bf16.gmra.mxu0 %v587
        %v652 = vpop.f32.mrf.mxu0
        %v653 = vadd.f32 %v550, %v652
        %v654 = vpop.f32.mrf.mxu0
        %v655 = vadd.f32 %v550, %v654
        %656 = vmatmul.bf16.gmra.mxu0 %v590
        %v657 = vpop.f32.mrf.mxu0
        %v658 = vadd.f32 %v550, %v657
        %v659 = vpop.f32.mrf.mxu0
        %v660 = vadd.f32 %v550, %v659
        %661 = vmatmul.bf16.gmra.mxu0 %v593
        %v662 = vpop.f32.mrf.mxu0
        %v663 = vadd.f32 %v550, %v662
        %v664 = vpop.f32.mrf.mxu0
        %v665 = vadd.f32 %v550, %v664
        %666 = vmatmul.bf16.gmra.mxu0 %v596
        %v667 = vpop.f32.mrf.mxu0
        %v668 = vadd.f32 %v550, %v667
        %v669 = vpop.f32.mrf.mxu0
        %v670 = vadd.f32 %v550, %v669
        %671 = vmatmul.bf16.gmra.mxu0 %v599
        %v672 = vpop.f32.mrf.mxu0
        %v673 = vadd.f32 %v550, %v672
        %v674 = vpop.f32.mrf.mxu0
        %v675 = vadd.f32 %v550, %v674
        %676 = vmatmul.bf16.gmra.mxu0 %v602
        %v677 = vpop.f32.mrf.mxu0
        %v678 = vadd.f32 %v550, %v677
        %v679 = vpop.f32.mrf.mxu0
        %v680 = vadd.f32 %v550, %v679
        %681 = vmatmul.bf16.gmra.mxu0 %v605
        %v682 = vpop.f32.mrf.mxu0
        %v683 = vadd.f32 %v550, %v682
        %v684 = vpop.f32.mrf.mxu0
        %v685 = vadd.f32 %v550, %v684
        %686 = vmatmul.bf16.gmra.mxu0 %v608
        %v687 = vpop.f32.mrf.mxu0
        %v688 = vadd.f32 %v550, %v687
        %v689 = vpop.f32.mrf.mxu0
        %v690 = vadd.f32 %v550, %v689
        %691 = vmatmul.bf16.gmra.mxu0 %v611
        %v692 = vpop.f32.mrf.mxu0
        %v693 = vadd.f32 %v550, %v692
        %v694 = vpop.f32.mrf.mxu0
        %v695 = vadd.f32 %v550, %v694
        %696 = vmatmul.bf16.gmra.mxu0 %v614
        %v697 = vpop.f32.mrf.mxu0
        %v698 = vadd.f32 %v550, %v697
        %v699 = vpop.f32.mrf.mxu0
        %v700 = vadd.f32 %v550, %v699
        %701 = vmatmul.bf16.gmra.mxu0 %v617
        %v702 = vpop.f32.mrf.mxu0
        %v703 = vadd.f32 %v550, %v702
        %v704 = vpop.f32.mrf.mxu0
        %v705 = vadd.f32 %v550, %v704
        %706 = vmatmul.bf16.gmra.mxu0 %v620
        %v707 = vpop.f32.mrf.mxu0
        %v708 = vadd.f32 %v550, %v707
        %v709 = vpop.f32.mrf.mxu0
        %v710 = vadd.f32 %v550, %v709
        %711 = vmatmul.bf16.gmra.mxu0 %v623
        %v712 = vpop.f32.mrf.mxu0
        %v713 = vadd.f32 %v550, %v712
        %v714 = vpop.f32.mrf.mxu0
        %v715 = vadd.f32 %v550, %v714
        %716 = vmatmul.bf16.gmra.mxu0 %v626
        %v717 = vpop.f32.mrf.mxu0
        %v718 = vadd.f32 %v550, %v717
        %v719 = vpop.f32.mrf.mxu0
        %720 = vdwg.mxu0
        %721 = vst [vmem:[#allocation2] sm:$0xff] 0.0
        %722 = vst [vmem:[#allocation2 + $0x8] sm:$0xff] 0.0
        %723 = vst [vmem:[#allocation2 + $0x10] sm:$0xff] 0.0
        %724 = vst [vmem:[#allocation2 + $0x118] sm:$0xff] 0.0
        %725 = vst [vmem:[#allocation2 + $0x120] sm:$0xff] 0.0
        %726 = vst [vmem:[#allocation2 + $0x128] sm:$0xff] 0.0
        %727 = vst [vmem:[#allocation2 + $0x18] sm:$0xff] %v638
        %728 = vst [vmem:[#allocation2 + $0x20] sm:$0xff] %v640
        %729 = vst [vmem:[#allocation2 + $0x28] sm:$0xff] %v643
        %730 = vst [vmem:[#allocation2 + $0x30] sm:$0xff] %v645
        %731 = vst [vmem:[#allocation2 + $0x38] sm:$0xff] %v648
        %732 = vst [vmem:[#allocation2 + $0x40] sm:$0xff] %v650
        %733 = vst [vmem:[#allocation2 + $0x48] sm:$0xff] %v653
        %734 = vst [vmem:[#allocation2 + $0x50] sm:$0xff] %v655
        %735 = vst [vmem:[#allocation2 + $0x58] sm:$0xff] %v658
        %736 = vst [vmem:[#allocation2 + $0x60] sm:$0xff] %v660
        %737 = vst [vmem:[#allocation2 + $0x68] sm:$0xff] %v663
        %738 = vst [vmem:[#allocation2 + $0x70] sm:$0xff] %v665
        %739 = vst [vmem:[#allocation2 + $0x78] sm:$0xff] %v668
        %740 = vst [vmem:[#allocation2 + $0x80] sm:$0xff] %v670
        %741 = vst [vmem:[#allocation2 + $0x88] sm:$0xff] %v673
        %742 = vst [vmem:[#allocation2 + $0x90] sm:$0xff] %v675
        %743 = vst [vmem:[#allocation2 + $0x98] sm:$0xff] %v678
        %744 = vst [vmem:[#allocation2 + $0xa0] sm:$0xff] %v680
        %745 = vst [vmem:[#allocation2 + $0xa8] sm:$0xff] %v683
        %746 = vst [vmem:[#allocation2 + $0xb0] sm:$0xff] %v685
        %747 = vst [vmem:[#allocation2 + $0xb8] sm:$0xff] %v688
        %748 = vst [vmem:[#allocation2 + $0xc0] sm:$0xff] %v690
        %749 = vst [vmem:[#allocation2 + $0xc8] sm:$0xff] %v693
        %750 = vst [vmem:[#allocation2 + $0xd0] sm:$0xff] %v695
        %751 = vst [vmem:[#allocation2 + $0xd8] sm:$0xff] %v698
        %752 = vst [vmem:[#allocation2 + $0xe0] sm:$0xff] %v700
        %753 = vst [vmem:[#allocation2 + $0xe8] sm:$0xff] %v703
        %754 = vst [vmem:[#allocation2 + $0xf0] sm:$0xff] %v705
        %755 = vst [vmem:[#allocation2 + $0xf8] sm:$0xff] %v708
        %756 = vst [vmem:[#allocation2 + $0x100] sm:$0xff] %v710
        %757 = vst [vmem:[#allocation2 + $0x108] sm:$0xff] %v713
        %758 = vst [vmem:[#allocation2 + $0x110] sm:$0xff] %v715
        %v759 = vld [vmem:[%s5] sm:$0xff]
        %v760 = vld [vmem:[%s5 + $0x8] sm:$0x1]
        %v761 = vld [vmem:[#allocation2 + $0x8] sm:$0xff]
        %v762 = vld [vmem:[#allocation2 + $0x10] sm:$0xff]
        %v763 = vld [vmem:[#allocation2 + $0x18] sm:$0xff]
        %v764 = vld [vmem:[#allocation2 + $0x20] sm:$0xff]
        %v765 = vld [vmem:[#allocation2 + $0x28] sm:$0xff]
        %v766 = vld [vmem:[#allocation2 + $0x30] sm:$0xff]
        %v767 = vld [vmem:[#allocation2 + $0x38] sm:$0xff]
        %v768 = vld [vmem:[#allocation2 + $0x40] sm:$0xff]
        %v769 = vld [vmem:[#allocation2 + $0x48] sm:$0xff]
        %v770 = vld [vmem:[#allocation2 + $0x50] sm:$0xff]
        %v771 = vld [vmem:[#allocation2 + $0x58] sm:$0xff]
        %v772 = vld [vmem:[#allocation2 + $0x60] sm:$0xff]
        %v773 = vld [vmem:[#allocation2 + $0x68] sm:$0xff]
        %v774 = vld [vmem:[#allocation2 + $0x70] sm:$0xff]
        %v775 = vld [vmem:[#allocation2 + $0x78] sm:$0xff]
        %v776 = vld [vmem:[#allocation2 + $0x80] sm:$0xff]
        %v777 = vld [vmem:[#allocation2 + $0x88] sm:$0xff]
        %v778 = vld [vmem:[#allocation2 + $0x90] sm:$0xff]
        %v779 = vld [vmem:[#allocation2 + $0x98] sm:$0xff]
        %v780 = vld [vmem:[#allocation2 + $0xa0] sm:$0xff]
        %v781 = vld [vmem:[#allocation2 + $0xa8] sm:$0xff]
        %v782 = vld [vmem:[#allocation2 + $0xb0] sm:$0xff]
        %v783 = vld [vmem:[#allocation2 + $0xb8] sm:$0xff]
        %v784 = vld [vmem:[#allocation2 + $0xc0] sm:$0xff]
        %v785 = vld [vmem:[#allocation2 + $0xc8] sm:$0xff]
        %v786 = vld [vmem:[#allocation2 + $0xd0] sm:$0xff]
        %v787 = vld [vmem:[#allocation2 + $0xd8] sm:$0xff]
        %v788 = vld [vmem:[#allocation2 + $0xe0] sm:$0xff]
        %v789 = vld [vmem:[#allocation2 + $0xe8] sm:$0xff]
        %v790 = vld [vmem:[#allocation2 + $0xf0] sm:$0xff]
        %v791 = vld [vmem:[#allocation2 + $0xf8] sm:$0xff]
        %v792 = vld [vmem:[#allocation2 + $0x100] sm:$0xff]
        %v793 = vperm.slane %v759, 1
        %v794 = vmul.f32 %v761, %v793
        %v795 = vmul.f32 %v762, %v793
        %v796 = vmul.f32 %v763, %v793
        %v797 = vmul.f32 %v764, %v793
        %v798 = vmul.f32 %v765, %v793
        %v799 = vmul.f32 %v766, %v793
        %v800 = vmul.f32 %v767, %v793
        %v801 = vmul.f32 %v768, %v793
        %v802 = vmul.f32 %v769, %v793
        %v803 = vmul.f32 %v770, %v793
        %v804 = vmul.f32 %v771, %v793
        %v805 = vmul.f32 %v772, %v793
        %v806 = vmul.f32 %v773, %v793
        %v807 = vmul.f32 %v774, %v793
        %v808 = vmul.f32 %v775, %v793
        %v809 = vmul.f32 %v776, %v793
        %v810 = vmul.f32 %v777, %v793
        %v811 = vmul.f32 %v778, %v793
        %v812 = vmul.f32 %v779, %v793
        %v813 = vmul.f32 %v780, %v793
        %v814 = vmul.f32 %v781, %v793
        %v815 = vmul.f32 %v782, %v793
        %v816 = vmul.f32 %v783, %v793
        %v817 = vmul.f32 %v784, %v793
        %v818 = vmul.f32 %v785, %v793
        %v819 = vmul.f32 %v786, %v793
        %v820 = vmul.f32 %v787, %v793
        %v821 = vmul.f32 %v788, %v793
        %v822 = vmul.f32 %v789, %v793
        %v823 = vmul.f32 %v790, %v793
        %v824 = vmul.f32 %v791, %v793
        %v825 = vmul.f32 %v792, %v793
        %v826 = vld [vmem:[#allocation2 + $0x108] sm:$0xff]
        %v827 = vld [vmem:[#allocation2 + $0x110] sm:$0xff]
        %v828 = vperm.slane %v759, 4
        %v829 = vmul.f32 %v763, %v828
        %v830 = vmul.f32 %v764, %v828
        %v831 = vmul.f32 %v765, %v828
        %v832 = vmul.f32 %v766, %v828
        %v833 = vmul.f32 %v767, %v828
        %v834 = vmul.f32 %v768, %v828
        %v835 = vmul.f32 %v769, %v828
        %v836 = vmul.f32 %v770, %v828
        %v837 = vmul.f32 %v771, %v828
        %v838 = vmul.f32 %v772, %v828
        %v839 = vmul.f32 %v773, %v828
        %v840 = vmul.f32 %v774, %v828
        %v841 = vmul.f32 %v775, %v828
        %v842 = vmul.f32 %v776, %v828
        %v843 = vmul.f32 %v777, %v828
        %v844 = vmul.f32 %v778, %v828
        %v845 = vmul.f32 %v779, %v828
        %v846 = vmul.f32 %v780, %v828
        %v847 = vmul.f32 %v781, %v828
        %v848 = vmul.f32 %v782, %v828
        %v849 = vmul.f32 %v783, %v828
        %v850 = vmul.f32 %v784, %v828
        %v851 = vmul.f32 %v785, %v828
        %v852 = vmul.f32 %v786, %v828
        %v853 = vmul.f32 %v787, %v828
        %v854 = vmul.f32 %v788, %v828
        %v855 = vmul.f32 %v789, %v828
        %v856 = vmul.f32 %v790, %v828
        %v857 = vmul.f32 %v791, %v828
        %v858 = vmul.f32 %v792, %v828
        %v859 = vmul.f32 %v826, %v828
        %v860 = vmul.f32 %v827, %v828
        %v861 = vadd.f32 %v794, %v829
        %v862 = vadd.f32 %v795, %v830
        %v863 = vadd.f32 %v796, %v831
        %v864 = vadd.f32 %v797, %v832
        %v865 = vadd.f32 %v798, %v833
        %v866 = vadd.f32 %v799, %v834
        %v867 = vadd.f32 %v800, %v835
        %v868 = vadd.f32 %v801, %v836
        %v869 = vadd.f32 %v802, %v837
        %v870 = vadd.f32 %v803, %v838
        %v871 = vadd.f32 %v804, %v839
        %v872 = vadd.f32 %v805, %v840
        %v873 = vadd.f32 %v806, %v841
        %v874 = vadd.f32 %v807, %v842
        %v875 = vadd.f32 %v808, %v843
        %v876 = vadd.f32 %v809, %v844
        %v877 = vadd.f32 %v810, %v845
        %v878 = vadd.f32 %v811, %v846
        %v879 = vadd.f32 %v812, %v847
        %v880 = vadd.f32 %v813, %v848
        %v881 = vadd.f32 %v814, %v849
        %v882 = vadd.f32 %v815, %v850
        %v883 = vadd.f32 %v816, %v851
        %v884 = vadd.f32 %v817, %v852
        %v885 = vadd.f32 %v818, %v853
        %v886 = vadd.f32 %v819, %v854
        %v887 = vadd.f32 %v820, %v855
        %v888 = vadd.f32 %v821, %v856
        %v889 = vadd.f32 %v822, %v857
        %v890 = vadd.f32 %v823, %v858
        %v891 = vadd.f32 %v824, %v859
        %v892 = vadd.f32 %v825, %v860
        %v893 = vld [vmem:[#allocation2 + $0x118] sm:$0xff]
        %v894 = vld [vmem:[#allocation2 + $0x120] sm:$0xff]
        %v895 = vperm.slane %v759, 7
        %v896 = vmul.f32 %v765, %v895
        %v897 = vmul.f32 %v766, %v895
        %v898 = vmul.f32 %v767, %v895
        %v899 = vmul.f32 %v768, %v895
        %v900 = vmul.f32 %v769, %v895
        %v901 = vmul.f32 %v770, %v895
        %v902 = vmul.f32 %v771, %v895
        %v903 = vmul.f32 %v772, %v895
        %v904 = vmul.f32 %v773, %v895
        %v905 = vmul.f32 %v774, %v895
        %v906 = vmul.f32 %v775, %v895
        %v907 = vmul.f32 %v776, %v895
        %v908 = vmul.f32 %v777, %v895
        %v909 = vmul.f32 %v778, %v895
        %v910 = vmul.f32 %v779, %v895
        %v911 = vmul.f32 %v780, %v895
        %v912 = vmul.f32 %v781, %v895
        %v913 = vmul.f32 %v782, %v895
        %v914 = vmul.f32 %v783, %v895
        %v915 = vmul.f32 %v784, %v895
        %v916 = vmul.f32 %v785, %v895
        %v917 = vmul.f32 %v786, %v895
        %v918 = vmul.f32 %v787, %v895
        %v919 = vmul.f32 %v788, %v895
        %v920 = vmul.f32 %v789, %v895
        %v921 = vmul.f32 %v790, %v895
        %v922 = vmul.f32 %v791, %v895
        %v923 = vmul.f32 %v792, %v895
        %v924 = vmul.f32 %v826, %v895
        %v925 = vmul.f32 %v827, %v895
        %v926 = vmul.f32 %v893, %v895
        %v927 = vmul.f32 %v894, %v895
        %v928 = vadd.f32 %v861, %v896
        %v929 = vadd.f32 %v862, %v897
        %v930 = vadd.f32 %v863, %v898
        %v931 = vadd.f32 %v864, %v899
        %v932 = vadd.f32 %v865, %v900
        %v933 = vadd.f32 %v866, %v901
        %v934 = vadd.f32 %v867, %v902
        %v935 = vadd.f32 %v868, %v903
        %v936 = vadd.f32 %v869, %v904
        %v937 = vadd.f32 %v870, %v905
        %v938 = vadd.f32 %v871, %v906
        %v939 = vadd.f32 %v872, %v907
        %v940 = vadd.f32 %v873, %v908
        %v941 = vadd.f32 %v874, %v909
        %v942 = vadd.f32 %v875, %v910
        %v943 = vadd.f32 %v876, %v911
        %v944 = vadd.f32 %v877, %v912
        %v945 = vadd.f32 %v878, %v913
        %v946 = vadd.f32 %v879, %v914
        %v947 = vadd.f32 %v880, %v915
        %v948 = vadd.f32 %v881, %v916
        %v949 = vadd.f32 %v882, %v917
        %v950 = vadd.f32 %v883, %v918
        %v951 = vadd.f32 %v884, %v919
        %v952 = vadd.f32 %v885, %v920
        %v953 = vadd.f32 %v886, %v921
        %v954 = vadd.f32 %v887, %v922
        %v955 = vadd.f32 %v888, %v923
        %v956 = vadd.f32 %v889, %v924
        %v957 = vadd.f32 %v890, %v925
        %v958 = vadd.f32 %v891, %v926
        %v959 = vadd.f32 %v892, %v927
        %v960 = vld [vmem:[#allocation2 + $0x7] sm:$0xff]
        %v961 = vld [vmem:[#allocation2 + $0xf] sm:$0xff]
        %v962 = vld [vmem:[#allocation2 + $0x17] sm:$0xff]
        %v963 = vld [vmem:[#allocation2 + $0x1f] sm:$0xff]
        %v964 = vld [vmem:[#allocation2 + $0x27] sm:$0xff]
        %v965 = vld [vmem:[#allocation2 + $0x2f] sm:$0xff]
        %v966 = vld [vmem:[#allocation2 + $0x37] sm:$0xff]
        %v967 = vld [vmem:[#allocation2 + $0x3f] sm:$0xff]
        %v968 = vld [vmem:[#allocation2 + $0x47] sm:$0xff]
        %v969 = vld [vmem:[#allocation2 + $0x4f] sm:$0xff]
        %v970 = vld [vmem:[#allocation2 + $0x57] sm:$0xff]
        %v971 = vld [vmem:[#allocation2 + $0x5f] sm:$0xff]
        %v972 = vld [vmem:[#allocation2 + $0x67] sm:$0xff]
        %v973 = vld [vmem:[#allocation2 + $0x6f] sm:$0xff]
        %v974 = vld [vmem:[#allocation2 + $0x77] sm:$0xff]
        %v975 = vld [vmem:[#allocation2 + $0x7f] sm:$0xff]
        %v976 = vld [vmem:[#allocation2 + $0x87] sm:$0xff]
        %v977 = vld [vmem:[#allocation2 + $0x8f] sm:$0xff]
        %v978 = vld [vmem:[#allocation2 + $0x97] sm:$0xff]
        %v979 = vld [vmem:[#allocation2 + $0x9f] sm:$0xff]
        %v980 = vld [vmem:[#allocation2 + $0xa7] sm:$0xff]
        %v981 = vld [vmem:[#allocation2 + $0xaf] sm:$0xff]
        %v982 = vld [vmem:[#allocation2 + $0xb7] sm:$0xff]
        %v983 = vld [vmem:[#allocation2 + $0xbf] sm:$0xff]
        %v984 = vld [vmem:[#allocation2 + $0xc7] sm:$0xff]
        %v985 = vld [vmem:[#allocation2 + $0xcf] sm:$0xff]
        %v986 = vld [vmem:[#allocation2 + $0xd7] sm:$0xff]
        %v987 = vld [vmem:[#allocation2 + $0xdf] sm:$0xff]
        %v988 = vld [vmem:[#allocation2 + $0xe7] sm:$0xff]
        %v989 = vld [vmem:[#allocation2 + $0xef] sm:$0xff]
        %v990 = vld [vmem:[#allocation2 + $0xf7] sm:$0xff]
        %v991 = vld [vmem:[#allocation2 + $0xff] sm:$0xff]
        %v992 = vperm.slane %v759, 0
        %v993 = vmul.f32 %v960, %v992
        %v994 = vmul.f32 %v961, %v992
        %v995 = vmul.f32 %v962, %v992
        %v996 = vmul.f32 %v963, %v992
        %v997 = vmul.f32 %v964, %v992
        %v998 = vmul.f32 %v965, %v992
        %v999 = vmul.f32 %v966, %v992
        %v1000 = vmul.f32 %v967, %v992
        %v1001 = vmul.f32 %v968, %v992
        %v1002 = vmul.f32 %v969, %v992
        %v1003 = vmul.f32 %v970, %v992
        %v1004 = vmul.f32 %v971, %v992
        %v1005 = vmul.f32 %v972, %v992
        %v1006 = vmul.f32 %v973, %v992
        %v1007 = vmul.f32 %v974, %v992
        %v1008 = vmul.f32 %v975, %v992
        %v1009 = vmul.f32 %v976, %v992
        %v1010 = vmul.f32 %v977, %v992
        %v1011 = vmul.f32 %v978, %v992
        %v1012 = vmul.f32 %v979, %v992
        %v1013 = vmul.f32 %v980, %v992
        %v1014 = vmul.f32 %v981, %v992
        %v1015 = vmul.f32 %v982, %v992
        %v1016 = vmul.f32 %v983, %v992
        %v1017 = vmul.f32 %v984, %v992
        %v1018 = vmul.f32 %v985, %v992
        %v1019 = vmul.f32 %v986, %v992
        %v1020 = vmul.f32 %v987, %v992
        %v1021 = vmul.f32 %v988, %v992
        %v1022 = vmul.f32 %v989, %v992
        %v1023 = vmul.f32 %v990, %v992
        %v1024 = vmul.f32 %v991, %v992
        %v1025 = vld [vmem:[#allocation2 + $0x107] sm:$0xff]
        %v1026 = vld [vmem:[#allocation2 + $0x10f] sm:$0xff]
        %v1027 = vperm.slane %v759, 3
        %v1028 = vmul.f32 %v962, %v1027
        %v1029 = vmul.f32 %v963, %v1027
        %v1030 = vmul.f32 %v964, %v1027
        %v1031 = vmul.f32 %v965, %v1027
        %v1032 = vmul.f32 %v966, %v1027
        %v1033 = vmul.f32 %v967, %v1027
        %v1034 = vmul.f32 %v968, %v1027
        %v1035 = vmul.f32 %v969, %v1027
        %v1036 = vmul.f32 %v970, %v1027
        %v1037 = vmul.f32 %v971, %v1027
        %v1038 = vmul.f32 %v972, %v1027
        %v1039 = vmul.f32 %v973, %v1027
        %v1040 = vmul.f32 %v974, %v1027
        %v1041 = vmul.f32 %v975, %v1027
        %v1042 = vmul.f32 %v976, %v1027
        %v1043 = vmul.f32 %v977, %v1027
        %v1044 = vmul.f32 %v978, %v1027
        %v1045 = vmul.f32 %v979, %v1027
        %v1046 = vmul.f32 %v980, %v1027
        %v1047 = vmul.f32 %v981, %v1027
        %v1048 = vmul.f32 %v982, %v1027
        %v1049 = vmul.f32 %v983, %v1027
        %v1050 = vmul.f32 %v984, %v1027
        %v1051 = vmul.f32 %v985, %v1027
        %v1052 = vmul.f32 %v986, %v1027
        %v1053 = vmul.f32 %v987, %v1027
        %v1054 = vmul.f32 %v988, %v1027
        %v1055 = vmul.f32 %v989, %v1027
        %v1056 = vmul.f32 %v990, %v1027
        %v1057 = vmul.f32 %v991, %v1027
        %v1058 = vmul.f32 %v1025, %v1027
        %v1059 = vmul.f32 %v1026, %v1027
        %v1060 = vadd.f32 %v993, %v1028
        %v1061 = vadd.f32 %v994, %v1029
        %v1062 = vadd.f32 %v995, %v1030
        %v1063 = vadd.f32 %v996, %v1031
        %v1064 = vadd.f32 %v997, %v1032
        %v1065 = vadd.f32 %v998, %v1033
        %v1066 = vadd.f32 %v999, %v1034
        %v1067 = vadd.f32 %v1000, %v1035
        %v1068 = vadd.f32 %v1001, %v1036
        %v1069 = vadd.f32 %v1002, %v1037
        %v1070 = vadd.f32 %v1003, %v1038
        %v1071 = vadd.f32 %v1004, %v1039
        %v1072 = vadd.f32 %v1005, %v1040
        %v1073 = vadd.f32 %v1006, %v1041
        %v1074 = vadd.f32 %v1007, %v1042
        %v1075 = vadd.f32 %v1008, %v1043
        %v1076 = vadd.f32 %v1009, %v1044
        %v1077 = vadd.f32 %v1010, %v1045
        %v1078 = vadd.f32 %v1011, %v1046
        %v1079 = vadd.f32 %v1012, %v1047
        %v1080 = vadd.f32 %v1013, %v1048
        %v1081 = vadd.f32 %v1014, %v1049
        %v1082 = vadd.f32 %v1015, %v1050
        %v1083 = vadd.f32 %v1016, %v1051
        %v1084 = vadd.f32 %v1017, %v1052
        %v1085 = vadd.f32 %v1018, %v1053
        %v1086 = vadd.f32 %v1019, %v1054
        %v1087 = vadd.f32 %v1020, %v1055
        %v1088 = vadd.f32 %v1021, %v1056
        %v1089 = vadd.f32 %v1022, %v1057
        %v1090 = vadd.f32 %v1023, %v1058
        %v1091 = vadd.f32 %v1024, %v1059
        %v1092 = vld [vmem:[#allocation2 + $0x117] sm:$0xff]
        %v1093 = vld [vmem:[#allocation2 + $0x11f] sm:$0xff]
        %v1094 = vperm.slane %v759, 6
        %v1095 = vmul.f32 %v964, %v1094
        %v1096 = vmul.f32 %v965, %v1094
        %v1097 = vmul.f32 %v966, %v1094
        %v1098 = vmul.f32 %v967, %v1094
        %v1099 = vmul.f32 %v968, %v1094
        %v1100 = vmul.f32 %v969, %v1094
        %v1101 = vmul.f32 %v970, %v1094
        %v1102 = vmul.f32 %v971, %v1094
        %v1103 = vmul.f32 %v972, %v1094
        %v1104 = vmul.f32 %v973, %v1094
        %v1105 = vmul.f32 %v974, %v1094
        %v1106 = vmul.f32 %v975, %v1094
        %v1107 = vmul.f32 %v976, %v1094
        %v1108 = vmul.f32 %v977, %v1094
        %v1109 = vmul.f32 %v978, %v1094
        %v1110 = vmul.f32 %v979, %v1094
        %v1111 = vmul.f32 %v980, %v1094
        %v1112 = vmul.f32 %v981, %v1094
        %v1113 = vmul.f32 %v982, %v1094
        %v1114 = vmul.f32 %v983, %v1094
        %v1115 = vmul.f32 %v984, %v1094
        %v1116 = vmul.f32 %v985, %v1094
        %v1117 = vmul.f32 %v986, %v1094
        %v1118 = vmul.f32 %v987, %v1094
        %v1119 = vmul.f32 %v988, %v1094
        %v1120 = vmul.f32 %v989, %v1094
        %v1121 = vmul.f32 %v990, %v1094
        %v1122 = vmul.f32 %v991, %v1094
        %v1123 = vmul.f32 %v1025, %v1094
        %v1124 = vmul.f32 %v1026, %v1094
        %v1125 = vmul.f32 %v1092, %v1094
        %v1126 = vmul.f32 %v1093, %v1094
        %v1127 = vadd.f32 %v1060, %v1095
        %v1128 = vadd.f32 %v1061, %v1096
        %v1129 = vadd.f32 %v1062, %v1097
        %v1130 = vadd.f32 %v1063, %v1098
        %v1131 = vadd.f32 %v1064, %v1099
        %v1132 = vadd.f32 %v1065, %v1100
        %v1133 = vadd.f32 %v1066, %v1101
        %v1134 = vadd.f32 %v1067, %v1102
        %v1135 = vadd.f32 %v1068, %v1103
        %v1136 = vadd.f32 %v1069, %v1104
        %v1137 = vadd.f32 %v1070, %v1105
        %v1138 = vadd.f32 %v1071, %v1106
        %v1139 = vadd.f32 %v1072, %v1107
        %v1140 = vadd.f32 %v1073, %v1108
        %v1141 = vadd.f32 %v1074, %v1109
        %v1142 = vadd.f32 %v1075, %v1110
        %v1143 = vadd.f32 %v1076, %v1111
        %v1144 = vadd.f32 %v1077, %v1112
        %v1145 = vadd.f32 %v1078, %v1113
        %v1146 = vadd.f32 %v1079, %v1114
        %v1147 = vadd.f32 %v1080, %v1115
        %v1148 = vadd.f32 %v1081, %v1116
        %v1149 = vadd.f32 %v1082, %v1117
        %v1150 = vadd.f32 %v1083, %v1118
        %v1151 = vadd.f32 %v1084, %v1119
        %v1152 = vadd.f32 %v1085, %v1120
        %v1153 = vadd.f32 %v1086, %v1121
        %v1154 = vadd.f32 %v1087, %v1122
        %v1155 = vadd.f32 %v1088, %v1123
        %v1156 = vadd.f32 %v1089, %v1124
        %v1157 = vadd.f32 %v1090, %v1125
        %v1158 = vadd.f32 %v1091, %v1126
        %v1159 = vld [vmem:[#allocation2 + $0x9] sm:$0xff]
        %v1160 = vld [vmem:[#allocation2 + $0x11] sm:$0xff]
        %v1161 = vld [vmem:[#allocation2 + $0x19] sm:$0xff]
        %v1162 = vld [vmem:[#allocation2 + $0x21] sm:$0xff]
        %v1163 = vld [vmem:[#allocation2 + $0x29] sm:$0xff]
        %v1164 = vld [vmem:[#allocation2 + $0x31] sm:$0xff]
        %v1165 = vld [vmem:[#allocation2 + $0x39] sm:$0xff]
        %v1166 = vld [vmem:[#allocation2 + $0x41] sm:$0xff]
        %v1167 = vld [vmem:[#allocation2 + $0x49] sm:$0xff]
        %v1168 = vld [vmem:[#allocation2 + $0x51] sm:$0xff]
        %v1169 = vld [vmem:[#allocation2 + $0x59] sm:$0xff]
        %v1170 = vld [vmem:[#allocation2 + $0x61] sm:$0xff]
        %v1171 = vld [vmem:[#allocation2 + $0x69] sm:$0xff]
        %v1172 = vld [vmem:[#allocation2 + $0x71] sm:$0xff]
        %v1173 = vld [vmem:[#allocation2 + $0x79] sm:$0xff]
        %v1174 = vld [vmem:[#allocation2 + $0x81] sm:$0xff]
        %v1175 = vld [vmem:[#allocation2 + $0x89] sm:$0xff]
        %v1176 = vld [vmem:[#allocation2 + $0x91] sm:$0xff]
        %v1177 = vld [vmem:[#allocation2 + $0x99] sm:$0xff]
        %v1178 = vld [vmem:[#allocation2 + $0xa1] sm:$0xff]
        %v1179 = vld [vmem:[#allocation2 + $0xa9] sm:$0xff]
        %v1180 = vld [vmem:[#allocation2 + $0xb1] sm:$0xff]
        %v1181 = vld [vmem:[#allocation2 + $0xb9] sm:$0xff]
        %v1182 = vld [vmem:[#allocation2 + $0xc1] sm:$0xff]
        %v1183 = vld [vmem:[#allocation2 + $0xc9] sm:$0xff]
        %v1184 = vld [vmem:[#allocation2 + $0xd1] sm:$0xff]
        %v1185 = vld [vmem:[#allocation2 + $0xd9] sm:$0xff]
        %v1186 = vld [vmem:[#allocation2 + $0xe1] sm:$0xff]
        %v1187 = vld [vmem:[#allocation2 + $0xe9] sm:$0xff]
        %v1188 = vld [vmem:[#allocation2 + $0xf1] sm:$0xff]
        %v1189 = vld [vmem:[#allocation2 + $0xf9] sm:$0xff]
        %v1190 = vld [vmem:[#allocation2 + $0x101] sm:$0xff]
        %v1191 = vperm.slane %v759, 2
        %v1192 = vmul.f32 %v1159, %v1191
        %v1193 = vmul.f32 %v1160, %v1191
        %v1194 = vmul.f32 %v1161, %v1191
        %v1195 = vmul.f32 %v1162, %v1191
        %v1196 = vmul.f32 %v1163, %v1191
        %v1197 = vmul.f32 %v1164, %v1191
        %v1198 = vmul.f32 %v1165, %v1191
        %v1199 = vmul.f32 %v1166, %v1191
        %v1200 = vmul.f32 %v1167, %v1191
        %v1201 = vmul.f32 %v1168, %v1191
        %v1202 = vmul.f32 %v1169, %v1191
        %v1203 = vmul.f32 %v1170, %v1191
        %v1204 = vmul.f32 %v1171, %v1191
        %v1205 = vmul.f32 %v1172, %v1191
        %v1206 = vmul.f32 %v1173, %v1191
        %v1207 = vmul.f32 %v1174, %v1191
        %v1208 = vmul.f32 %v1175, %v1191
        %v1209 = vmul.f32 %v1176, %v1191
        %v1210 = vmul.f32 %v1177, %v1191
        %v1211 = vmul.f32 %v1178, %v1191
        %v1212 = vmul.f32 %v1179, %v1191
        %v1213 = vmul.f32 %v1180, %v1191
        %v1214 = vmul.f32 %v1181, %v1191
        %v1215 = vmul.f32 %v1182, %v1191
        %v1216 = vmul.f32 %v1183, %v1191
        %v1217 = vmul.f32 %v1184, %v1191
        %v1218 = vmul.f32 %v1185, %v1191
        %v1219 = vmul.f32 %v1186, %v1191
        %v1220 = vmul.f32 %v1187, %v1191
        %v1221 = vmul.f32 %v1188, %v1191
        %v1222 = vmul.f32 %v1189, %v1191
        %v1223 = vmul.f32 %v1190, %v1191
        %v1224 = vld [vmem:[#allocation2 + $0x109] sm:$0xff]
        %v1225 = vld [vmem:[#allocation2 + $0x111] sm:$0xff]
        %v1226 = vperm.slane %v759, 5
        %v1227 = vmul.f32 %v1161, %v1226
        %v1228 = vmul.f32 %v1162, %v1226
        %v1229 = vmul.f32 %v1163, %v1226
        %v1230 = vmul.f32 %v1164, %v1226
        %v1231 = vmul.f32 %v1165, %v1226
        %v1232 = vmul.f32 %v1166, %v1226
        %v1233 = vmul.f32 %v1167, %v1226
        %v1234 = vmul.f32 %v1168, %v1226
        %v1235 = vmul.f32 %v1169, %v1226
        %v1236 = vmul.f32 %v1170, %v1226
        %v1237 = vmul.f32 %v1171, %v1226
        %v1238 = vmul.f32 %v1172, %v1226
        %v1239 = vmul.f32 %v1173, %v1226
        %v1240 = vmul.f32 %v1174, %v1226
        %v1241 = vmul.f32 %v1175, %v1226
        %v1242 = vmul.f32 %v1176, %v1226
        %v1243 = vmul.f32 %v1177, %v1226
        %v1244 = vmul.f32 %v1178, %v1226
        %v1245 = vmul.f32 %v1179, %v1226
        %v1246 = vmul.f32 %v1180, %v1226
        %v1247 = vmul.f32 %v1181, %v1226
        %v1248 = vmul.f32 %v1182, %v1226
        %v1249 = vmul.f32 %v1183, %v1226
        %v1250 = vmul.f32 %v1184, %v1226
        %v1251 = vmul.f32 %v1185, %v1226
        %v1252 = vmul.f32 %v1186, %v1226
        %v1253 = vmul.f32 %v1187, %v1226
        %v1254 = vmul.f32 %v1188, %v1226
        %v1255 = vmul.f32 %v1189, %v1226
        %v1256 = vmul.f32 %v1190, %v1226
        %v1257 = vmul.f32 %v1224, %v1226
        %v1258 = vmul.f32 %v1225, %v1226
        %v1259 = vadd.f32 %v1192, %v1227
        %v1260 = vadd.f32 %v1193, %v1228
        %v1261 = vadd.f32 %v1194, %v1229
        %v1262 = vadd.f32 %v1195, %v1230
        %v1263 = vadd.f32 %v1196, %v1231
        %v1264 = vadd.f32 %v1197, %v1232
        %v1265 = vadd.f32 %v1198, %v1233
        %v1266 = vadd.f32 %v1199, %v1234
        %v1267 = vadd.f32 %v1200, %v1235
        %v1268 = vadd.f32 %v1201, %v1236
        %v1269 = vadd.f32 %v1202, %v1237
        %v1270 = vadd.f32 %v1203, %v1238
        %v1271 = vadd.f32 %v1204, %v1239
        %v1272 = vadd.f32 %v1205, %v1240
        %v1273 = vadd.f32 %v1206, %v1241
        %v1274 = vadd.f32 %v1207, %v1242
        %v1275 = vadd.f32 %v1208, %v1243
        %v1276 = vadd.f32 %v1209, %v1244
        %v1277 = vadd.f32 %v1210, %v1245
        %v1278 = vadd.f32 %v1211, %v1246
        %v1279 = vadd.f32 %v1212, %v1247
        %v1280 = vadd.f32 %v1213, %v1248
        %v1281 = vadd.f32 %v1214, %v1249
        %v1282 = vadd.f32 %v1215, %v1250
        %v1283 = vadd.f32 %v1216, %v1251
        %v1284 = vadd.f32 %v1217, %v1252
        %v1285 = vadd.f32 %v1218, %v1253
        %v1286 = vadd.f32 %v1219, %v1254
        %v1287 = vadd.f32 %v1220, %v1255
        %v1288 = vadd.f32 %v1221, %v1256
        %v1289 = vadd.f32 %v1222, %v1257
        %v1290 = vadd.f32 %v1223, %v1258
        %v1291 = vld [vmem:[#allocation2 + $0x119] sm:$0xff]
        %v1292 = vld [vmem:[#allocation2 + $0x121] sm:$0xff]
        %v1293 = vperm.slane %v760, 0
        %v1294 = vmul.f32 %v1163, %v1293
        %v1295 = vmul.f32 %v1164, %v1293
        %v1296 = vmul.f32 %v1165, %v1293
        %v1297 = vmul.f32 %v1166, %v1293
        %v1298 = vmul.f32 %v1167, %v1293
        %v1299 = vmul.f32 %v1168, %v1293
        %v1300 = vmul.f32 %v1169, %v1293
        %v1301 = vmul.f32 %v1170, %v1293
        %v1302 = vmul.f32 %v1171, %v1293
        %v1303 = vmul.f32 %v1172, %v1293
        %v1304 = vmul.f32 %v1173, %v1293
        %v1305 = vmul.f32 %v1174, %v1293
        %v1306 = vmul.f32 %v1175, %v1293
        %v1307 = vmul.f32 %v1176, %v1293
        %v1308 = vmul.f32 %v1177, %v1293
        %v1309 = vmul.f32 %v1178, %v1293
        %v1310 = vmul.f32 %v1179, %v1293
        %v1311 = vmul.f32 %v1180, %v1293
        %v1312 = vmul.f32 %v1181, %v1293
        %v1313 = vmul.f32 %v1182, %v1293
        %v1314 = vmul.f32 %v1183, %v1293
        %v1315 = vmul.f32 %v1184, %v1293
        %v1316 = vmul.f32 %v1185, %v1293
        %v1317 = vmul.f32 %v1186, %v1293
        %v1318 = vmul.f32 %v1187, %v1293
        %v1319 = vmul.f32 %v1188, %v1293
        %v1320 = vmul.f32 %v1189, %v1293
        %v1321 = vmul.f32 %v1190, %v1293
        %v1322 = vmul.f32 %v1224, %v1293
        %v1323 = vmul.f32 %v1225, %v1293
        %v1324 = vmul.f32 %v1291, %v1293
        %v1325 = vmul.f32 %v1292, %v1293
        %v1326 = vadd.f32 %v1259, %v1294
        %v1327 = vadd.f32 %v1260, %v1295
        %v1328 = vadd.f32 %v1261, %v1296
        %v1329 = vadd.f32 %v1262, %v1297
        %v1330 = vadd.f32 %v1263, %v1298
        %v1331 = vadd.f32 %v1264, %v1299
        %v1332 = vadd.f32 %v1265, %v1300
        %v1333 = vadd.f32 %v1266, %v1301
        %v1334 = vadd.f32 %v1267, %v1302
        %v1335 = vadd.f32 %v1268, %v1303
        %v1336 = vadd.f32 %v1269, %v1304
        %v1337 = vadd.f32 %v1270, %v1305
        %v1338 = vadd.f32 %v1271, %v1306
        %v1339 = vadd.f32 %v1272, %v1307
        %v1340 = vadd.f32 %v1273, %v1308
        %v1341 = vadd.f32 %v1274, %v1309
        %v1342 = vadd.f32 %v1275, %v1310
        %v1343 = vadd.f32 %v1276, %v1311
        %v1344 = vadd.f32 %v1277, %v1312
        %v1345 = vadd.f32 %v1278, %v1313
        %v1346 = vadd.f32 %v1279, %v1314
        %v1347 = vadd.f32 %v1280, %v1315
        %v1348 = vadd.f32 %v1281, %v1316
        %v1349 = vadd.f32 %v1282, %v1317
        %v1350 = vadd.f32 %v1283, %v1318
        %v1351 = vadd.f32 %v1284, %v1319
        %v1352 = vadd.f32 %v1285, %v1320
        %v1353 = vadd.f32 %v1286, %v1321
        %v1354 = vadd.f32 %v1287, %v1322
        %v1355 = vadd.f32 %v1288, %v1323
        %v1356 = vadd.f32 %v1289, %v1324
        %v1357 = vadd.f32 %v1290, %v1325
        %v1358 = vld [vmem:[%s8] sm:$0xff]
        %v1359 = vld [vmem:[%s8 + $0x8] sm:$0xff]
        %v1360 = vld [vmem:[%s8 + $0x10] sm:$0xff]
        %v1361 = vld [vmem:[%s8 + $0x18] sm:$0xff]
        %v1362 = vld [vmem:[%s8 + $0x20] sm:$0xff]
        %v1363 = vld [vmem:[%s8 + $0x28] sm:$0xff]
        %v1364 = vld [vmem:[%s8 + $0x30] sm:$0xff]
        %v1365 = vld [vmem:[%s8 + $0x38] sm:$0xff]
        %v1366 = vld [vmem:[%s8 + $0x40] sm:$0xff]
        %v1367 = vld [vmem:[%s8 + $0x48] sm:$0xff]
        %v1368 = vld [vmem:[%s8 + $0x50] sm:$0xff]
        %v1369 = vld [vmem:[%s8 + $0x58] sm:$0xff]
        %v1370 = vld [vmem:[%s8 + $0x60] sm:$0xff]
        %v1371 = vld [vmem:[%s8 + $0x68] sm:$0xff]
        %v1372 = vld [vmem:[%s8 + $0x70] sm:$0xff]
        %v1373 = vld [vmem:[%s8 + $0x78] sm:$0xff]
        %v1374 = vld [vmem:[%s8 + $0x80] sm:$0xff]
        %v1375 = vld [vmem:[%s8 + $0x88] sm:$0xff]
        %v1376 = vld [vmem:[%s8 + $0x90] sm:$0xff]
        %v1377 = vld [vmem:[%s8 + $0x98] sm:$0xff]
        %v1378 = vld [vmem:[%s8 + $0xa0] sm:$0xff]
        %v1379 = vld [vmem:[%s8 + $0xa8] sm:$0xff]
        %v1380 = vld [vmem:[%s8 + $0xb0] sm:$0xff]
        %v1381 = vld [vmem:[%s8 + $0xb8] sm:$0xff]
        %v1382 = vld [vmem:[%s8 + $0xc0] sm:$0xff]
        %v1383 = vld [vmem:[%s8 + $0xc8] sm:$0xff]
        %v1384 = vld [vmem:[%s8 + $0xd0] sm:$0xff]
        %v1385 = vld [vmem:[%s8 + $0xd8] sm:$0xff]
        %v1386 = vld [vmem:[%s8 + $0xe0] sm:$0xff]
        %v1387 = vld [vmem:[%s8 + $0xe8] sm:$0xff]
        %v1388 = vld [vmem:[%s8 + $0xf0] sm:$0xff]
        %v1389 = vld [vmem:[%s8 + $0xf8] sm:$0xff]
        %1391 = vset.pattern.permute.xlu0 0
        %1392 = vperm.xlu0 %1391, %v1358
        %v1393 = vpop.permute.xlu0 %1392
        %1396 = vset.pattern.permute.xlu0 0
        %1397 = vperm.xlu0 %1396, %v1359
        %v1398 = vpop.permute.xlu0 %1397
        %1401 = vset.pattern.permute.xlu0 0
        %1402 = vperm.xlu0 %1401, %v1360
        %v1403 = vpop.permute.xlu0 %1402
        %1406 = vset.pattern.permute.xlu0 0
        %1407 = vperm.xlu0 %1406, %v1361
        %v1408 = vpop.permute.xlu0 %1407
        %1411 = vset.pattern.permute.xlu0 0
        %1412 = vperm.xlu0 %1411, %v1362
        %v1413 = vpop.permute.xlu0 %1412
        %1416 = vset.pattern.permute.xlu0 0
        %1417 = vperm.xlu0 %1416, %v1363
        %v1418 = vpop.permute.xlu0 %1417
        %1421 = vset.pattern.permute.xlu0 0
        %1422 = vperm.xlu0 %1421, %v1364
        %v1423 = vpop.permute.xlu0 %1422
        %1426 = vset.pattern.permute.xlu0 0
        %1427 = vperm.xlu0 %1426, %v1365
        %v1428 = vpop.permute.xlu0 %1427
        %1431 = vset.pattern.permute.xlu0 0
        %1432 = vperm.xlu0 %1431, %v1366
        %v1433 = vpop.permute.xlu0 %1432
        %1436 = vset.pattern.permute.xlu0 0
        %1437 = vperm.xlu0 %1436, %v1367
        %v1438 = vpop.permute.xlu0 %1437
        %1441 = vset.pattern.permute.xlu0 0
        %1442 = vperm.xlu0 %1441, %v1368
        %v1443 = vpop.permute.xlu0 %1442
        %1446 = vset.pattern.permute.xlu0 0
        %1447 = vperm.xlu0 %1446, %v1369
        %v1448 = vpop.permute.xlu0 %1447
        %1451 = vset.pattern.permute.xlu0 0
        %1452 = vperm.xlu0 %1451, %v1370
        %v1453 = vpop.permute.xlu0 %1452
        %1456 = vset.pattern.permute.xlu0 0
        %1457 = vperm.xlu0 %1456, %v1371
        %v1458 = vpop.permute.xlu0 %1457
        %1461 = vset.pattern.permute.xlu0 0
        %1462 = vperm.xlu0 %1461, %v1372
        %v1463 = vpop.permute.xlu0 %1462
        %1466 = vset.pattern.permute.xlu0 0
        %1467 = vperm.xlu0 %1466, %v1373
        %v1468 = vpop.permute.xlu0 %1467
        %1471 = vset.pattern.permute.xlu0 0
        %1472 = vperm.xlu0 %1471, %v1374
        %v1473 = vpop.permute.xlu0 %1472
        %1476 = vset.pattern.permute.xlu0 0
        %1477 = vperm.xlu0 %1476, %v1375
        %v1478 = vpop.permute.xlu0 %1477
        %1481 = vset.pattern.permute.xlu0 0
        %1482 = vperm.xlu0 %1481, %v1376
        %v1483 = vpop.permute.xlu0 %1482
        %1486 = vset.pattern.permute.xlu0 0
        %1487 = vperm.xlu0 %1486, %v1377
        %v1488 = vpop.permute.xlu0 %1487
        %1491 = vset.pattern.permute.xlu0 0
        %1492 = vperm.xlu0 %1491, %v1378
        %v1493 = vpop.permute.xlu0 %1492
        %1496 = vset.pattern.permute.xlu0 0
        %1497 = vperm.xlu0 %1496, %v1379
        %v1498 = vpop.permute.xlu0 %1497
        %1501 = vset.pattern.permute.xlu0 0
        %1502 = vperm.xlu0 %1501, %v1380
        %v1503 = vpop.permute.xlu0 %1502
        %1506 = vset.pattern.permute.xlu0 0
        %1507 = vperm.xlu0 %1506, %v1381
        %v1508 = vpop.permute.xlu0 %1507
        %1511 = vset.pattern.permute.xlu0 0
        %1512 = vperm.xlu0 %1511, %v1382
        %v1513 = vpop.permute.xlu0 %1512
        %1516 = vset.pattern.permute.xlu0 0
        %1517 = vperm.xlu0 %1516, %v1383
        %v1518 = vpop.permute.xlu0 %1517
        %1521 = vset.pattern.permute.xlu0 0
        %1522 = vperm.xlu0 %1521, %v1384
        %v1523 = vpop.permute.xlu0 %1522
        %1526 = vset.pattern.permute.xlu0 0
        %1527 = vperm.xlu0 %1526, %v1385
        %v1528 = vpop.permute.xlu0 %1527
        %1531 = vset.pattern.permute.xlu0 0
        %1532 = vperm.xlu0 %1531, %v1386
        %v1533 = vpop.permute.xlu0 %1532
        %1536 = vset.pattern.permute.xlu0 0
        %1537 = vperm.xlu0 %1536, %v1387
        %v1538 = vpop.permute.xlu0 %1537
        %1541 = vset.pattern.permute.xlu0 0
        %1542 = vperm.xlu0 %1541, %v1388
        %v1543 = vpop.permute.xlu0 %1542
        %1546 = vset.pattern.permute.xlu0 0
        %1547 = vperm.xlu0 %1546, %v1389
        %v1548 = vpop.permute.xlu0 %1547
        %v1550 = vmul.f32 %v1127, %v1393
        %v1551 = vmul.f32 %v1128, %v1398
        %v1552 = vmul.f32 %v1129, %v1403
        %v1553 = vmul.f32 %v1130, %v1408
        %v1554 = vmul.f32 %v1131, %v1413
        %v1555 = vmul.f32 %v1132, %v1418
        %v1556 = vmul.f32 %v1133, %v1423
        %v1557 = vmul.f32 %v1134, %v1428
        %v1558 = vmul.f32 %v1135, %v1433
        %v1559 = vmul.f32 %v1136, %v1438
        %v1560 = vmul.f32 %v1137, %v1443
        %v1561 = vmul.f32 %v1138, %v1448
        %v1562 = vmul.f32 %v1139, %v1453
        %v1563 = vmul.f32 %v1140, %v1458
        %v1564 = vmul.f32 %v1141, %v1463
        %v1565 = vmul.f32 %v1142, %v1468
        %v1566 = vmul.f32 %v1143, %v1473
        %v1567 = vmul.f32 %v1144, %v1478
        %v1568 = vmul.f32 %v1145, %v1483
        %v1569 = vmul.f32 %v1146, %v1488
        %v1570 = vmul.f32 %v1147, %v1493
        %v1571 = vmul.f32 %v1148, %v1498
        %v1572 = vmul.f32 %v1149, %v1503
        %v1573 = vmul.f32 %v1150, %v1508
        %v1574 = vmul.f32 %v1151, %v1513
        %v1575 = vmul.f32 %v1152, %v1518
        %v1576 = vmul.f32 %v1153, %v1523
        %v1577 = vmul.f32 %v1154, %v1528
        %v1578 = vmul.f32 %v1155, %v1533
        %v1579 = vmul.f32 %v1156, %v1538
        %v1580 = vmul.f32 %v1157, %v1543
        %v1581 = vmul.f32 %v1158, %v1548
        %v1582 = vadd.f32 %v928, %v1550
        %v1583 = vadd.f32 %v929, %v1551
        %v1584 = vadd.f32 %v930, %v1552
        %v1585 = vadd.f32 %v931, %v1553
        %v1586 = vadd.f32 %v932, %v1554
        %v1587 = vadd.f32 %v933, %v1555
        %v1588 = vadd.f32 %v934, %v1556
        %v1589 = vadd.f32 %v935, %v1557
        %v1590 = vadd.f32 %v936, %v1558
        %v1591 = vadd.f32 %v937, %v1559
        %v1592 = vadd.f32 %v938, %v1560
        %v1593 = vadd.f32 %v939, %v1561
        %v1594 = vadd.f32 %v940, %v1562
        %v1595 = vadd.f32 %v941, %v1563
        %v1596 = vadd.f32 %v942, %v1564
        %v1597 = vadd.f32 %v943, %v1565
        %v1598 = vadd.f32 %v944, %v1566
        %v1599 = vadd.f32 %v945, %v1567
        %v1600 = vadd.f32 %v946, %v1568
        %v1601 = vadd.f32 %v947, %v1569
        %v1602 = vadd.f32 %v948, %v1570
        %v1603 = vadd.f32 %v949, %v1571
        %v1604 = vadd.f32 %v950, %v1572
        %v1605 = vadd.f32 %v951, %v1573
        %v1606 = vadd.f32 %v952, %v1574
        %v1607 = vadd.f32 %v953, %v1575
        %v1608 = vadd.f32 %v954, %v1576
        %v1609 = vadd.f32 %v955, %v1577
        %v1610 = vadd.f32 %v956, %v1578
        %v1611 = vadd.f32 %v957, %v1579
        %v1612 = vadd.f32 %v958, %v1580
        %v1613 = vadd.f32 %v959, %v1581
        %v1614 = vld [vmem:[%s9] sm:$0xff]
        %v1615 = vld [vmem:[%s9 + $0x8] sm:$0xff]
        %v1616 = vld [vmem:[%s9 + $0x10] sm:$0xff]
        %v1617 = vld [vmem:[%s9 + $0x18] sm:$0xff]
        %v1618 = vld [vmem:[%s9 + $0x20] sm:$0xff]
        %v1619 = vld [vmem:[%s9 + $0x28] sm:$0xff]
        %v1620 = vld [vmem:[%s9 + $0x30] sm:$0xff]
        %v1621 = vld [vmem:[%s9 + $0x38] sm:$0xff]
        %v1622 = vld [vmem:[%s9 + $0x40] sm:$0xff]
        %v1623 = vld [vmem:[%s9 + $0x48] sm:$0xff]
        %v1624 = vld [vmem:[%s9 + $0x50] sm:$0xff]
        %v1625 = vld [vmem:[%s9 + $0x58] sm:$0xff]
        %v1626 = vld [vmem:[%s9 + $0x60] sm:$0xff]
        %v1627 = vld [vmem:[%s9 + $0x68] sm:$0xff]
        %v1628 = vld [vmem:[%s9 + $0x70] sm:$0xff]
        %v1629 = vld [vmem:[%s9 + $0x78] sm:$0xff]
        %v1630 = vld [vmem:[%s9 + $0x80] sm:$0xff]
        %v1631 = vld [vmem:[%s9 + $0x88] sm:$0xff]
        %v1632 = vld [vmem:[%s9 + $0x90] sm:$0xff]
        %v1633 = vld [vmem:[%s9 + $0x98] sm:$0xff]
        %v1634 = vld [vmem:[%s9 + $0xa0] sm:$0xff]
        %v1635 = vld [vmem:[%s9 + $0xa8] sm:$0xff]
        %v1636 = vld [vmem:[%s9 + $0xb0] sm:$0xff]
        %v1637 = vld [vmem:[%s9 + $0xb8] sm:$0xff]
        %v1638 = vld [vmem:[%s9 + $0xc0] sm:$0xff]
        %v1639 = vld [vmem:[%s9 + $0xc8] sm:$0xff]
        %v1640 = vld [vmem:[%s9 + $0xd0] sm:$0xff]
        %v1641 = vld [vmem:[%s9 + $0xd8] sm:$0xff]
        %v1642 = vld [vmem:[%s9 + $0xe0] sm:$0xff]
        %v1643 = vld [vmem:[%s9 + $0xe8] sm:$0xff]
        %v1644 = vld [vmem:[%s9 + $0xf0] sm:$0xff]
        %v1645 = vld [vmem:[%s9 + $0xf8] sm:$0xff]
        %1647 = vset.pattern.permute.xlu0 0
        %1648 = vperm.xlu0 %1647, %v1614
        %v1649 = vpop.permute.xlu0 %1648
        %1652 = vset.pattern.permute.xlu0 0
        %1653 = vperm.xlu0 %1652, %v1615
        %v1654 = vpop.permute.xlu0 %1653
        %1657 = vset.pattern.permute.xlu0 0
        %1658 = vperm.xlu0 %1657, %v1616
        %v1659 = vpop.permute.xlu0 %1658
        %1662 = vset.pattern.permute.xlu0 0
        %1663 = vperm.xlu0 %1662, %v1617
        %v1664 = vpop.permute.xlu0 %1663
        %1667 = vset.pattern.permute.xlu0 0
        %1668 = vperm.xlu0 %1667, %v1618
        %v1669 = vpop.permute.xlu0 %1668
        %1672 = vset.pattern.permute.xlu0 0
        %1673 = vperm.xlu0 %1672, %v1619
        %v1674 = vpop.permute.xlu0 %1673
        %1677 = vset.pattern.permute.xlu0 0
        %1678 = vperm.xlu0 %1677, %v1620
        %v1679 = vpop.permute.xlu0 %1678
        %1682 = vset.pattern.permute.xlu0 0
        %1683 = vperm.xlu0 %1682, %v1621
        %v1684 = vpop.permute.xlu0 %1683
        %1687 = vset.pattern.permute.xlu0 0
        %1688 = vperm.xlu0 %1687, %v1622
        %v1689 = vpop.permute.xlu0 %1688
        %1692 = vset.pattern.permute.xlu0 0
        %1693 = vperm.xlu0 %1692, %v1623
        %v1694 = vpop.permute.xlu0 %1693
        %1697 = vset.pattern.permute.xlu0 0
        %1698 = vperm.xlu0 %1697, %v1624
        %v1699 = vpop.permute.xlu0 %1698
        %1702 = vset.pattern.permute.xlu0 0
        %1703 = vperm.xlu0 %1702, %v1625
        %v1704 = vpop.permute.xlu0 %1703
        %1707 = vset.pattern.permute.xlu0 0
        %1708 = vperm.xlu0 %1707, %v1626
        %v1709 = vpop.permute.xlu0 %1708
        %1712 = vset.pattern.permute.xlu0 0
        %1713 = vperm.xlu0 %1712, %v1627
        %v1714 = vpop.permute.xlu0 %1713
        %1717 = vset.pattern.permute.xlu0 0
        %1718 = vperm.xlu0 %1717, %v1628
        %v1719 = vpop.permute.xlu0 %1718
        %1722 = vset.pattern.permute.xlu0 0
        %1723 = vperm.xlu0 %1722, %v1629
        %v1724 = vpop.permute.xlu0 %1723
        %1727 = vset.pattern.permute.xlu0 0
        %1728 = vperm.xlu0 %1727, %v1630
        %v1729 = vpop.permute.xlu0 %1728
        %1732 = vset.pattern.permute.xlu0 0
        %1733 = vperm.xlu0 %1732, %v1631
        %v1734 = vpop.permute.xlu0 %1733
        %1737 = vset.pattern.permute.xlu0 0
        %1738 = vperm.xlu0 %1737, %v1632
        %v1739 = vpop.permute.xlu0 %1738
        %1742 = vset.pattern.permute.xlu0 0
        %1743 = vperm.xlu0 %1742, %v1633
        %v1744 = vpop.permute.xlu0 %1743
        %1747 = vset.pattern.permute.xlu0 0
        %1748 = vperm.xlu0 %1747, %v1634
        %v1749 = vpop.permute.xlu0 %1748
        %1752 = vset.pattern.permute.xlu0 0
        %1753 = vperm.xlu0 %1752, %v1635
        %v1754 = vpop.permute.xlu0 %1753
        %1757 = vset.pattern.permute.xlu0 0
        %1758 = vperm.xlu0 %1757, %v1636
        %v1759 = vpop.permute.xlu0 %1758
        %1762 = vset.pattern.permute.xlu0 0
        %1763 = vperm.xlu0 %1762, %v1637
        %v1764 = vpop.permute.xlu0 %1763
        %1767 = vset.pattern.permute.xlu0 0
        %1768 = vperm.xlu0 %1767, %v1638
        %v1769 = vpop.permute.xlu0 %1768
        %1772 = vset.pattern.permute.xlu0 0
        %1773 = vperm.xlu0 %1772, %v1639
        %v1774 = vpop.permute.xlu0 %1773
        %1777 = vset.pattern.permute.xlu0 0
        %1778 = vperm.xlu0 %1777, %v1640
        %v1779 = vpop.permute.xlu0 %1778
        %1782 = vset.pattern.permute.xlu0 0
        %1783 = vperm.xlu0 %1782, %v1641
        %v1784 = vpop.permute.xlu0 %1783
        %1787 = vset.pattern.permute.xlu0 0
        %1788 = vperm.xlu0 %1787, %v1642
        %v1789 = vpop.permute.xlu0 %1788
        %1792 = vset.pattern.permute.xlu0 0
        %1793 = vperm.xlu0 %1792, %v1643
        %v1794 = vpop.permute.xlu0 %1793
        %1797 = vset.pattern.permute.xlu0 0
        %1798 = vperm.xlu0 %1797, %v1644
        %v1799 = vpop.permute.xlu0 %1798
        %1802 = vset.pattern.permute.xlu0 0
        %1803 = vperm.xlu0 %1802, %v1645
        %v1804 = vpop.permute.xlu0 %1803
        %v1806 = vmul.f32 %v1326, %v1649
        %v1807 = vmul.f32 %v1327, %v1654
        %v1808 = vmul.f32 %v1328, %v1659
        %v1809 = vmul.f32 %v1329, %v1664
        %v1810 = vmul.f32 %v1330, %v1669
        %v1811 = vmul.f32 %v1331, %v1674
        %v1812 = vmul.f32 %v1332, %v1679
        %v1813 = vmul.f32 %v1333, %v1684
        %v1814 = vmul.f32 %v1334, %v1689
        %v1815 = vmul.f32 %v1335, %v1694
        %v1816 = vmul.f32 %v1336, %v1699
        %v1817 = vmul.f32 %v1337, %v1704
        %v1818 = vmul.f32 %v1338, %v1709
        %v1819 = vmul.f32 %v1339, %v1714
        %v1820 = vmul.f32 %v1340, %v1719
        %v1821 = vmul.f32 %v1341, %v1724
        %v1822 = vmul.f32 %v1342, %v1729
        %v1823 = vmul.f32 %v1343, %v1734
        %v1824 = vmul.f32 %v1344, %v1739
        %v1825 = vmul.f32 %v1345, %v1744
        %v1826 = vmul.f32 %v1346, %v1749
        %v1827 = vmul.f32 %v1347, %v1754
        %v1828 = vmul.f32 %v1348, %v1759
        %v1829 = vmul.f32 %v1349, %v1764
        %v1830 = vmul.f32 %v1350, %v1769
        %v1831 = vmul.f32 %v1351, %v1774
        %v1832 = vmul.f32 %v1352, %v1779
        %v1833 = vmul.f32 %v1353, %v1784
        %v1834 = vmul.f32 %v1354, %v1789
        %v1835 = vmul.f32 %v1355, %v1794
        %v1836 = vmul.f32 %v1356, %v1799
        %v1837 = vmul.f32 %v1357, %v1804
        %v1838 = vadd.f32 %v1582, %v1806
        %v1839 = vadd.f32 %v1583, %v1807
        %v1840 = vadd.f32 %v1584, %v1808
        %v1841 = vadd.f32 %v1585, %v1809
        %v1842 = vadd.f32 %v1586, %v1810
        %v1843 = vadd.f32 %v1587, %v1811
        %v1844 = vadd.f32 %v1588, %v1812
        %v1845 = vadd.f32 %v1589, %v1813
        %v1846 = vadd.f32 %v1590, %v1814
        %v1847 = vadd.f32 %v1591, %v1815
        %v1848 = vadd.f32 %v1592, %v1816
        %v1849 = vadd.f32 %v1593, %v1817
        %v1850 = vadd.f32 %v1594, %v1818
        %v1851 = vadd.f32 %v1595, %v1819
        %v1852 = vadd.f32 %v1596, %v1820
        %v1853 = vadd.f32 %v1597, %v1821
        %v1854 = vadd.f32 %v1598, %v1822
        %v1855 = vadd.f32 %v1599, %v1823
        %v1856 = vadd.f32 %v1600, %v1824
        %v1857 = vadd.f32 %v1601, %v1825
        %v1858 = vadd.f32 %v1602, %v1826
        %v1859 = vadd.f32 %v1603, %v1827
        %v1860 = vadd.f32 %v1604, %v1828
        %v1861 = vadd.f32 %v1605, %v1829
        %v1862 = vadd.f32 %v1606, %v1830
        %v1863 = vadd.f32 %v1607, %v1831
        %v1864 = vadd.f32 %v1608, %v1832
        %v1865 = vadd.f32 %v1609, %v1833
        %v1866 = vadd.f32 %v1610, %v1834
        %v1867 = vadd.f32 %v1611, %v1835
        %v1868 = vadd.f32 %v1612, %v1836
        %v1869 = vadd.f32 %v1613, %v1837
        %v1870 = vld [vmem:[%s7] sm:$0x1]
        %v1872 = vperm.slane %v1870, 0
        %v1874 = vadd.f32 %v1838, %v1872
        %v1875 = vadd.f32 %v1839, %v1872
        %v1876 = vadd.f32 %v1840, %v1872
        %v1877 = vadd.f32 %v1841, %v1872
        %v1878 = vadd.f32 %v1842, %v1872
        %v1879 = vadd.f32 %v1843, %v1872
        %v1880 = vadd.f32 %v1844, %v1872
        %v1881 = vadd.f32 %v1845, %v1872
        %v1882 = vadd.f32 %v1846, %v1872
        %v1883 = vadd.f32 %v1847, %v1872
        %v1884 = vadd.f32 %v1848, %v1872
        %v1885 = vadd.f32 %v1849, %v1872
        %v1886 = vadd.f32 %v1850, %v1872
        %v1887 = vadd.f32 %v1851, %v1872
        %v1888 = vadd.f32 %v1852, %v1872
        %v1889 = vadd.f32 %v1853, %v1872
        %v1890 = vadd.f32 %v1854, %v1872
        %v1891 = vadd.f32 %v1855, %v1872
        %v1892 = vadd.f32 %v1856, %v1872
        %v1893 = vadd.f32 %v1857, %v1872
        %v1894 = vadd.f32 %v1858, %v1872
        %v1895 = vadd.f32 %v1859, %v1872
        %v1896 = vadd.f32 %v1860, %v1872
        %v1897 = vadd.f32 %v1861, %v1872
        %v1898 = vadd.f32 %v1862, %v1872
        %v1899 = vadd.f32 %v1863, %v1872
        %v1900 = vadd.f32 %v1864, %v1872
        %v1901 = vadd.f32 %v1865, %v1872
        %v1902 = vadd.f32 %v1866, %v1872
        %v1903 = vadd.f32 %v1867, %v1872
        %v1904 = vadd.f32 %v1868, %v1872
        %v1905 = vadd.f32 %v1869, %v1872
        %v1906 = vadd.f32 %v638, %v1874
        %v1907 = vadd.f32 %v640, %v1875
        %v1908 = vadd.f32 %v643, %v1876
        %v1909 = vadd.f32 %v645, %v1877
        %v1910 = vadd.f32 %v648, %v1878
        %v1911 = vadd.f32 %v650, %v1879
        %v1912 = vadd.f32 %v653, %v1880
        %v1913 = vadd.f32 %v655, %v1881
        %v1914 = vadd.f32 %v658, %v1882
        %v1915 = vadd.f32 %v660, %v1883
        %v1916 = vadd.f32 %v663, %v1884
        %v1917 = vadd.f32 %v665, %v1885
        %v1918 = vadd.f32 %v668, %v1886
        %v1919 = vadd.f32 %v670, %v1887
        %v1920 = vadd.f32 %v673, %v1888
        %v1921 = vadd.f32 %v675, %v1889
        %v1922 = vadd.f32 %v678, %v1890
        %v1923 = vadd.f32 %v680, %v1891
        %v1924 = vadd.f32 %v683, %v1892
        %v1925 = vadd.f32 %v685, %v1893
        %v1926 = vadd.f32 %v688, %v1894
        %v1927 = vadd.f32 %v690, %v1895
        %v1928 = vadd.f32 %v693, %v1896
        %v1929 = vadd.f32 %v695, %v1897
        %v1930 = vadd.f32 %v698, %v1898
        %v1931 = vadd.f32 %v700, %v1899
        %v1932 = vadd.f32 %v703, %v1900
        %v1933 = vadd.f32 %v705, %v1901
        %v1934 = vadd.f32 %v708, %v1902
        %v1935 = vadd.f32 %v710, %v1903
        %v1936 = vadd.f32 %v713, %v1904
        %v1937 = vadd.f32 %v715, %v1905
        %v1938 = vand.u32 2147483647, %v1906
        %v1939 = vand.u32 2147483647, %v1907
        %v1940 = vand.u32 2147483647, %v1908
        %v1941 = vand.u32 2147483647, %v1909
        %v1942 = vand.u32 2147483647, %v1910
        %v1943 = vand.u32 2147483647, %v1911
        %v1944 = vand.u32 2147483647, %v1912
        %v1945 = vand.u32 2147483647, %v1913
        %v1946 = vand.u32 2147483647, %v1914
        %v1947 = vand.u32 2147483647, %v1915
        %v1948 = vand.u32 2147483647, %v1916
        %v1949 = vand.u32 2147483647, %v1917
        %v1950 = vand.u32 2147483647, %v1918
        %v1951 = vand.u32 2147483647, %v1919
        %v1952 = vand.u32 2147483647, %v1920
        %v1953 = vand.u32 2147483647, %v1921
        %v1954 = vand.u32 2147483647, %v1922
        %v1955 = vand.u32 2147483647, %v1923
        %v1956 = vand.u32 2147483647, %v1924
        %v1957 = vand.u32 2147483647, %v1925
        %v1958 = vand.u32 2147483647, %v1926
        %v1959 = vand.u32 2147483647, %v1927
        %v1960 = vand.u32 2147483647, %v1928
        %v1961 = vand.u32 2147483647, %v1929
        %v1962 = vand.u32 2147483647, %v1930
        %v1963 = vand.u32 2147483647, %v1931
        %v1964 = vand.u32 2147483647, %v1932
        %v1965 = vand.u32 2147483647, %v1933
        %v1966 = vand.u32 2147483647, %v1934
        %v1967 = vand.u32 2147483647, %v1935
        %v1968 = vand.u32 2147483647, %v1936
        %v1969 = vand.u32 2147483647, %v1937
        %v1970 = vmul.f32 %v1938, 0.70710677
        %v1971 = vmul.f32 %v1939, 0.70710677
        %v1972 = vmul.f32 %v1940, 0.70710677
        %v1973 = vmul.f32 %v1941, 0.70710677
        %v1974 = vmul.f32 %v1942, 0.70710677
        %v1975 = vmul.f32 %v1943, 0.70710677
        %v1976 = vmul.f32 %v1944, 0.70710677
        %v1977 = vmul.f32 %v1945, 0.70710677
        %v1978 = vmul.f32 %v1946, 0.70710677
        %v1979 = vmul.f32 %v1947, 0.70710677
        %v1980 = vmul.f32 %v1948, 0.70710677
        %v1981 = vmul.f32 %v1949, 0.70710677
        %v1982 = vmul.f32 %v1950, 0.70710677
        %v1983 = vmul.f32 %v1951, 0.70710677
        %v1984 = vmul.f32 %v1952, 0.70710677
        %v1985 = vmul.f32 %v1953, 0.70710677
        %v1986 = vmul.f32 %v1954, 0.70710677
        %v1987 = vmul.f32 %v1955, 0.70710677
        %v1988 = vmul.f32 %v1956, 0.70710677
        %v1989 = vmul.f32 %v1957, 0.70710677
        %v1990 = vmul.f32 %v1958, 0.70710677
        %v1991 = vmul.f32 %v1959, 0.70710677
        %v1992 = vmul.f32 %v1960, 0.70710677
        %v1993 = vmul.f32 %v1961, 0.70710677
        %v1994 = vmul.f32 %v1962, 0.70710677
        %v1995 = vmul.f32 %v1963, 0.70710677
        %v1996 = vmul.f32 %v1964, 0.70710677
        %v1997 = vmul.f32 %v1965, 0.70710677
        %v1998 = vmul.f32 %v1966, 0.70710677
        %v1999 = vmul.f32 %v1967, 0.70710677
        %v2000 = vmul.f32 %v1968, 0.70710677
        %v2001 = vmul.f32 %v1969, 0.70710677
        %v2002 = vmul.f32 %v1970, 0.3275911
        %v2003 = vmul.f32 %v1971, 0.3275911
        %v2004 = vmul.f32 %v1972, 0.3275911
        %v2005 = vmul.f32 %v1973, 0.3275911
        %v2006 = vmul.f32 %v1974, 0.3275911
        %v2007 = vmul.f32 %v1975, 0.3275911
        %v2008 = vmul.f32 %v1976, 0.3275911
        %v2009 = vmul.f32 %v1977, 0.3275911
        %v2010 = vmul.f32 %v1978, 0.3275911
        %v2011 = vmul.f32 %v1979, 0.3275911
        %v2012 = vmul.f32 %v1980, 0.3275911
        %v2013 = vmul.f32 %v1981, 0.3275911
        %v2014 = vmul.f32 %v1982, 0.3275911
        %v2015 = vmul.f32 %v1983, 0.3275911
        %v2016 = vmul.f32 %v1984, 0.3275911
        %v2017 = vmul.f32 %v1985, 0.3275911
        %v2018 = vmul.f32 %v1986, 0.3275911
        %v2019 = vmul.f32 %v1987, 0.3275911
        %v2020 = vmul.f32 %v1988, 0.3275911
        %v2021 = vmul.f32 %v1989, 0.3275911
        %v2022 = vmul.f32 %v1990, 0.3275911
        %v2023 = vmul.f32 %v1991, 0.3275911
        %v2024 = vmul.f32 %v1992, 0.3275911
        %v2025 = vmul.f32 %v1993, 0.3275911
        %v2026 = vmul.f32 %v1994, 0.3275911
        %v2027 = vmul.f32 %v1995, 0.3275911
        %v2028 = vmul.f32 %v1996, 0.3275911
        %v2029 = vmul.f32 %v1997, 0.3275911
        %v2030 = vmul.f32 %v1998, 0.3275911
        %v2031 = vmul.f32 %v1999, 0.3275911
        %v2032 = vmul.f32 %v2000, 0.3275911
        %v2033 = vmul.f32 %v2001, 0.3275911
        %v2034 = vadd.f32 %v2002, 1.0
        %v2035 = vadd.f32 %v2003, 1.0
        %v2036 = vadd.f32 %v2004, 1.0
        %v2037 = vadd.f32 %v2005, 1.0
        %v2038 = vadd.f32 %v2006, 1.0
        %v2039 = vadd.f32 %v2007, 1.0
        %v2040 = vadd.f32 %v2008, 1.0
        %v2041 = vadd.f32 %v2009, 1.0
        %v2042 = vadd.f32 %v2010, 1.0
        %v2043 = vadd.f32 %v2011, 1.0
        %v2044 = vadd.f32 %v2012, 1.0
        %v2045 = vadd.f32 %v2013, 1.0
        %v2046 = vadd.f32 %v2014, 1.0
        %v2047 = vadd.f32 %v2015, 1.0
        %v2048 = vadd.f32 %v2016, 1.0
        %v2049 = vadd.f32 %v2017, 1.0
        %v2050 = vadd.f32 %v2018, 1.0
        %v2051 = vadd.f32 %v2019, 1.0
        %v2052 = vadd.f32 %v2020, 1.0
        %v2053 = vadd.f32 %v2021, 1.0
        %v2054 = vadd.f32 %v2022, 1.0
        %v2055 = vadd.f32 %v2023, 1.0
        %v2056 = vadd.f32 %v2024, 1.0
        %v2057 = vadd.f32 %v2025, 1.0
        %v2058 = vadd.f32 %v2026, 1.0
        %v2059 = vadd.f32 %v2027, 1.0
        %v2060 = vadd.f32 %v2028, 1.0
        %v2061 = vadd.f32 %v2029, 1.0
        %v2062 = vadd.f32 %v2030, 1.0
        %v2063 = vadd.f32 %v2031, 1.0
        %v2064 = vadd.f32 %v2032, 1.0
        %v2065 = vadd.f32 %v2033, 1.0
        %v2066 = vrcp.pop %v2034
        %v2067 = vmul.f32 %v2034, %v2066
        %v2068 = vsub.f32 1.0, %v2067
        %v2069 = vmul.f32 %v2066, %v2068
        %v2070 = vadd.f32 %v2066, %v2069
        %vm2071 = vweird.f32 %v2034
        %vm2072 = vweird.f32 %v2066
        %vm2073 = vmor %vm2071, %vm2072
        %v2074 = vsel %vm2073, %v2066, %v2070
        %v2075 = vand.u32 2147483647, %v2034
        %vm2076 = vcmp.eq.f32.partialorder %v2075, 8.507059e+37
        %v2077 = vand.u32 %v2034, 2147483648
        %v2078 = vor.u32 1.1754944e-38, %v2077
        %v2079 = vsel %vm2076, %v2078, %v2074
        %v2080 = vmul.f32 1.0, %v2079
        %v2081 = vrcp.pop %v2035
        %v2082 = vmul.f32 %v2035, %v2081
        %v2083 = vsub.f32 1.0, %v2082
        %v2084 = vmul.f32 %v2081, %v2083
        %v2085 = vadd.f32 %v2081, %v2084
        %vm2086 = vweird.f32 %v2035
        %vm2087 = vweird.f32 %v2081
        %vm2088 = vmor %vm2086, %vm2087
        %v2089 = vsel %vm2088, %v2081, %v2085
        %v2090 = vand.u32 2147483647, %v2035
        %vm2091 = vcmp.eq.f32.partialorder %v2090, 8.507059e+37
        %v2092 = vand.u32 %v2035, 2147483648
        %v2093 = vor.u32 1.1754944e-38, %v2092
        %v2094 = vsel %vm2091, %v2093, %v2089
        %v2095 = vmul.f32 1.0, %v2094
        %v2096 = vrcp.pop %v2036
        %v2097 = vmul.f32 %v2036, %v2096
        %v2098 = vsub.f32 1.0, %v2097
        %v2099 = vmul.f32 %v2096, %v2098
        %v2100 = vadd.f32 %v2096, %v2099
        %vm2101 = vweird.f32 %v2036
        %vm2102 = vweird.f32 %v2096
        %vm2103 = vmor %vm2101, %vm2102
        %v2104 = vsel %vm2103, %v2096, %v2100
        %v2105 = vand.u32 2147483647, %v2036
        %vm2106 = vcmp.eq.f32.partialorder %v2105, 8.507059e+37
        %v2107 = vand.u32 %v2036, 2147483648
        %v2108 = vor.u32 1.1754944e-38, %v2107
        %v2109 = vsel %vm2106, %v2108, %v2104
        %v2110 = vmul.f32 1.0, %v2109
        %v2111 = vrcp.pop %v2037
        %v2112 = vmul.f32 %v2037, %v2111
        %v2113 = vsub.f32 1.0, %v2112
        %v2114 = vmul.f32 %v2111, %v2113
        %v2115 = vadd.f32 %v2111, %v2114
        %vm2116 = vweird.f32 %v2037
        %vm2117 = vweird.f32 %v2111
        %vm2118 = vmor %vm2116, %vm2117
        %v2119 = vsel %vm2118, %v2111, %v2115
        %v2120 = vand.u32 2147483647, %v2037
        %vm2121 = vcmp.eq.f32.partialorder %v2120, 8.507059e+37
        %v2122 = vand.u32 %v2037, 2147483648
        %v2123 = vor.u32 1.1754944e-38, %v2122
        %v2124 = vsel %vm2121, %v2123, %v2119
        %v2125 = vmul.f32 1.0, %v2124
        %v2126 = vrcp.pop %v2038
        %v2127 = vmul.f32 %v2038, %v2126
        %v2128 = vsub.f32 1.0, %v2127
        %v2129 = vmul.f32 %v2126, %v2128
        %v2130 = vadd.f32 %v2126, %v2129
        %vm2131 = vweird.f32 %v2038
        %vm2132 = vweird.f32 %v2126
        %vm2133 = vmor %vm2131, %vm2132
        %v2134 = vsel %vm2133, %v2126, %v2130
        %v2135 = vand.u32 2147483647, %v2038
        %vm2136 = vcmp.eq.f32.partialorder %v2135, 8.507059e+37
        %v2137 = vand.u32 %v2038, 2147483648
        %v2138 = vor.u32 1.1754944e-38, %v2137
        %v2139 = vsel %vm2136, %v2138, %v2134
        %v2140 = vmul.f32 1.0, %v2139
        %v2141 = vrcp.pop %v2039
        %v2142 = vmul.f32 %v2039, %v2141
        %v2143 = vsub.f32 1.0, %v2142
        %v2144 = vmul.f32 %v2141, %v2143
        %v2145 = vadd.f32 %v2141, %v2144
        %vm2146 = vweird.f32 %v2039
        %vm2147 = vweird.f32 %v2141
        %vm2148 = vmor %vm2146, %vm2147
        %v2149 = vsel %vm2148, %v2141, %v2145
        %v2150 = vand.u32 2147483647, %v2039
        %vm2151 = vcmp.eq.f32.partialorder %v2150, 8.507059e+37
        %v2152 = vand.u32 %v2039, 2147483648
        %v2153 = vor.u32 1.1754944e-38, %v2152
        %v2154 = vsel %vm2151, %v2153, %v2149
        %v2155 = vmul.f32 1.0, %v2154
        %v2156 = vrcp.pop %v2040
        %v2157 = vmul.f32 %v2040, %v2156
        %v2158 = vsub.f32 1.0, %v2157
        %v2159 = vmul.f32 %v2156, %v2158
        %v2160 = vadd.f32 %v2156, %v2159
        %vm2161 = vweird.f32 %v2040
        %vm2162 = vweird.f32 %v2156
        %vm2163 = vmor %vm2161, %vm2162
        %v2164 = vsel %vm2163, %v2156, %v2160
        %v2165 = vand.u32 2147483647, %v2040
        %vm2166 = vcmp.eq.f32.partialorder %v2165, 8.507059e+37
        %v2167 = vand.u32 %v2040, 2147483648
        %v2168 = vor.u32 1.1754944e-38, %v2167
        %v2169 = vsel %vm2166, %v2168, %v2164
        %v2170 = vmul.f32 1.0, %v2169
        %v2171 = vrcp.pop %v2041
        %v2172 = vmul.f32 %v2041, %v2171
        %v2173 = vsub.f32 1.0, %v2172
        %v2174 = vmul.f32 %v2171, %v2173
        %v2175 = vadd.f32 %v2171, %v2174
        %vm2176 = vweird.f32 %v2041
        %vm2177 = vweird.f32 %v2171
        %vm2178 = vmor %vm2176, %vm2177
        %v2179 = vsel %vm2178, %v2171, %v2175
        %v2180 = vand.u32 2147483647, %v2041
        %vm2181 = vcmp.eq.f32.partialorder %v2180, 8.507059e+37
        %v2182 = vand.u32 %v2041, 2147483648
        %v2183 = vor.u32 1.1754944e-38, %v2182
        %v2184 = vsel %vm2181, %v2183, %v2179
        %v2185 = vmul.f32 1.0, %v2184
        %v2186 = vrcp.pop %v2042
        %v2187 = vmul.f32 %v2042, %v2186
        %v2188 = vsub.f32 1.0, %v2187
        %v2189 = vmul.f32 %v2186, %v2188
        %v2190 = vadd.f32 %v2186, %v2189
        %vm2191 = vweird.f32 %v2042
        %vm2192 = vweird.f32 %v2186
        %vm2193 = vmor %vm2191, %vm2192
        %v2194 = vsel %vm2193, %v2186, %v2190
        %v2195 = vand.u32 2147483647, %v2042
        %vm2196 = vcmp.eq.f32.partialorder %v2195, 8.507059e+37
        %v2197 = vand.u32 %v2042, 2147483648
        %v2198 = vor.u32 1.1754944e-38, %v2197
        %v2199 = vsel %vm2196, %v2198, %v2194
        %v2200 = vmul.f32 1.0, %v2199
        %v2201 = vrcp.pop %v2043
        %v2202 = vmul.f32 %v2043, %v2201
        %v2203 = vsub.f32 1.0, %v2202
        %v2204 = vmul.f32 %v2201, %v2203
        %v2205 = vadd.f32 %v2201, %v2204
        %vm2206 = vweird.f32 %v2043
        %vm2207 = vweird.f32 %v2201
        %vm2208 = vmor %vm2206, %vm2207
        %v2209 = vsel %vm2208, %v2201, %v2205
        %v2210 = vand.u32 2147483647, %v2043
        %vm2211 = vcmp.eq.f32.partialorder %v2210, 8.507059e+37
        %v2212 = vand.u32 %v2043, 2147483648
        %v2213 = vor.u32 1.1754944e-38, %v2212
        %v2214 = vsel %vm2211, %v2213, %v2209
        %v2215 = vmul.f32 1.0, %v2214
        %v2216 = vrcp.pop %v2044
        %v2217 = vmul.f32 %v2044, %v2216
        %v2218 = vsub.f32 1.0, %v2217
        %v2219 = vmul.f32 %v2216, %v2218
        %v2220 = vadd.f32 %v2216, %v2219
        %vm2221 = vweird.f32 %v2044
        %vm2222 = vweird.f32 %v2216
        %vm2223 = vmor %vm2221, %vm2222
        %v2224 = vsel %vm2223, %v2216, %v2220
        %v2225 = vand.u32 2147483647, %v2044
        %vm2226 = vcmp.eq.f32.partialorder %v2225, 8.507059e+37
        %v2227 = vand.u32 %v2044, 2147483648
        %v2228 = vor.u32 1.1754944e-38, %v2227
        %v2229 = vsel %vm2226, %v2228, %v2224
        %v2230 = vmul.f32 1.0, %v2229
        %v2231 = vrcp.pop %v2045
        %v2232 = vmul.f32 %v2045, %v2231
        %v2233 = vsub.f32 1.0, %v2232
        %v2234 = vmul.f32 %v2231, %v2233
        %v2235 = vadd.f32 %v2231, %v2234
        %vm2236 = vweird.f32 %v2045
        %vm2237 = vweird.f32 %v2231
        %vm2238 = vmor %vm2236, %vm2237
        %v2239 = vsel %vm2238, %v2231, %v2235
        %v2240 = vand.u32 2147483647, %v2045
        %vm2241 = vcmp.eq.f32.partialorder %v2240, 8.507059e+37
        %v2242 = vand.u32 %v2045, 2147483648
        %v2243 = vor.u32 1.1754944e-38, %v2242
        %v2244 = vsel %vm2241, %v2243, %v2239
        %v2245 = vmul.f32 1.0, %v2244
        %v2246 = vrcp.pop %v2046
        %v2247 = vmul.f32 %v2046, %v2246
        %v2248 = vsub.f32 1.0, %v2247
        %v2249 = vmul.f32 %v2246, %v2248
        %v2250 = vadd.f32 %v2246, %v2249
        %vm2251 = vweird.f32 %v2046
        %vm2252 = vweird.f32 %v2246
        %vm2253 = vmor %vm2251, %vm2252
        %v2254 = vsel %vm2253, %v2246, %v2250
        %v2255 = vand.u32 2147483647, %v2046
        %vm2256 = vcmp.eq.f32.partialorder %v2255, 8.507059e+37
        %v2257 = vand.u32 %v2046, 2147483648
        %v2258 = vor.u32 1.1754944e-38, %v2257
        %v2259 = vsel %vm2256, %v2258, %v2254
        %v2260 = vmul.f32 1.0, %v2259
        %v2261 = vrcp.pop %v2047
        %v2262 = vmul.f32 %v2047, %v2261
        %v2263 = vsub.f32 1.0, %v2262
        %v2264 = vmul.f32 %v2261, %v2263
        %v2265 = vadd.f32 %v2261, %v2264
        %vm2266 = vweird.f32 %v2047
        %vm2267 = vweird.f32 %v2261
        %vm2268 = vmor %vm2266, %vm2267
        %v2269 = vsel %vm2268, %v2261, %v2265
        %v2270 = vand.u32 2147483647, %v2047
        %vm2271 = vcmp.eq.f32.partialorder %v2270, 8.507059e+37
        %v2272 = vand.u32 %v2047, 2147483648
        %v2273 = vor.u32 1.1754944e-38, %v2272
        %v2274 = vsel %vm2271, %v2273, %v2269
        %v2275 = vmul.f32 1.0, %v2274
        %v2276 = vrcp.pop %v2048
        %v2277 = vmul.f32 %v2048, %v2276
        %v2278 = vsub.f32 1.0, %v2277
        %v2279 = vmul.f32 %v2276, %v2278
        %v2280 = vadd.f32 %v2276, %v2279
        %vm2281 = vweird.f32 %v2048
        %vm2282 = vweird.f32 %v2276
        %vm2283 = vmor %vm2281, %vm2282
        %v2284 = vsel %vm2283, %v2276, %v2280
        %v2285 = vand.u32 2147483647, %v2048
        %vm2286 = vcmp.eq.f32.partialorder %v2285, 8.507059e+37
        %v2287 = vand.u32 %v2048, 2147483648
        %v2288 = vor.u32 1.1754944e-38, %v2287
        %v2289 = vsel %vm2286, %v2288, %v2284
        %v2290 = vmul.f32 1.0, %v2289
        %v2291 = vrcp.pop %v2049
        %v2292 = vmul.f32 %v2049, %v2291
        %v2293 = vsub.f32 1.0, %v2292
        %v2294 = vmul.f32 %v2291, %v2293
        %v2295 = vadd.f32 %v2291, %v2294
        %vm2296 = vweird.f32 %v2049
        %vm2297 = vweird.f32 %v2291
        %vm2298 = vmor %vm2296, %vm2297
        %v2299 = vsel %vm2298, %v2291, %v2295
        %v2300 = vand.u32 2147483647, %v2049
        %vm2301 = vcmp.eq.f32.partialorder %v2300, 8.507059e+37
        %v2302 = vand.u32 %v2049, 2147483648
        %v2303 = vor.u32 1.1754944e-38, %v2302
        %v2304 = vsel %vm2301, %v2303, %v2299
        %v2305 = vmul.f32 1.0, %v2304
        %v2306 = vrcp.pop %v2050
        %v2307 = vmul.f32 %v2050, %v2306
        %v2308 = vsub.f32 1.0, %v2307
        %v2309 = vmul.f32 %v2306, %v2308
        %v2310 = vadd.f32 %v2306, %v2309
        %vm2311 = vweird.f32 %v2050
        %vm2312 = vweird.f32 %v2306
        %vm2313 = vmor %vm2311, %vm2312
        %v2314 = vsel %vm2313, %v2306, %v2310
        %v2315 = vand.u32 2147483647, %v2050
        %vm2316 = vcmp.eq.f32.partialorder %v2315, 8.507059e+37
        %v2317 = vand.u32 %v2050, 2147483648
        %v2318 = vor.u32 1.1754944e-38, %v2317
        %v2319 = vsel %vm2316, %v2318, %v2314
        %v2320 = vmul.f32 1.0, %v2319
        %v2321 = vrcp.pop %v2051
        %v2322 = vmul.f32 %v2051, %v2321
        %v2323 = vsub.f32 1.0, %v2322
        %v2324 = vmul.f32 %v2321, %v2323
        %v2325 = vadd.f32 %v2321, %v2324
        %vm2326 = vweird.f32 %v2051
        %vm2327 = vweird.f32 %v2321
        %vm2328 = vmor %vm2326, %vm2327
        %v2329 = vsel %vm2328, %v2321, %v2325
        %v2330 = vand.u32 2147483647, %v2051
        %vm2331 = vcmp.eq.f32.partialorder %v2330, 8.507059e+37
        %v2332 = vand.u32 %v2051, 2147483648
        %v2333 = vor.u32 1.1754944e-38, %v2332
        %v2334 = vsel %vm2331, %v2333, %v2329
        %v2335 = vmul.f32 1.0, %v2334
        %v2336 = vrcp.pop %v2052
        %v2337 = vmul.f32 %v2052, %v2336
        %v2338 = vsub.f32 1.0, %v2337
        %v2339 = vmul.f32 %v2336, %v2338
        %v2340 = vadd.f32 %v2336, %v2339
        %vm2341 = vweird.f32 %v2052
        %vm2342 = vweird.f32 %v2336
        %vm2343 = vmor %vm2341, %vm2342
        %v2344 = vsel %vm2343, %v2336, %v2340
        %v2345 = vand.u32 2147483647, %v2052
        %vm2346 = vcmp.eq.f32.partialorder %v2345, 8.507059e+37
        %v2347 = vand.u32 %v2052, 2147483648
        %v2348 = vor.u32 1.1754944e-38, %v2347
        %v2349 = vsel %vm2346, %v2348, %v2344
        %v2350 = vmul.f32 1.0, %v2349
        %v2351 = vrcp.pop %v2053
        %v2352 = vmul.f32 %v2053, %v2351
        %v2353 = vsub.f32 1.0, %v2352
        %v2354 = vmul.f32 %v2351, %v2353
        %v2355 = vadd.f32 %v2351, %v2354
        %vm2356 = vweird.f32 %v2053
        %vm2357 = vweird.f32 %v2351
        %vm2358 = vmor %vm2356, %vm2357
        %v2359 = vsel %vm2358, %v2351, %v2355
        %v2360 = vand.u32 2147483647, %v2053
        %vm2361 = vcmp.eq.f32.partialorder %v2360, 8.507059e+37
        %v2362 = vand.u32 %v2053, 2147483648
        %v2363 = vor.u32 1.1754944e-38, %v2362
        %v2364 = vsel %vm2361, %v2363, %v2359
        %v2365 = vmul.f32 1.0, %v2364
        %v2366 = vrcp.pop %v2054
        %v2367 = vmul.f32 %v2054, %v2366
        %v2368 = vsub.f32 1.0, %v2367
        %v2369 = vmul.f32 %v2366, %v2368
        %v2370 = vadd.f32 %v2366, %v2369
        %vm2371 = vweird.f32 %v2054
        %vm2372 = vweird.f32 %v2366
        %vm2373 = vmor %vm2371, %vm2372
        %v2374 = vsel %vm2373, %v2366, %v2370
        %v2375 = vand.u32 2147483647, %v2054
        %vm2376 = vcmp.eq.f32.partialorder %v2375, 8.507059e+37
        %v2377 = vand.u32 %v2054, 2147483648
        %v2378 = vor.u32 1.1754944e-38, %v2377
        %v2379 = vsel %vm2376, %v2378, %v2374
        %v2380 = vmul.f32 1.0, %v2379
        %v2381 = vrcp.pop %v2055
        %v2382 = vmul.f32 %v2055, %v2381
        %v2383 = vsub.f32 1.0, %v2382
        %v2384 = vmul.f32 %v2381, %v2383
        %v2385 = vadd.f32 %v2381, %v2384
        %vm2386 = vweird.f32 %v2055
        %vm2387 = vweird.f32 %v2381
        %vm2388 = vmor %vm2386, %vm2387
        %v2389 = vsel %vm2388, %v2381, %v2385
        %v2390 = vand.u32 2147483647, %v2055
        %vm2391 = vcmp.eq.f32.partialorder %v2390, 8.507059e+37
        %v2392 = vand.u32 %v2055, 2147483648
        %v2393 = vor.u32 1.1754944e-38, %v2392
        %v2394 = vsel %vm2391, %v2393, %v2389
        %v2395 = vmul.f32 1.0, %v2394
        %v2396 = vrcp.pop %v2056
        %v2397 = vmul.f32 %v2056, %v2396
        %v2398 = vsub.f32 1.0, %v2397
        %v2399 = vmul.f32 %v2396, %v2398
        %v2400 = vadd.f32 %v2396, %v2399
        %vm2401 = vweird.f32 %v2056
        %vm2402 = vweird.f32 %v2396
        %vm2403 = vmor %vm2401, %vm2402
        %v2404 = vsel %vm2403, %v2396, %v2400
        %v2405 = vand.u32 2147483647, %v2056
        %vm2406 = vcmp.eq.f32.partialorder %v2405, 8.507059e+37
        %v2407 = vand.u32 %v2056, 2147483648
        %v2408 = vor.u32 1.1754944e-38, %v2407
        %v2409 = vsel %vm2406, %v2408, %v2404
        %v2410 = vmul.f32 1.0, %v2409
        %v2411 = vrcp.pop %v2057
        %v2412 = vmul.f32 %v2057, %v2411
        %v2413 = vsub.f32 1.0, %v2412
        %v2414 = vmul.f32 %v2411, %v2413
        %v2415 = vadd.f32 %v2411, %v2414
        %vm2416 = vweird.f32 %v2057
        %vm2417 = vweird.f32 %v2411
        %vm2418 = vmor %vm2416, %vm2417
        %v2419 = vsel %vm2418, %v2411, %v2415
        %v2420 = vand.u32 2147483647, %v2057
        %vm2421 = vcmp.eq.f32.partialorder %v2420, 8.507059e+37
        %v2422 = vand.u32 %v2057, 2147483648
        %v2423 = vor.u32 1.1754944e-38, %v2422
        %v2424 = vsel %vm2421, %v2423, %v2419
        %v2425 = vmul.f32 1.0, %v2424
        %v2426 = vrcp.pop %v2058
        %v2427 = vmul.f32 %v2058, %v2426
        %v2428 = vsub.f32 1.0, %v2427
        %v2429 = vmul.f32 %v2426, %v2428
        %v2430 = vadd.f32 %v2426, %v2429
        %vm2431 = vweird.f32 %v2058
        %vm2432 = vweird.f32 %v2426
        %vm2433 = vmor %vm2431, %vm2432
        %v2434 = vsel %vm2433, %v2426, %v2430
        %v2435 = vand.u32 2147483647, %v2058
        %vm2436 = vcmp.eq.f32.partialorder %v2435, 8.507059e+37
        %v2437 = vand.u32 %v2058, 2147483648
        %v2438 = vor.u32 1.1754944e-38, %v2437
        %v2439 = vsel %vm2436, %v2438, %v2434
        %v2440 = vmul.f32 1.0, %v2439
        %v2441 = vrcp.pop %v2059
        %v2442 = vmul.f32 %v2059, %v2441
        %v2443 = vsub.f32 1.0, %v2442
        %v2444 = vmul.f32 %v2441, %v2443
        %v2445 = vadd.f32 %v2441, %v2444
        %vm2446 = vweird.f32 %v2059
        %vm2447 = vweird.f32 %v2441
        %vm2448 = vmor %vm2446, %vm2447
        %v2449 = vsel %vm2448, %v2441, %v2445
        %v2450 = vand.u32 2147483647, %v2059
        %vm2451 = vcmp.eq.f32.partialorder %v2450, 8.507059e+37
        %v2452 = vand.u32 %v2059, 2147483648
        %v2453 = vor.u32 1.1754944e-38, %v2452
        %v2454 = vsel %vm2451, %v2453, %v2449
        %v2455 = vmul.f32 1.0, %v2454
        %v2456 = vrcp.pop %v2060
        %v2457 = vmul.f32 %v2060, %v2456
        %v2458 = vsub.f32 1.0, %v2457
        %v2459 = vmul.f32 %v2456, %v2458
        %v2460 = vadd.f32 %v2456, %v2459
        %vm2461 = vweird.f32 %v2060
        %vm2462 = vweird.f32 %v2456
        %vm2463 = vmor %vm2461, %vm2462
        %v2464 = vsel %vm2463, %v2456, %v2460
        %v2465 = vand.u32 2147483647, %v2060
        %vm2466 = vcmp.eq.f32.partialorder %v2465, 8.507059e+37
        %v2467 = vand.u32 %v2060, 2147483648
        %v2468 = vor.u32 1.1754944e-38, %v2467
        %v2469 = vsel %vm2466, %v2468, %v2464
        %v2470 = vmul.f32 1.0, %v2469
        %v2471 = vrcp.pop %v2061
        %v2472 = vmul.f32 %v2061, %v2471
        %v2473 = vsub.f32 1.0, %v2472
        %v2474 = vmul.f32 %v2471, %v2473
        %v2475 = vadd.f32 %v2471, %v2474
        %vm2476 = vweird.f32 %v2061
        %vm2477 = vweird.f32 %v2471
        %vm2478 = vmor %vm2476, %vm2477
        %v2479 = vsel %vm2478, %v2471, %v2475
        %v2480 = vand.u32 2147483647, %v2061
        %vm2481 = vcmp.eq.f32.partialorder %v2480, 8.507059e+37
        %v2482 = vand.u32 %v2061, 2147483648
        %v2483 = vor.u32 1.1754944e-38, %v2482
        %v2484 = vsel %vm2481, %v2483, %v2479
        %v2485 = vmul.f32 1.0, %v2484
        %v2486 = vrcp.pop %v2062
        %v2487 = vmul.f32 %v2062, %v2486
        %v2488 = vsub.f32 1.0, %v2487
        %v2489 = vmul.f32 %v2486, %v2488
        %v2490 = vadd.f32 %v2486, %v2489
        %vm2491 = vweird.f32 %v2062
        %vm2492 = vweird.f32 %v2486
        %vm2493 = vmor %vm2491, %vm2492
        %v2494 = vsel %vm2493, %v2486, %v2490
        %v2495 = vand.u32 2147483647, %v2062
        %vm2496 = vcmp.eq.f32.partialorder %v2495, 8.507059e+37
        %v2497 = vand.u32 %v2062, 2147483648
        %v2498 = vor.u32 1.1754944e-38, %v2497
        %v2499 = vsel %vm2496, %v2498, %v2494
        %v2500 = vmul.f32 1.0, %v2499
        %v2501 = vrcp.pop %v2063
        %v2502 = vmul.f32 %v2063, %v2501
        %v2503 = vsub.f32 1.0, %v2502
        %v2504 = vmul.f32 %v2501, %v2503
        %v2505 = vadd.f32 %v2501, %v2504
        %vm2506 = vweird.f32 %v2063
        %vm2507 = vweird.f32 %v2501
        %vm2508 = vmor %vm2506, %vm2507
        %v2509 = vsel %vm2508, %v2501, %v2505
        %v2510 = vand.u32 2147483647, %v2063
        %vm2511 = vcmp.eq.f32.partialorder %v2510, 8.507059e+37
        %v2512 = vand.u32 %v2063, 2147483648
        %v2513 = vor.u32 1.1754944e-38, %v2512
        %v2514 = vsel %vm2511, %v2513, %v2509
        %v2515 = vmul.f32 1.0, %v2514
        %v2516 = vrcp.pop %v2064
        %v2517 = vmul.f32 %v2064, %v2516
        %v2518 = vsub.f32 1.0, %v2517
        %v2519 = vmul.f32 %v2516, %v2518
        %v2520 = vadd.f32 %v2516, %v2519
        %vm2521 = vweird.f32 %v2064
        %vm2522 = vweird.f32 %v2516
        %vm2523 = vmor %vm2521, %vm2522
        %v2524 = vsel %vm2523, %v2516, %v2520
        %v2525 = vand.u32 2147483647, %v2064
        %vm2526 = vcmp.eq.f32.partialorder %v2525, 8.507059e+37
        %v2527 = vand.u32 %v2064, 2147483648
        %v2528 = vor.u32 1.1754944e-38, %v2527
        %v2529 = vsel %vm2526, %v2528, %v2524
        %v2530 = vmul.f32 1.0, %v2529
        %v2531 = vrcp.pop %v2065
        %v2532 = vmul.f32 %v2065, %v2531
        %v2533 = vsub.f32 1.0, %v2532
        %v2534 = vmul.f32 %v2531, %v2533
        %v2535 = vadd.f32 %v2531, %v2534
        %vm2536 = vweird.f32 %v2065
        %vm2537 = vweird.f32 %v2531
        %vm2538 = vmor %vm2536, %vm2537
        %v2539 = vsel %vm2538, %v2531, %v2535
        %v2540 = vand.u32 2147483647, %v2065
        %vm2541 = vcmp.eq.f32.partialorder %v2540, 8.507059e+37
        %v2542 = vand.u32 %v2065, 2147483648
        %v2543 = vor.u32 1.1754944e-38, %v2542
        %v2544 = vsel %vm2541, %v2543, %v2539
        %v2545 = vmul.f32 1.0, %v2544
        %v2546 = vmul.f32 %v2080, 1.0614054
        %v2547 = vmul.f32 %v2095, 1.0614054
        %v2548 = vmul.f32 %v2110, 1.0614054
        %v2549 = vmul.f32 %v2125, 1.0614054
        %v2550 = vmul.f32 %v2140, 1.0614054
        %v2551 = vmul.f32 %v2155, 1.0614054
        %v2552 = vmul.f32 %v2170, 1.0614054
        %v2553 = vmul.f32 %v2185, 1.0614054
        %v2554 = vmul.f32 %v2200, 1.0614054
        %v2555 = vmul.f32 %v2215, 1.0614054
        %v2556 = vmul.f32 %v2230, 1.0614054
        %v2557 = vmul.f32 %v2245, 1.0614054
        %v2558 = vmul.f32 %v2260, 1.0614054
        %v2559 = vmul.f32 %v2275, 1.0614054
        %v2560 = vmul.f32 %v2290, 1.0614054
        %v2561 = vmul.f32 %v2305, 1.0614054
        %v2562 = vmul.f32 %v2320, 1.0614054
        %v2563 = vmul.f32 %v2335, 1.0614054
        %v2564 = vmul.f32 %v2350, 1.0614054
        %v2565 = vmul.f32 %v2365, 1.0614054
        %v2566 = vmul.f32 %v2380, 1.0614054
        %v2567 = vmul.f32 %v2395, 1.0614054
        %v2568 = vmul.f32 %v2410, 1.0614054
        %v2569 = vmul.f32 %v2425, 1.0614054
        %v2570 = vmul.f32 %v2440, 1.0614054
        %v2571 = vmul.f32 %v2455, 1.0614054
        %v2572 = vmul.f32 %v2470, 1.0614054
        %v2573 = vmul.f32 %v2485, 1.0614054
        %v2574 = vmul.f32 %v2500, 1.0614054
        %v2575 = vmul.f32 %v2515, 1.0614054
        %v2576 = vmul.f32 %v2530, 1.0614054
        %v2577 = vmul.f32 %v2545, 1.0614054
        %v2578 = vadd.f32 %v2546, -1.4531521
        %v2579 = vadd.f32 %v2547, -1.4531521
        %v2580 = vadd.f32 %v2548, -1.4531521
        %v2581 = vadd.f32 %v2549, -1.4531521
        %v2582 = vadd.f32 %v2550, -1.4531521
        %v2583 = vadd.f32 %v2551, -1.4531521
        %v2584 = vadd.f32 %v2552, -1.4531521
        %v2585 = vadd.f32 %v2553, -1.4531521
        %v2586 = vadd.f32 %v2554, -1.4531521
        %v2587 = vadd.f32 %v2555, -1.4531521
        %v2588 = vadd.f32 %v2556, -1.4531521
        %v2589 = vadd.f32 %v2557, -1.4531521
        %v2590 = vadd.f32 %v2558, -1.4531521
        %v2591 = vadd.f32 %v2559, -1.4531521
        %v2592 = vadd.f32 %v2560, -1.4531521
        %v2593 = vadd.f32 %v2561, -1.4531521
        %v2594 = vadd.f32 %v2562, -1.4531521
        %v2595 = vadd.f32 %v2563, -1.4531521
        %v2596 = vadd.f32 %v2564, -1.4531521
        %v2597 = vadd.f32 %v2565, -1.4531521
        %v2598 = vadd.f32 %v2566, -1.4531521
        %v2599 = vadd.f32 %v2567, -1.4531521
        %v2600 = vadd.f32 %v2568, -1.4531521
        %v2601 = vadd.f32 %v2569, -1.4531521
        %v2602 = vadd.f32 %v2570, -1.4531521
        %v2603 = vadd.f32 %v2571, -1.4531521
        %v2604 = vadd.f32 %v2572, -1.4531521
        %v2605 = vadd.f32 %v2573, -1.4531521
        %v2606 = vadd.f32 %v2574, -1.4531521
        %v2607 = vadd.f32 %v2575, -1.4531521
        %v2608 = vadd.f32 %v2576, -1.4531521
        %v2609 = vadd.f32 %v2577, -1.4531521
        %v2610 = vmul.f32 %v2080, %v2578
        %v2611 = vmul.f32 %v2095, %v2579
        %v2612 = vmul.f32 %v2110, %v2580
        %v2613 = vmul.f32 %v2125, %v2581
        %v2614 = vmul.f32 %v2140, %v2582
        %v2615 = vmul.f32 %v2155, %v2583
        %v2616 = vmul.f32 %v2170, %v2584
        %v2617 = vmul.f32 %v2185, %v2585
        %v2618 = vmul.f32 %v2200, %v2586
        %v2619 = vmul.f32 %v2215, %v2587
        %v2620 = vmul.f32 %v2230, %v2588
        %v2621 = vmul.f32 %v2245, %v2589
        %v2622 = vmul.f32 %v2260, %v2590
        %v2623 = vmul.f32 %v2275, %v2591
        %v2624 = vmul.f32 %v2290, %v2592
        %v2625 = vmul.f32 %v2305, %v2593
        %v2626 = vmul.f32 %v2320, %v2594
        %v2627 = vmul.f32 %v2335, %v2595
        %v2628 = vmul.f32 %v2350, %v2596
        %v2629 = vmul.f32 %v2365, %v2597
        %v2630 = vmul.f32 %v2380, %v2598
        %v2631 = vmul.f32 %v2395, %v2599
        %v2632 = vmul.f32 %v2410, %v2600
        %v2633 = vmul.f32 %v2425, %v2601
        %v2634 = vmul.f32 %v2440, %v2602
        %v2635 = vmul.f32 %v2455, %v2603
        %v2636 = vmul.f32 %v2470, %v2604
        %v2637 = vmul.f32 %v2485, %v2605
        %v2638 = vmul.f32 %v2500, %v2606
        %v2639 = vmul.f32 %v2515, %v2607
        %v2640 = vmul.f32 %v2530, %v2608
        %v2641 = vmul.f32 %v2545, %v2609
        %v2642 = vadd.f32 %v2610, 1.4214138
        %v2643 = vadd.f32 %v2611, 1.4214138
        %v2644 = vadd.f32 %v2612, 1.4214138
        %v2645 = vadd.f32 %v2613, 1.4214138
        %v2646 = vadd.f32 %v2614, 1.4214138
        %v2647 = vadd.f32 %v2615, 1.4214138
        %v2648 = vadd.f32 %v2616, 1.4214138
        %v2649 = vadd.f32 %v2617, 1.4214138
        %v2650 = vadd.f32 %v2618, 1.4214138
        %v2651 = vadd.f32 %v2619, 1.4214138
        %v2652 = vadd.f32 %v2620, 1.4214138
        %v2653 = vadd.f32 %v2621, 1.4214138
        %v2654 = vadd.f32 %v2622, 1.4214138
        %v2655 = vadd.f32 %v2623, 1.4214138
        %v2656 = vadd.f32 %v2624, 1.4214138
        %v2657 = vadd.f32 %v2625, 1.4214138
        %v2658 = vadd.f32 %v2626, 1.4214138
        %v2659 = vadd.f32 %v2627, 1.4214138
        %v2660 = vadd.f32 %v2628, 1.4214138
        %v2661 = vadd.f32 %v2629, 1.4214138
        %v2662 = vadd.f32 %v2630, 1.4214138
        %v2663 = vadd.f32 %v2631, 1.4214138
        %v2664 = vadd.f32 %v2632, 1.4214138
        %v2665 = vadd.f32 %v2633, 1.4214138
        %v2666 = vadd.f32 %v2634, 1.4214138
        %v2667 = vadd.f32 %v2635, 1.4214138
        %v2668 = vadd.f32 %v2636, 1.4214138
        %v2669 = vadd.f32 %v2637, 1.4214138
        %v2670 = vadd.f32 %v2638, 1.4214138
        %v2671 = vadd.f32 %v2639, 1.4214138
        %v2672 = vadd.f32 %v2640, 1.4214138
        %v2673 = vadd.f32 %v2641, 1.4214138
        %v2674 = vmul.f32 %v2080, %v2642
        %v2675 = vmul.f32 %v2095, %v2643
        %v2676 = vmul.f32 %v2110, %v2644
        %v2677 = vmul.f32 %v2125, %v2645
        %v2678 = vmul.f32 %v2140, %v2646
        %v2679 = vmul.f32 %v2155, %v2647
        %v2680 = vmul.f32 %v2170, %v2648
        %v2681 = vmul.f32 %v2185, %v2649
        %v2682 = vmul.f32 %v2200, %v2650
        %v2683 = vmul.f32 %v2215, %v2651
        %v2684 = vmul.f32 %v2230, %v2652
        %v2685 = vmul.f32 %v2245, %v2653
        %v2686 = vmul.f32 %v2260, %v2654
        %v2687 = vmul.f32 %v2275, %v2655
        %v2688 = vmul.f32 %v2290, %v2656
        %v2689 = vmul.f32 %v2305, %v2657
        %v2690 = vmul.f32 %v2320, %v2658
        %v2691 = vmul.f32 %v2335, %v2659
        %v2692 = vmul.f32 %v2350, %v2660
        %v2693 = vmul.f32 %v2365, %v2661
        %v2694 = vmul.f32 %v2380, %v2662
        %v2695 = vmul.f32 %v2395, %v2663
        %v2696 = vmul.f32 %v2410, %v2664
        %v2697 = vmul.f32 %v2425, %v2665
        %v2698 = vmul.f32 %v2440, %v2666
        %v2699 = vmul.f32 %v2455, %v2667
        %v2700 = vmul.f32 %v2470, %v2668
        %v2701 = vmul.f32 %v2485, %v2669
        %v2702 = vmul.f32 %v2500, %v2670
        %v2703 = vmul.f32 %v2515, %v2671
        %v2704 = vmul.f32 %v2530, %v2672
        %v2705 = vmul.f32 %v2545, %v2673
        %v2706 = vadd.f32 %v2674, -0.28449672
        %v2707 = vadd.f32 %v2675, -0.28449672
        %v2708 = vadd.f32 %v2676, -0.28449672
        %v2709 = vadd.f32 %v2677, -0.28449672
        %v2710 = vadd.f32 %v2678, -0.28449672
        %v2711 = vadd.f32 %v2679, -0.28449672
        %v2712 = vadd.f32 %v2680, -0.28449672
        %v2713 = vadd.f32 %v2681, -0.28449672
        %v2714 = vadd.f32 %v2682, -0.28449672
        %v2715 = vadd.f32 %v2683, -0.28449672
        %v2716 = vadd.f32 %v2684, -0.28449672
        %v2717 = vadd.f32 %v2685, -0.28449672
        %v2718 = vadd.f32 %v2686, -0.28449672
        %v2719 = vadd.f32 %v2687, -0.28449672
        %v2720 = vadd.f32 %v2688, -0.28449672
        %v2721 = vadd.f32 %v2689, -0.28449672
        %v2722 = vadd.f32 %v2690, -0.28449672
        %v2723 = vadd.f32 %v2691, -0.28449672
        %v2724 = vadd.f32 %v2692, -0.28449672
        %v2725 = vadd.f32 %v2693, -0.28449672
        %v2726 = vadd.f32 %v2694, -0.28449672
        %v2727 = vadd.f32 %v2695, -0.28449672
        %v2728 = vadd.f32 %v2696, -0.28449672
        %v2729 = vadd.f32 %v2697, -0.28449672
        %v2730 = vadd.f32 %v2698, -0.28449672
        %v2731 = vadd.f32 %v2699, -0.28449672
        %v2732 = vadd.f32 %v2700, -0.28449672
        %v2733 = vadd.f32 %v2701, -0.28449672
        %v2734 = vadd.f32 %v2702, -0.28449672
        %v2735 = vadd.f32 %v2703, -0.28449672
        %v2736 = vadd.f32 %v2704, -0.28449672
        %v2737 = vadd.f32 %v2705, -0.28449672
        %v2738 = vmul.f32 %v2080, %v2706
        %v2739 = vmul.f32 %v2095, %v2707
        %v2740 = vmul.f32 %v2110, %v2708
        %v2741 = vmul.f32 %v2125, %v2709
        %v2742 = vmul.f32 %v2140, %v2710
        %v2743 = vmul.f32 %v2155, %v2711
        %v2744 = vmul.f32 %v2170, %v2712
        %v2745 = vmul.f32 %v2185, %v2713
        %v2746 = vmul.f32 %v2200, %v2714
        %v2747 = vmul.f32 %v2215, %v2715
        %v2748 = vmul.f32 %v2230, %v2716
        %v2749 = vmul.f32 %v2245, %v2717
        %v2750 = vmul.f32 %v2260, %v2718
        %v2751 = vmul.f32 %v2275, %v2719
        %v2752 = vmul.f32 %v2290, %v2720
        %v2753 = vmul.f32 %v2305, %v2721
        %v2754 = vmul.f32 %v2320, %v2722
        %v2755 = vmul.f32 %v2335, %v2723
        %v2756 = vmul.f32 %v2350, %v2724
        %v2757 = vmul.f32 %v2365, %v2725
        %v2758 = vmul.f32 %v2380, %v2726
        %v2759 = vmul.f32 %v2395, %v2727
        %v2760 = vmul.f32 %v2410, %v2728
        %v2761 = vmul.f32 %v2425, %v2729
        %v2762 = vmul.f32 %v2440, %v2730
        %v2763 = vmul.f32 %v2455, %v2731
        %v2764 = vmul.f32 %v2470, %v2732
        %v2765 = vmul.f32 %v2485, %v2733
        %v2766 = vmul.f32 %v2500, %v2734
        %v2767 = vmul.f32 %v2515, %v2735
        %v2768 = vmul.f32 %v2530, %v2736
        %v2769 = vmul.f32 %v2545, %v2737
        %v2770 = vadd.f32 %v2738, 0.2548296
        %v2771 = vadd.f32 %v2739, 0.2548296
        %v2772 = vadd.f32 %v2740, 0.2548296
        %v2773 = vadd.f32 %v2741, 0.2548296
        %v2774 = vadd.f32 %v2742, 0.2548296
        %v2775 = vadd.f32 %v2743, 0.2548296
        %v2776 = vadd.f32 %v2744, 0.2548296
        %v2777 = vadd.f32 %v2745, 0.2548296
        %v2778 = vadd.f32 %v2746, 0.2548296
        %v2779 = vadd.f32 %v2747, 0.2548296
        %v2780 = vadd.f32 %v2748, 0.2548296
        %v2781 = vadd.f32 %v2749, 0.2548296
        %v2782 = vadd.f32 %v2750, 0.2548296
        %v2783 = vadd.f32 %v2751, 0.2548296
        %v2784 = vadd.f32 %v2752, 0.2548296
        %v2785 = vadd.f32 %v2753, 0.2548296
        %v2786 = vadd.f32 %v2754, 0.2548296
        %v2787 = vadd.f32 %v2755, 0.2548296
        %v2788 = vadd.f32 %v2756, 0.2548296
        %v2789 = vadd.f32 %v2757, 0.2548296
        %v2790 = vadd.f32 %v2758, 0.2548296
        %v2791 = vadd.f32 %v2759, 0.2548296
        %v2792 = vadd.f32 %v2760, 0.2548296
        %v2793 = vadd.f32 %v2761, 0.2548296
        %v2794 = vadd.f32 %v2762, 0.2548296
        %v2795 = vadd.f32 %v2763, 0.2548296
        %v2796 = vadd.f32 %v2764, 0.2548296
        %v2797 = vadd.f32 %v2765, 0.2548296
        %v2798 = vadd.f32 %v2766, 0.2548296
        %v2799 = vadd.f32 %v2767, 0.2548296
        %v2800 = vadd.f32 %v2768, 0.2548296
        %v2801 = vadd.f32 %v2769, 0.2548296
        %v2802 = vmul.f32 %v2080, %v2770
        %v2803 = vmul.f32 %v2095, %v2771
        %v2804 = vmul.f32 %v2110, %v2772
        %v2805 = vmul.f32 %v2125, %v2773
        %v2806 = vmul.f32 %v2140, %v2774
        %v2807 = vmul.f32 %v2155, %v2775
        %v2808 = vmul.f32 %v2170, %v2776
        %v2809 = vmul.f32 %v2185, %v2777
        %v2810 = vmul.f32 %v2200, %v2778
        %v2811 = vmul.f32 %v2215, %v2779
        %v2812 = vmul.f32 %v2230, %v2780
        %v2813 = vmul.f32 %v2245, %v2781
        %v2814 = vmul.f32 %v2260, %v2782
        %v2815 = vmul.f32 %v2275, %v2783
        %v2816 = vmul.f32 %v2290, %v2784
        %v2817 = vmul.f32 %v2305, %v2785
        %v2818 = vmul.f32 %v2320, %v2786
        %v2819 = vmul.f32 %v2335, %v2787
        %v2820 = vmul.f32 %v2350, %v2788
        %v2821 = vmul.f32 %v2365, %v2789
        %v2822 = vmul.f32 %v2380, %v2790
        %v2823 = vmul.f32 %v2395, %v2791
        %v2824 = vmul.f32 %v2410, %v2792
        %v2825 = vmul.f32 %v2425, %v2793
        %v2826 = vmul.f32 %v2440, %v2794
        %v2827 = vmul.f32 %v2455, %v2795
        %v2828 = vmul.f32 %v2470, %v2796
        %v2829 = vmul.f32 %v2485, %v2797
        %v2830 = vmul.f32 %v2500, %v2798
        %v2831 = vmul.f32 %v2515, %v2799
        %v2832 = vmul.f32 %v2530, %v2800
        %v2833 = vmul.f32 %v2545, %v2801
        %v2834 = vsub.f32 0.0, %v1970
        %v2835 = vsub.f32 0.0, %v1971
        %v2836 = vsub.f32 0.0, %v1972
        %v2837 = vsub.f32 0.0, %v1973
        %v2838 = vsub.f32 0.0, %v1974
        %v2839 = vsub.f32 0.0, %v1975
        %v2840 = vsub.f32 0.0, %v1976
        %v2841 = vsub.f32 0.0, %v1977
        %v2842 = vsub.f32 0.0, %v1978
        %v2843 = vsub.f32 0.0, %v1979
        %v2844 = vsub.f32 0.0, %v1980
        %v2845 = vsub.f32 0.0, %v1981
        %v2846 = vsub.f32 0.0, %v1982
        %v2847 = vsub.f32 0.0, %v1983
        %v2848 = vsub.f32 0.0, %v1984
        %v2849 = vsub.f32 0.0, %v1985
        %v2850 = vsub.f32 0.0, %v1986
        %v2851 = vsub.f32 0.0, %v1987
        %v2852 = vsub.f32 0.0, %v1988
        %v2853 = vsub.f32 0.0, %v1989
        %v2854 = vsub.f32 0.0, %v1990
        %v2855 = vsub.f32 0.0, %v1991
        %v2856 = vsub.f32 0.0, %v1992
        %v2857 = vsub.f32 0.0, %v1993
        %v2858 = vsub.f32 0.0, %v1994
        %v2859 = vsub.f32 0.0, %v1995
        %v2860 = vsub.f32 0.0, %v1996
        %v2861 = vsub.f32 0.0, %v1997
        %v2862 = vsub.f32 0.0, %v1998
        %v2863 = vsub.f32 0.0, %v1999
        %v2864 = vsub.f32 0.0, %v2000
        %v2865 = vsub.f32 0.0, %v2001
        %v2866 = vmul.f32 %v2834, %v1970
        %v2867 = vmul.f32 %v2835, %v1971
        %v2868 = vmul.f32 %v2836, %v1972
        %v2869 = vmul.f32 %v2837, %v1973
        %v2870 = vmul.f32 %v2838, %v1974
        %v2871 = vmul.f32 %v2839, %v1975
        %v2872 = vmul.f32 %v2840, %v1976
        %v2873 = vmul.f32 %v2841, %v1977
        %v2874 = vmul.f32 %v2842, %v1978
        %v2875 = vmul.f32 %v2843, %v1979
        %v2876 = vmul.f32 %v2844, %v1980
        %v2877 = vmul.f32 %v2845, %v1981
        %v2878 = vmul.f32 %v2846, %v1982
        %v2879 = vmul.f32 %v2847, %v1983
        %v2880 = vmul.f32 %v2848, %v1984
        %v2881 = vmul.f32 %v2849, %v1985
        %v2882 = vmul.f32 %v2850, %v1986
        %v2883 = vmul.f32 %v2851, %v1987
        %v2884 = vmul.f32 %v2852, %v1988
        %v2885 = vmul.f32 %v2853, %v1989
        %v2886 = vmul.f32 %v2854, %v1990
        %v2887 = vmul.f32 %v2855, %v1991
        %v2888 = vmul.f32 %v2856, %v1992
        %v2889 = vmul.f32 %v2857, %v1993
        %v2890 = vmul.f32 %v2858, %v1994
        %v2891 = vmul.f32 %v2859, %v1995
        %v2892 = vmul.f32 %v2860, %v1996
        %v2893 = vmul.f32 %v2861, %v1997
        %v2894 = vmul.f32 %v2862, %v1998
        %v2895 = vmul.f32 %v2863, %v1999
        %v2896 = vmul.f32 %v2864, %v2000
        %v2897 = vmul.f32 %v2865, %v2001
        %v2898 = vmul.f32 %v2866, 1.442695
        %v2899 = vpow.pop %v2898
        %v2900 = vmul.f32 %v2867, 1.442695
        %v2901 = vpow.pop %v2900
        %v2902 = vmul.f32 %v2868, 1.442695
        %v2903 = vpow.pop %v2902
        %v2904 = vmul.f32 %v2869, 1.442695
        %v2905 = vpow.pop %v2904
        %v2906 = vmul.f32 %v2870, 1.442695
        %v2907 = vpow.pop %v2906
        %v2908 = vmul.f32 %v2871, 1.442695
        %v2909 = vpow.pop %v2908
        %v2910 = vmul.f32 %v2872, 1.442695
        %v2911 = vpow.pop %v2910
        %v2912 = vmul.f32 %v2873, 1.442695
        %v2913 = vpow.pop %v2912
        %v2914 = vmul.f32 %v2874, 1.442695
        %v2915 = vpow.pop %v2914
        %v2916 = vmul.f32 %v2875, 1.442695
        %v2917 = vpow.pop %v2916
        %v2918 = vmul.f32 %v2876, 1.442695
        %v2919 = vpow.pop %v2918
        %v2920 = vmul.f32 %v2877, 1.442695
        %v2921 = vpow.pop %v2920
        %v2922 = vmul.f32 %v2878, 1.442695
        %v2923 = vpow.pop %v2922
        %v2924 = vmul.f32 %v2879, 1.442695
        %v2925 = vpow.pop %v2924
        %v2926 = vmul.f32 %v2880, 1.442695
        %v2927 = vpow.pop %v2926
        %v2928 = vmul.f32 %v2881, 1.442695
        %v2929 = vpow.pop %v2928
        %v2930 = vmul.f32 %v2882, 1.442695
        %v2931 = vpow.pop %v2930
        %v2932 = vmul.f32 %v2883, 1.442695
        %v2933 = vpow.pop %v2932
        %v2934 = vmul.f32 %v2884, 1.442695
        %v2935 = vpow.pop %v2934
        %v2936 = vmul.f32 %v2885, 1.442695
        %v2937 = vpow.pop %v2936
        %v2938 = vmul.f32 %v2886, 1.442695
        %v2939 = vpow.pop %v2938
        %v2940 = vmul.f32 %v2887, 1.442695
        %v2941 = vpow.pop %v2940
        %v2942 = vmul.f32 %v2888, 1.442695
        %v2943 = vpow.pop %v2942
        %v2944 = vmul.f32 %v2889, 1.442695
        %v2945 = vpow.pop %v2944
        %v2946 = vmul.f32 %v2890, 1.442695
        %v2947 = vpow.pop %v2946
        %v2948 = vmul.f32 %v2891, 1.442695
        %v2949 = vpow.pop %v2948
        %v2950 = vmul.f32 %v2892, 1.442695
        %v2951 = vpow.pop %v2950
        %v2952 = vmul.f32 %v2893, 1.442695
        %v2953 = vpow.pop %v2952
        %v2954 = vmul.f32 %v2894, 1.442695
        %v2955 = vpow.pop %v2954
        %v2956 = vmul.f32 %v2895, 1.442695
        %v2957 = vpow.pop %v2956
        %v2958 = vmul.f32 %v2896, 1.442695
        %v2959 = vpow.pop %v2958
        %v2960 = vmul.f32 %v2897, 1.442695
        %v2961 = vpow.pop %v2960
        %v2962 = vmul.f32 %v2802, %v2899
        %v2963 = vmul.f32 %v2803, %v2901
        %v2964 = vmul.f32 %v2804, %v2903
        %v2965 = vmul.f32 %v2805, %v2905
        %v2966 = vmul.f32 %v2806, %v2907
        %v2967 = vmul.f32 %v2807, %v2909
        %v2968 = vmul.f32 %v2808, %v2911
        %v2969 = vmul.f32 %v2809, %v2913
        %v2970 = vmul.f32 %v2810, %v2915
        %v2971 = vmul.f32 %v2811, %v2917
        %v2972 = vmul.f32 %v2812, %v2919
        %v2973 = vmul.f32 %v2813, %v2921
        %v2974 = vmul.f32 %v2814, %v2923
        %v2975 = vmul.f32 %v2815, %v2925
        %v2976 = vmul.f32 %v2816, %v2927
        %v2977 = vmul.f32 %v2817, %v2929
        %v2978 = vmul.f32 %v2818, %v2931
        %v2979 = vmul.f32 %v2819, %v2933
        %v2980 = vmul.f32 %v2820, %v2935
        %v2981 = vmul.f32 %v2821, %v2937
        %v2982 = vmul.f32 %v2822, %v2939
        %v2983 = vmul.f32 %v2823, %v2941
        %v2984 = vmul.f32 %v2824, %v2943
        %v2985 = vmul.f32 %v2825, %v2945
        %v2986 = vmul.f32 %v2826, %v2947
        %v2987 = vmul.f32 %v2827, %v2949
        %v2988 = vmul.f32 %v2828, %v2951
        %v2989 = vmul.f32 %v2829, %v2953
        %v2990 = vmul.f32 %v2830, %v2955
        %v2991 = vmul.f32 %v2831, %v2957
        %v2992 = vmul.f32 %v2832, %v2959
        %v2993 = vmul.f32 %v2833, %v2961
        %v2994 = vsub.f32 1.0, %v2962
        %v2995 = vsub.f32 1.0, %v2963
        %v2996 = vsub.f32 1.0, %v2964
        %v2997 = vsub.f32 1.0, %v2965
        %v2998 = vsub.f32 1.0, %v2966
        %v2999 = vsub.f32 1.0, %v2967
        %v3000 = vsub.f32 1.0, %v2968
        %v3001 = vsub.f32 1.0, %v2969
        %v3002 = vsub.f32 1.0, %v2970
        %v3003 = vsub.f32 1.0, %v2971
        %v3004 = vsub.f32 1.0, %v2972
        %v3005 = vsub.f32 1.0, %v2973
        %v3006 = vsub.f32 1.0, %v2974
        %v3007 = vsub.f32 1.0, %v2975
        %v3008 = vsub.f32 1.0, %v2976
        %v3009 = vsub.f32 1.0, %v2977
        %v3010 = vsub.f32 1.0, %v2978
        %v3011 = vsub.f32 1.0, %v2979
        %v3012 = vsub.f32 1.0, %v2980
        %v3013 = vsub.f32 1.0, %v2981
        %v3014 = vsub.f32 1.0, %v2982
        %v3015 = vsub.f32 1.0, %v2983
        %v3016 = vsub.f32 1.0, %v2984
        %v3017 = vsub.f32 1.0, %v2985
        %v3018 = vsub.f32 1.0, %v2986
        %v3019 = vsub.f32 1.0, %v2987
        %v3020 = vsub.f32 1.0, %v2988
        %v3021 = vsub.f32 1.0, %v2989
        %v3022 = vsub.f32 1.0, %v2990
        %v3023 = vsub.f32 1.0, %v2991
        %v3024 = vsub.f32 1.0, %v2992
        %v3025 = vsub.f32 1.0, %v2993
        %vm3026 = vcmp.ge.f32.partialorder %v1906, 0.0
        %vm3027 = vcmp.ge.f32.partialorder %v1907, 0.0
        %vm3028 = vcmp.ge.f32.partialorder %v1908, 0.0
        %vm3029 = vcmp.ge.f32.partialorder %v1909, 0.0
        %vm3030 = vcmp.ge.f32.partialorder %v1910, 0.0
        %vm3031 = vcmp.ge.f32.partialorder %v1911, 0.0
        %vm3032 = vcmp.ge.f32.partialorder %v1912, 0.0
        %vm3033 = vcmp.ge.f32.partialorder %v1913, 0.0
        %vm3034 = vcmp.ge.f32.partialorder %v1914, 0.0
        %vm3035 = vcmp.ge.f32.partialorder %v1915, 0.0
        %vm3036 = vcmp.ge.f32.partialorder %v1916, 0.0
        %vm3037 = vcmp.ge.f32.partialorder %v1917, 0.0
        %vm3038 = vcmp.ge.f32.partialorder %v1918, 0.0
        %vm3039 = vcmp.ge.f32.partialorder %v1919, 0.0
        %vm3040 = vcmp.ge.f32.partialorder %v1920, 0.0
        %vm3041 = vcmp.ge.f32.partialorder %v1921, 0.0
        %vm3042 = vcmp.ge.f32.partialorder %v1922, 0.0
        %vm3043 = vcmp.ge.f32.partialorder %v1923, 0.0
        %vm3044 = vcmp.ge.f32.partialorder %v1924, 0.0
        %vm3045 = vcmp.ge.f32.partialorder %v1925, 0.0
        %vm3046 = vcmp.ge.f32.partialorder %v1926, 0.0
        %vm3047 = vcmp.ge.f32.partialorder %v1927, 0.0
        %vm3048 = vcmp.ge.f32.partialorder %v1928, 0.0
        %vm3049 = vcmp.ge.f32.partialorder %v1929, 0.0
        %vm3050 = vcmp.ge.f32.partialorder %v1930, 0.0
        %vm3051 = vcmp.ge.f32.partialorder %v1931, 0.0
        %vm3052 = vcmp.ge.f32.partialorder %v1932, 0.0
        %vm3053 = vcmp.ge.f32.partialorder %v1933, 0.0
        %vm3054 = vcmp.ge.f32.partialorder %v1934, 0.0
        %vm3055 = vcmp.ge.f32.partialorder %v1935, 0.0
        %vm3056 = vcmp.ge.f32.partialorder %v1936, 0.0
        %vm3057 = vcmp.ge.f32.partialorder %v1937, 0.0
        %v3058 = vsub.f32 0.0, %v2994
        %v3059 = vsub.f32 0.0, %v2995
        %v3060 = vsub.f32 0.0, %v2996
        %v3061 = vsub.f32 0.0, %v2997
        %v3062 = vsub.f32 0.0, %v2998
        %v3063 = vsub.f32 0.0, %v2999
        %v3064 = vsub.f32 0.0, %v3000
        %v3065 = vsub.f32 0.0, %v3001
        %v3066 = vsub.f32 0.0, %v3002
        %v3067 = vsub.f32 0.0, %v3003
        %v3068 = vsub.f32 0.0, %v3004
        %v3069 = vsub.f32 0.0, %v3005
        %v3070 = vsub.f32 0.0, %v3006
        %v3071 = vsub.f32 0.0, %v3007
        %v3072 = vsub.f32 0.0, %v3008
        %v3073 = vsub.f32 0.0, %v3009
        %v3074 = vsub.f32 0.0, %v3010
        %v3075 = vsub.f32 0.0, %v3011
        %v3076 = vsub.f32 0.0, %v3012
        %v3077 = vsub.f32 0.0, %v3013
        %v3078 = vsub.f32 0.0, %v3014
        %v3079 = vsub.f32 0.0, %v3015
        %v3080 = vsub.f32 0.0, %v3016
        %v3081 = vsub.f32 0.0, %v3017
        %v3082 = vsub.f32 0.0, %v3018
        %v3083 = vsub.f32 0.0, %v3019
        %v3084 = vsub.f32 0.0, %v3020
        %v3085 = vsub.f32 0.0, %v3021
        %v3086 = vsub.f32 0.0, %v3022
        %v3087 = vsub.f32 0.0, %v3023
        %v3088 = vsub.f32 0.0, %v3024
        %v3089 = vsub.f32 0.0, %v3025
        %v3090 = vsel %vm3026, %v2994, %v3058
        %v3091 = vsel %vm3027, %v2995, %v3059
        %v3092 = vsel %vm3028, %v2996, %v3060
        %v3093 = vsel %vm3029, %v2997, %v3061
        %v3094 = vsel %vm3030, %v2998, %v3062
        %v3095 = vsel %vm3031, %v2999, %v3063
        %v3096 = vsel %vm3032, %v3000, %v3064
        %v3097 = vsel %vm3033, %v3001, %v3065
        %v3098 = vsel %vm3034, %v3002, %v3066
        %v3099 = vsel %vm3035, %v3003, %v3067
        %v3100 = vsel %vm3036, %v3004, %v3068
        %v3101 = vsel %vm3037, %v3005, %v3069
        %v3102 = vsel %vm3038, %v3006, %v3070
        %v3103 = vsel %vm3039, %v3007, %v3071
        %v3104 = vsel %vm3040, %v3008, %v3072
        %v3105 = vsel %vm3041, %v3009, %v3073
        %v3106 = vsel %vm3042, %v3010, %v3074
        %v3107 = vsel %vm3043, %v3011, %v3075
        %v3108 = vsel %vm3044, %v3012, %v3076
        %v3109 = vsel %vm3045, %v3013, %v3077
        %v3110 = vsel %vm3046, %v3014, %v3078
        %v3111 = vsel %vm3047, %v3015, %v3079
        %v3112 = vsel %vm3048, %v3016, %v3080
        %v3113 = vsel %vm3049, %v3017, %v3081
        %v3114 = vsel %vm3050, %v3018, %v3082
        %v3115 = vsel %vm3051, %v3019, %v3083
        %v3116 = vsel %vm3052, %v3020, %v3084
        %v3117 = vsel %vm3053, %v3021, %v3085
        %v3118 = vsel %vm3054, %v3022, %v3086
        %v3119 = vsel %vm3055, %v3023, %v3087
        %v3120 = vsel %vm3056, %v3024, %v3088
        %v3121 = vsel %vm3057, %v3025, %v3089
        %v3122 = vmul.f32 %v1906, 0.5
        %v3123 = vmul.f32 %v1907, 0.5
        %v3124 = vmul.f32 %v1908, 0.5
        %v3125 = vmul.f32 %v1909, 0.5
        %v3126 = vmul.f32 %v1910, 0.5
        %v3127 = vmul.f32 %v1911, 0.5
        %v3128 = vmul.f32 %v1912, 0.5
        %v3129 = vmul.f32 %v1913, 0.5
        %v3130 = vmul.f32 %v1914, 0.5
        %v3131 = vmul.f32 %v1915, 0.5
        %v3132 = vmul.f32 %v1916, 0.5
        %v3133 = vmul.f32 %v1917, 0.5
        %v3134 = vmul.f32 %v1918, 0.5
        %v3135 = vmul.f32 %v1919, 0.5
        %v3136 = vmul.f32 %v1920, 0.5
        %v3137 = vmul.f32 %v1921, 0.5
        %v3138 = vmul.f32 %v1922, 0.5
        %v3139 = vmul.f32 %v1923, 0.5
        %v3140 = vmul.f32 %v1924, 0.5
        %v3141 = vmul.f32 %v1925, 0.5
        %v3142 = vmul.f32 %v1926, 0.5
        %v3143 = vmul.f32 %v1927, 0.5
        %v3144 = vmul.f32 %v1928, 0.5
        %v3145 = vmul.f32 %v1929, 0.5
        %v3146 = vmul.f32 %v1930, 0.5
        %v3147 = vmul.f32 %v1931, 0.5
        %v3148 = vmul.f32 %v1932, 0.5
        %v3149 = vmul.f32 %v1933, 0.5
        %v3150 = vmul.f32 %v1934, 0.5
        %v3151 = vmul.f32 %v1935, 0.5
        %v3152 = vmul.f32 %v1936, 0.5
        %v3153 = vmul.f32 %v1937, 0.5
        %v3154 = vadd.f32 %v3090, 1.0
        %v3155 = vadd.f32 %v3091, 1.0
        %v3156 = vadd.f32 %v3092, 1.0
        %v3157 = vadd.f32 %v3093, 1.0
        %v3158 = vadd.f32 %v3094, 1.0
        %v3159 = vadd.f32 %v3095, 1.0
        %v3160 = vadd.f32 %v3096, 1.0
        %v3161 = vadd.f32 %v3097, 1.0
        %v3162 = vadd.f32 %v3098, 1.0
        %v3163 = vadd.f32 %v3099, 1.0
        %v3164 = vadd.f32 %v3100, 1.0
        %v3165 = vadd.f32 %v3101, 1.0
        %v3166 = vadd.f32 %v3102, 1.0
        %v3167 = vadd.f32 %v3103, 1.0
        %v3168 = vadd.f32 %v3104, 1.0
        %v3169 = vadd.f32 %v3105, 1.0
        %v3170 = vadd.f32 %v3106, 1.0
        %v3171 = vadd.f32 %v3107, 1.0
        %v3172 = vadd.f32 %v3108, 1.0
        %v3173 = vadd.f32 %v3109, 1.0
        %v3174 = vadd.f32 %v3110, 1.0
        %v3175 = vadd.f32 %v3111, 1.0
        %v3176 = vadd.f32 %v3112, 1.0
        %v3177 = vadd.f32 %v3113, 1.0
        %v3178 = vadd.f32 %v3114, 1.0
        %v3179 = vadd.f32 %v3115, 1.0
        %v3180 = vadd.f32 %v3116, 1.0
        %v3181 = vadd.f32 %v3117, 1.0
        %v3182 = vadd.f32 %v3118, 1.0
        %v3183 = vadd.f32 %v3119, 1.0
        %v3184 = vadd.f32 %v3120, 1.0
        %v3185 = vadd.f32 %v3121, 1.0
        %v3186 = vmul.f32 %v3122, %v3154
        %v3187 = vmul.f32 %v3123, %v3155
        %v3188 = vmul.f32 %v3124, %v3156
        %v3189 = vmul.f32 %v3125, %v3157
        %v3190 = vmul.f32 %v3126, %v3158
        %v3191 = vmul.f32 %v3127, %v3159
        %v3192 = vmul.f32 %v3128, %v3160
        %v3193 = vmul.f32 %v3129, %v3161
        %v3194 = vmul.f32 %v3130, %v3162
        %v3195 = vmul.f32 %v3131, %v3163
        %v3196 = vmul.f32 %v3132, %v3164
        %v3197 = vmul.f32 %v3133, %v3165
        %v3198 = vmul.f32 %v3134, %v3166
        %v3199 = vmul.f32 %v3135, %v3167
        %v3200 = vmul.f32 %v3136, %v3168
        %v3201 = vmul.f32 %v3137, %v3169
        %v3202 = vmul.f32 %v3138, %v3170
        %v3203 = vmul.f32 %v3139, %v3171
        %v3204 = vmul.f32 %v3140, %v3172
        %v3205 = vmul.f32 %v3141, %v3173
        %v3206 = vmul.f32 %v3142, %v3174
        %v3207 = vmul.f32 %v3143, %v3175
        %v3208 = vmul.f32 %v3144, %v3176
        %v3209 = vmul.f32 %v3145, %v3177
        %v3210 = vmul.f32 %v3146, %v3178
        %v3211 = vmul.f32 %v3147, %v3179
        %v3212 = vmul.f32 %v3148, %v3180
        %v3213 = vmul.f32 %v3149, %v3181
        %v3214 = vmul.f32 %v3150, %v3182
        %v3215 = vmul.f32 %v3151, %v3183
        %v3216 = vmul.f32 %v3152, %v3184
        %v3217 = vmul.f32 %v3153, %v3185
        %v3218 = vld [vmem:[%s6] sm:$0x1]
        %v3220 = vperm.slane %v3218, 0
        %v3222 = vmul.f32 %v718, %v3220
        %v3223 = vadd.f32 %v718, %v3222
        %v3224 = vadd.f32 %v3223, %v1872
        %v3225 = vand.u32 2147483647, %v3224
        %v3226 = vmul.f32 %v3225, 0.70710677
        %v3227 = vmul.f32 %v3226, 0.3275911
        %v3228 = vadd.f32 %v3227, 1.0
        %v3229 = vrcp.pop %v3228
        %v3230 = vmul.f32 %v3228, %v3229
        %v3231 = vsub.f32 1.0, %v3230
        %v3232 = vmul.f32 %v3229, %v3231
        %v3233 = vadd.f32 %v3229, %v3232
        %vm3234 = vweird.f32 %v3228
        %vm3235 = vweird.f32 %v3229
        %vm3236 = vmor %vm3234, %vm3235
        %v3237 = vsel %vm3236, %v3229, %v3233
        %v3238 = vand.u32 2147483647, %v3228
        %vm3239 = vcmp.eq.f32.partialorder %v3238, 8.507059e+37
        %v3240 = vand.u32 %v3228, 2147483648
        %v3241 = vor.u32 1.1754944e-38, %v3240
        %v3242 = vsel %vm3239, %v3241, %v3237
        %v3243 = vmul.f32 1.0, %v3242
        %v3244 = vmul.f32 %v3243, 1.0614054
        %v3245 = vadd.f32 %v3244, -1.4531521
        %v3246 = vmul.f32 %v3243, %v3245
        %v3247 = vadd.f32 %v3246, 1.4214138
        %v3248 = vmul.f32 %v3243, %v3247
        %v3249 = vadd.f32 %v3248, -0.28449672
        %v3250 = vmul.f32 %v3243, %v3249
        %v3251 = vadd.f32 %v3250, 0.2548296
        %v3252 = vmul.f32 %v3243, %v3251
        %v3253 = vsub.f32 0.0, %v3226
        %v3254 = vmul.f32 %v3253, %v3226
        %v3255 = vmul.f32 %v3254, 1.442695
        %v3256 = vpow.pop %v3255
        %v3257 = vmul.f32 %v3252, %v3256
        %v3258 = vsub.f32 1.0, %v3257
        %vm3259 = vcmp.ge.f32.partialorder %v3224, 0.0
        %v3260 = vsub.f32 0.0, %v3258
        %v3261 = vsel %vm3259, %v3258, %v3260
        %v3262 = vmul.f32 %v3224, 0.5
        %v3263 = vadd.f32 %v3261, 1.0
        %v3264 = vmul.f32 %v3262, %v3263
        %v3265 = vpack.c.bf16 %v3187, %v3186
        %v3266 = vpack.c.bf16 %v3189, %v3188
        %v3267 = vpack.c.bf16 %v3191, %v3190
        %v3268 = vpack.c.bf16 %v3193, %v3192
        %v3269 = vpack.c.bf16 %v3195, %v3194
        %v3270 = vpack.c.bf16 %v3197, %v3196
        %v3271 = vpack.c.bf16 %v3199, %v3198
        %v3272 = vpack.c.bf16 %v3201, %v3200
        %v3273 = vpack.c.bf16 %v3203, %v3202
        %v3274 = vpack.c.bf16 %v3205, %v3204
        %v3275 = vpack.c.bf16 %v3207, %v3206
        %v3276 = vpack.c.bf16 %v3209, %v3208
        %v3277 = vpack.c.bf16 %v3211, %v3210
        %v3278 = vpack.c.bf16 %v3213, %v3212
        %v3279 = vpack.c.bf16 %v3215, %v3214
        %v3280 = vpack.c.bf16 %v3217, %v3216
        %v3281 = vpack.c.bf16 %v3264, %v3264
        %v3282 = vld [vmem:[%s10] sm:$0xf]
        %v3283 = vld [vmem:[%s10 + $0x4] sm:$0xf]
        %v3284 = vld [vmem:[%s10 + $0x8] sm:$0xf]
        %v3285 = vld [vmem:[%s10 + $0xc] sm:$0xf]
        %v3286 = vld [vmem:[%s10 + $0x10] sm:$0xf]
        %v3287 = vld [vmem:[%s10 + $0x14] sm:$0xf]
        %v3288 = vld [vmem:[%s10 + $0x18] sm:$0xf]
        %v3289 = vld [vmem:[%s10 + $0x1c] sm:$0xf]
        %v3290 = vld [vmem:[%s10 + $0x20] sm:$0xf]
        %v3291 = vld [vmem:[%s10 + $0x24] sm:$0xf]
        %v3292 = vld [vmem:[%s10 + $0x28] sm:$0xf]
        %v3293 = vld [vmem:[%s10 + $0x2c] sm:$0xf]
        %v3294 = vld [vmem:[%s10 + $0x30] sm:$0xf]
        %v3295 = vld [vmem:[%s10 + $0x34] sm:$0xf]
        %v3296 = vld [vmem:[%s10 + $0x38] sm:$0xf]
        %v3297 = vld [vmem:[%s10 + $0x3c] sm:$0xf]
        %v3298 = vld [vmem:[%s11] sm:$0x1]
        %v3300 = vperm.slane %v3298, 0
        %v3318 = vunpack.c.l.b16 %v3282
        %v3319 = vunpack.c.l.b16 %v3283
        %v3320 = vunpack.c.l.b16 %v3284
        %v3321 = vunpack.c.l.b16 %v3285
        %v3322 = vunpack.c.l.b16 %v3286
        %v3323 = vunpack.c.l.b16 %v3287
        %v3324 = vunpack.c.l.b16 %v3288
        %v3325 = vunpack.c.l.b16 %v3289
        %v3326 = vunpack.c.l.b16 %v3290
        %v3327 = vunpack.c.l.b16 %v3291
        %v3328 = vunpack.c.l.b16 %v3292
        %v3329 = vunpack.c.l.b16 %v3293
        %v3330 = vunpack.c.l.b16 %v3294
        %v3331 = vunpack.c.l.b16 %v3295
        %v3332 = vunpack.c.l.b16 %v3296
        %v3333 = vunpack.c.l.b16 %v3297
        %v3334 = vpack.c.b16 %v3319, %v3318
        %v3335 = vpack.c.b16 %v3321, %v3320
        %v3336 = vpack.c.b16 %v3323, %v3322
        %v3337 = vpack.c.b16 %v3325, %v3324
        %v3338 = vpack.c.b16 %v3327, %v3326
        %v3339 = vpack.c.b16 %v3329, %v3328
        %v3340 = vpack.c.b16 %v3331, %v3330
        %v3341 = vpack.c.b16 %v3333, %v3332
        %3350 = vmatpush.bf16.msra.mxu0 %v3341
        %3351 = vmatpush.bf16.msra.mxu0 %v3340
        %3352 = vmatpush.bf16.msra.mxu0 %v3339
        %3353 = vmatpush.bf16.msra.mxu0 %v3338
        %3354 = vmatpush.bf16.msra.mxu0 %v3337
        %3355 = vmatpush.bf16.msra.mxu0 %v3336
        %3356 = vmatpush.bf16.msra.mxu0 %v3335
        %3357 = vmatpush.bf16.msra.mxu0 %v3334
        %3358 = vmatmul.bf16.gmra.mxu0 %v3265
        %v3359 = vpop.f32.mrf.mxu0
        %v3360 = vadd.f32 %v3300, %v3359
        %v3361 = vpop.f32.mrf.mxu0
        %v3362 = vadd.f32 %v3300, %v3361
        %3363 = vmatmul.bf16.gmra.mxu0 %v3266
        %v3364 = vpop.f32.mrf.mxu0
        %v3365 = vadd.f32 %v3300, %v3364
        %v3366 = vpop.f32.mrf.mxu0
        %v3367 = vadd.f32 %v3300, %v3366
        %3368 = vmatmul.bf16.gmra.mxu0 %v3267
        %v3369 = vpop.f32.mrf.mxu0
        %v3370 = vadd.f32 %v3300, %v3369
        %v3371 = vpop.f32.mrf.mxu0
        %v3372 = vadd.f32 %v3300, %v3371
        %3373 = vmatmul.bf16.gmra.mxu0 %v3268
        %v3374 = vpop.f32.mrf.mxu0
        %v3375 = vadd.f32 %v3300, %v3374
        %v3376 = vpop.f32.mrf.mxu0
        %v3377 = vadd.f32 %v3300, %v3376
        %3378 = vmatmul.bf16.gmra.mxu0 %v3269
        %v3379 = vpop.f32.mrf.mxu0
        %v3380 = vadd.f32 %v3300, %v3379
        %v3381 = vpop.f32.mrf.mxu0
        %v3382 = vadd.f32 %v3300, %v3381
        %3383 = vmatmul.bf16.gmra.mxu0 %v3270
        %v3384 = vpop.f32.mrf.mxu0
        %v3385 = vadd.f32 %v3300, %v3384
        %v3386 = vpop.f32.mrf.mxu0
        %v3387 = vadd.f32 %v3300, %v3386
        %3388 = vmatmul.bf16.gmra.mxu0 %v3271
        %v3389 = vpop.f32.mrf.mxu0
        %v3390 = vadd.f32 %v3300, %v3389
        %v3391 = vpop.f32.mrf.mxu0
        %v3392 = vadd.f32 %v3300, %v3391
        %3393 = vmatmul.bf16.gmra.mxu0 %v3272
        %v3394 = vpop.f32.mrf.mxu0
        %v3395 = vadd.f32 %v3300, %v3394
        %v3396 = vpop.f32.mrf.mxu0
        %v3397 = vadd.f32 %v3300, %v3396
        %3398 = vmatmul.bf16.gmra.mxu0 %v3273
        %v3399 = vpop.f32.mrf.mxu0
        %v3400 = vadd.f32 %v3300, %v3399
        %v3401 = vpop.f32.mrf.mxu0
        %v3402 = vadd.f32 %v3300, %v3401
        %3403 = vmatmul.bf16.gmra.mxu0 %v3274
        %v3404 = vpop.f32.mrf.mxu0
        %v3405 = vadd.f32 %v3300, %v3404
        %v3406 = vpop.f32.mrf.mxu0
        %v3407 = vadd.f32 %v3300, %v3406
        %3408 = vmatmul.bf16.gmra.mxu0 %v3275
        %v3409 = vpop.f32.mrf.mxu0
        %v3410 = vadd.f32 %v3300, %v3409
        %v3411 = vpop.f32.mrf.mxu0
        %v3412 = vadd.f32 %v3300, %v3411
        %3413 = vmatmul.bf16.gmra.mxu0 %v3276
        %v3414 = vpop.f32.mrf.mxu0
        %v3415 = vadd.f32 %v3300, %v3414
        %v3416 = vpop.f32.mrf.mxu0
        %v3417 = vadd.f32 %v3300, %v3416
        %3418 = vmatmul.bf16.gmra.mxu0 %v3277
        %v3419 = vpop.f32.mrf.mxu0
        %v3420 = vadd.f32 %v3300, %v3419
        %v3421 = vpop.f32.mrf.mxu0
        %v3422 = vadd.f32 %v3300, %v3421
        %3423 = vmatmul.bf16.gmra.mxu0 %v3278
        %v3424 = vpop.f32.mrf.mxu0
        %v3425 = vadd.f32 %v3300, %v3424
        %v3426 = vpop.f32.mrf.mxu0
        %v3427 = vadd.f32 %v3300, %v3426
        %3428 = vmatmul.bf16.gmra.mxu0 %v3279
        %v3429 = vpop.f32.mrf.mxu0
        %v3430 = vadd.f32 %v3300, %v3429
        %v3431 = vpop.f32.mrf.mxu0
        %v3432 = vadd.f32 %v3300, %v3431
        %3433 = vmatmul.bf16.gmra.mxu0 %v3280
        %v3434 = vpop.f32.mrf.mxu0
        %v3435 = vadd.f32 %v3300, %v3434
        %v3436 = vpop.f32.mrf.mxu0
        %v3437 = vadd.f32 %v3300, %v3436
        %3438 = vmatmul.bf16.gmra.mxu0 %v3281
        %v3439 = vpop.f32.mrf.mxu0
        %v3440 = vadd.f32 %v3300, %v3439
        %v3441 = vpop.f32.mrf.mxu0
        %3442 = vdwg.mxu0
        %v3443 = vld [vmem:[%s483] sm:$0xff]
        %v3444 = vld [vmem:[%s483 + $0x8] sm:$0xff]
        %v3445 = vld [vmem:[%s483 + $0x10] sm:$0xff]
        %v3446 = vld [vmem:[%s483 + $0x18] sm:$0xff]
        %v3447 = vld [vmem:[%s483 + $0x20] sm:$0xff]
        %v3448 = vld [vmem:[%s483 + $0x28] sm:$0xff]
        %v3449 = vld [vmem:[%s483 + $0x30] sm:$0xff]
        %v3450 = vld [vmem:[%s483 + $0x38] sm:$0xff]
        %v3451 = vld [vmem:[%s483 + $0x40] sm:$0xff]
        %v3452 = vld [vmem:[%s483 + $0x48] sm:$0xff]
        %v3453 = vld [vmem:[%s483 + $0x50] sm:$0xff]
        %v3454 = vld [vmem:[%s483 + $0x58] sm:$0xff]
        %v3455 = vld [vmem:[%s483 + $0x60] sm:$0xff]
        %v3456 = vld [vmem:[%s483 + $0x68] sm:$0xff]
        %v3457 = vld [vmem:[%s483 + $0x70] sm:$0xff]
        %v3458 = vld [vmem:[%s483 + $0x78] sm:$0xff]
        %v3459 = vld [vmem:[%s483 + $0x80] sm:$0xff]
        %v3460 = vld [vmem:[%s483 + $0x88] sm:$0xff]
        %v3461 = vld [vmem:[%s483 + $0x90] sm:$0xff]
        %v3462 = vld [vmem:[%s483 + $0x98] sm:$0xff]
        %v3463 = vld [vmem:[%s483 + $0xa0] sm:$0xff]
        %v3464 = vld [vmem:[%s483 + $0xa8] sm:$0xff]
        %v3465 = vld [vmem:[%s483 + $0xb0] sm:$0xff]
        %v3466 = vld [vmem:[%s483 + $0xb8] sm:$0xff]
        %v3467 = vld [vmem:[%s483 + $0xc0] sm:$0xff]
        %v3468 = vld [vmem:[%s483 + $0xc8] sm:$0xff]
        %v3469 = vld [vmem:[%s483 + $0xd0] sm:$0xff]
        %v3470 = vld [vmem:[%s483 + $0xd8] sm:$0xff]
        %v3471 = vld [vmem:[%s483 + $0xe0] sm:$0xff]
        %v3472 = vld [vmem:[%s483 + $0xe8] sm:$0xff]
        %v3473 = vld [vmem:[%s483 + $0xf0] sm:$0xff]
        %v3474 = vld [vmem:[%s483 + $0xf8] sm:$0xff]
        %v3475 = vld [vmem:[%s483 + $0x100] sm:$0xff]
        %v3476 = vadd.f32 %v3360, %v3443
        %v3477 = vadd.f32 %v3362, %v3444
        %v3478 = vadd.f32 %v3365, %v3445
        %v3479 = vadd.f32 %v3367, %v3446
        %v3480 = vadd.f32 %v3370, %v3447
        %v3481 = vadd.f32 %v3372, %v3448
        %v3482 = vadd.f32 %v3375, %v3449
        %v3483 = vadd.f32 %v3377, %v3450
        %v3484 = vadd.f32 %v3380, %v3451
        %v3485 = vadd.f32 %v3382, %v3452
        %v3486 = vadd.f32 %v3385, %v3453
        %v3487 = vadd.f32 %v3387, %v3454
        %v3488 = vadd.f32 %v3390, %v3455
        %v3489 = vadd.f32 %v3392, %v3456
        %v3490 = vadd.f32 %v3395, %v3457
        %v3491 = vadd.f32 %v3397, %v3458
        %v3492 = vadd.f32 %v3400, %v3459
        %v3493 = vadd.f32 %v3402, %v3460
        %v3494 = vadd.f32 %v3405, %v3461
        %v3495 = vadd.f32 %v3407, %v3462
        %v3496 = vadd.f32 %v3410, %v3463
        %v3497 = vadd.f32 %v3412, %v3464
        %v3498 = vadd.f32 %v3415, %v3465
        %v3499 = vadd.f32 %v3417, %v3466
        %v3500 = vadd.f32 %v3420, %v3467
        %v3501 = vadd.f32 %v3422, %v3468
        %v3502 = vadd.f32 %v3425, %v3469
        %v3503 = vadd.f32 %v3427, %v3470
        %v3504 = vadd.f32 %v3430, %v3471
        %v3505 = vadd.f32 %v3432, %v3472
        %v3506 = vadd.f32 %v3435, %v3473
        %v3507 = vadd.f32 %v3437, %v3474
        %v3508 = vadd.f32 %v3440, %v3475
        %3509 = vst.msk [vmem:[%s488] sm:$0xff] %vm576, %v3476
        %3510 = vst.msk [vmem:[%s488 + $0x8] sm:$0xff] %vm576, %v3477
        %3511 = vst.msk [vmem:[%s488 + $0x10] sm:$0xff] %vm576, %v3478
        %3512 = vst.msk [vmem:[%s488 + $0x18] sm:$0xff] %vm576, %v3479
        %3513 = vst.msk [vmem:[%s488 + $0x20] sm:$0xff] %vm576, %v3480
        %3514 = vst.msk [vmem:[%s488 + $0x28] sm:$0xff] %vm576, %v3481
        %3515 = vst.msk [vmem:[%s488 + $0x30] sm:$0xff] %vm576, %v3482
        %3516 = vst.msk [vmem:[%s488 + $0x38] sm:$0xff] %vm576, %v3483
        %3517 = vst.msk [vmem:[%s488 + $0x40] sm:$0xff] %vm576, %v3484
        %3518 = vst.msk [vmem:[%s488 + $0x48] sm:$0xff] %vm576, %v3485
        %3519 = vst.msk [vmem:[%s488 + $0x50] sm:$0xff] %vm576, %v3486
        %3520 = vst.msk [vmem:[%s488 + $0x58] sm:$0xff] %vm576, %v3487
        %3521 = vst.msk [vmem:[%s488 + $0x60] sm:$0xff] %vm576, %v3488
        %3522 = vst.msk [vmem:[%s488 + $0x68] sm:$0xff] %vm576, %v3489
        %3523 = vst.msk [vmem:[%s488 + $0x70] sm:$0xff] %vm576, %v3490
        %3524 = vst.msk [vmem:[%s488 + $0x78] sm:$0xff] %vm576, %v3491
        %3525 = vst.msk [vmem:[%s488 + $0x80] sm:$0xff] %vm576, %v3492
        %3526 = vst.msk [vmem:[%s488 + $0x88] sm:$0xff] %vm576, %v3493
        %3527 = vst.msk [vmem:[%s488 + $0x90] sm:$0xff] %vm576, %v3494
        %3528 = vst.msk [vmem:[%s488 + $0x98] sm:$0xff] %vm576, %v3495
        %3529 = vst.msk [vmem:[%s488 + $0xa0] sm:$0xff] %vm576, %v3496
        %3530 = vst.msk [vmem:[%s488 + $0xa8] sm:$0xff] %vm576, %v3497
        %3531 = vst.msk [vmem:[%s488 + $0xb0] sm:$0xff] %vm576, %v3498
        %3532 = vst.msk [vmem:[%s488 + $0xb8] sm:$0xff] %vm576, %v3499
        %3533 = vst.msk [vmem:[%s488 + $0xc0] sm:$0xff] %vm576, %v3500
        %3534 = vst.msk [vmem:[%s488 + $0xc8] sm:$0xff] %vm576, %v3501
        %3535 = vst.msk [vmem:[%s488 + $0xd0] sm:$0xff] %vm576, %v3502
        %3536 = vst.msk [vmem:[%s488 + $0xd8] sm:$0xff] %vm576, %v3503
        %3537 = vst.msk [vmem:[%s488 + $0xe0] sm:$0xff] %vm576, %v3504
        %3538 = vst.msk [vmem:[%s488 + $0xe8] sm:$0xff] %vm576, %v3505
        %3539 = vst.msk [vmem:[%s488 + $0xf0] sm:$0xff] %vm576, %v3506
        %3540 = vst.msk [vmem:[%s488 + $0xf8] sm:$0xff] %vm576, %v3507
        %3541 = vst.msk [vmem:[%s469] sm:$0xff] %vm576, %v3508
        %p3542 = scmp.lt.s32.totalorder %s28, 1
        %s3543 = scalar_select %p3542, %s28, 1
        %s3544 = smul.addr %s3543, 32
        %s3545 = smul.addr %s3544, 8
        %s3546 = scalar_lea.vmem %s12, %s3545
        %s3547 = sand.u32 %s329, 1
        %s3548 = scalar_lea.sflag [#allocation4], %s3547
        %s3549 = sand.u32 %s329, 1
        %s3550 = smul.addr %s3549, 8
        %s3551 = scalar_lea.vmem [#allocation3], %s3550
        // Predicated region
        $region69: #{tpu_custom_call.1} parent=67 // pred_check
          %p3552 = pneg %p313
        $region70: #{tpu_custom_call.1} parent=67 // pred_check_branch
          %3554 = sbr.rel (%p3552) target = $region72
        $region71: #{tpu_custom_call.1} parent=67 // pred_region
          _
        $region72: #{tpu_custom_call.1} parent=67 // pred_fallthru
          _
        // Predicated region
        $region73: #{tpu_custom_call.1} parent=67 // pred_check
          %p3555 = pneg %p339
        $region74: #{tpu_custom_call.1} parent=67 // pred_check_branch
          %3557 = sbr.rel (%p3555) target = $region76
        $region75: #{tpu_custom_call.1} parent=67 // pred_region
          %3559 = vsyncadd %s3548, 0
          %s3560 = smul.addr %s28, 8
          %s3561 = scalar_lea.hbm %s13, %s3560
          %s3563 = sshll.u32 %s3551, 4
          %s3564 = int_to_ptr.vmem [resolvable:$true] %s3563
          %s3565 = sshll.u32 %s3561, 4
          %s3566 = int_to_ptr.hbm [resolvable:$true] %s3565
          %3568 = dma.vmem_to_hbm [thread:$0]  %s3564, 128, %s3566, %s3548
        $region76: #{tpu_custom_call.1} parent=67 // pred_fallthru
          _
      $region68: #{tpu_custom_call.1} parent=5 // pred_fallthru
        _
      %p3569 = scmp.le.s32.totalorder 2, %s23
      // Predicated region
      $region77: #{tpu_custom_call.1} parent=5 // pred_check
        %p3570 = pneg %p3569
      $region78: #{tpu_custom_call.1} parent=5 // pred_check_branch
        %3572 = sbr.rel (%p3570) target = $region80
      $region79: #{tpu_custom_call.1} parent=5 // pred_region
        %s3573 = ssub.s32 %s23, 2
        // Predicated region
        $region81: #{tpu_custom_call.1} parent=79 // pred_check
          %p3574 = pneg %p319
        $region82: #{tpu_custom_call.1} parent=79 // pred_check_branch
          %3576 = sbr.rel (%p3574) target = $region84
        $region83: #{tpu_custom_call.1} parent=79 // pred_region
          %p3577 = scmp.lt.s32.totalorder %s29, 1
          %s3578 = scalar_select %p3577, %s29, 1
          %s3579 = smul.addr %s3578, 32
          %s3580 = smul.addr %s3579, 8
          %s3581 = scalar_lea.vmem %s12, %s3580
        $region84: #{tpu_custom_call.1} parent=79 // pred_fallthru
          _
        // Predicated region
        $region85: #{tpu_custom_call.1} parent=79 // pred_check
          %p3582 = pneg %p345
        $region86: #{tpu_custom_call.1} parent=79 // pred_check_branch
          %3584 = sbr.rel (%p3582) target = $region88
        $region87: #{tpu_custom_call.1} parent=79 // pred_region
          %s3585 = sand.u32 %s330, 1
          %s3586 = scalar_lea.sflag [#allocation4], %s3585
          %s3587 = sand.u32 %s330, 1
          %s3588 = smul.addr %s3587, 8
          %s3589 = scalar_lea.vmem [#allocation3], %s3588
          %3591 = dma.done %s3586, 128
        $region88: #{tpu_custom_call.1} parent=79 // pred_fallthru
          _
      $region80: #{tpu_custom_call.1} parent=5 // pred_fallthru
        _
    $region6: #{tpu_custom_call.1} parent=1 // loop_footer
      %s27 = sadd.s32 1, %s23
    $region7: #{tpu_custom_call.1} parent=1 // loop_footer_branch
      %22 = sbr.rel target = $region3
    $region8: #{tpu_custom_call.1} parent=1 // loop_exit
      _
    %3592 = vsyncpa [#allocation4], 1
    %s3593 = scalar_lea.sflag [#allocation4], 1
    %3594 = vsyncpa %s3593, 1

</llo_original>
